<compile_context>
chip_gen: v5e
topology: v5e:2x2
jax: 0.10.0
libtpu: 0.0.40
codegen_flags: <defaults>
</compile_context>

<pallas_src>
import functools

import jax
import jax.numpy as jnp
from jax.experimental import pallas as pl
from jax.experimental.pallas import tpu as pltpu


def _round_up(x, m):
    return ((x + m - 1) // m) * m


# ------------------------------- Fused kernel ------------------------------- #

def _fused_sentiment_kernel(*refs, n_layers, seq_len, batch, hp):
    """Fused multi-layer LSTM + FC + sigmoid.

    refs layout:
      inputs : x2d (T*B, E) bf16,
               [w_ih_t (in, 4Hp) bf16, w_hh_t (Hp, 4Hp) bf16, b (1, 4Hp) f32] * n_layers,
               fc_w_t (Hp, Np) bf16, fc_b (1, Np) f32
      outputs: sig (B, Np) f32, h_n (L, B, Hp) f32
      scratch: act (T*B, Hp) f32, gates_x (T*B, 4Hp) f32
    Gate order follows PyTorch: i, f, g, o — each gate block lane-padded to Hp.
    """
    n_in = 1 + 3 * n_layers + 2
    x_ref = refs[0]
    layer_refs = refs[1:1 + 3 * n_layers]
    fc_w_ref = refs[1 + 3 * n_layers]
    fc_b_ref = refs[2 + 3 * n_layers]
    sig_ref = refs[n_in]
    hn_ref = refs[n_in + 1]
    act_ref = refs[n_in + 2]
    gates_ref = refs[n_in + 3]

    h_last = None
    for layer in range(n_layers):
        w_ih = layer_refs[3 * layer][...]       # (in_dim, 4Hp) bf16
        w_hh = layer_refs[3 * layer + 1][...]   # (Hp, 4Hp)     bf16
        b = layer_refs[3 * layer + 2][...]      # (1, 4Hp)      f32

        if layer == 0:
            x2d = x_ref[...]                               # (T*B, E) bf16
        else:
            x2d = act_ref[...].astype(jnp.bfloat16)        # (T*B, Hp)

        # Hoisted input projection: one MXU-friendly matmul over all timesteps.
        gates_ref[...] = (
            jnp.dot(x2d, w_ih, preferred_element_type=jnp.float32) + b
        )

        write_act = layer < n_layers - 1

        def step(t, carry, _write_act=write_act, _w_hh=w_hh):
            h, c = carry
            row = pl.multiple_of(t * batch, batch)
            g = gates_ref[pl.ds(row, batch), :] + jnp.dot(
                h.astype(jnp.bfloat16), _w_hh, preferred_element_type=jnp.float32
            )                                              # (B, 4Hp) f32
            # Lane-aligned gate slices (each gate block is a full 128-lane chunk).
            i_g = jax.nn.sigmoid(g[:, 0 * hp:1 * hp])
            f_g = jax.nn.sigmoid(g[:, 1 * hp:2 * hp])
            g_g = jnp.tanh(g[:, 2 * hp:3 * hp])
            o_g = jax.nn.sigmoid(g[:, 3 * hp:4 * hp])
            c_new = f_g * c + i_g * g_g
            h_new = o_g * jnp.tanh(c_new)
            if _write_act:                                 # last layer: only final h needed
                act_ref[pl.ds(row, batch), :] = h_new
            return (h_new, c_new)

        h0 = jnp.zeros((batch, hp), jnp.float32)
        c0 = jnp.zeros((batch, hp), jnp.float32)
        # Unrolled short fixed-trip-count loop: LLO can overlap EUP/VPU gate math of
        # step t with the h @ W_hh issue of step t+1.
        h_last, _ = jax.lax.fori_loop(0, seq_len, step, (h0, c0), unroll=True)
        hn_ref[layer] = h_last
        # inter-layer dropout: identity in eval mode

    # FC + sigmoid on the last timestep only (all other rows are dead work).
    z = jnp.dot(h_last.astype(jnp.bfloat16), fc_w_ref[...],
                preferred_element_type=jnp.float32) + fc_b_ref[...]
    sig_ref[...] = jax.nn.sigmoid(z)


# --------------------------- Parameter creation ----------------------------- #

def init_params(key, n_vocab, n_embed, n_hidden, n_output, n_layers):
    """Deterministic parameter init mirroring the nn.Module's parameter shapes."""
    params = {}
    keys = jax.random.split(key, 3 + 4 * n_layers)
    k_iter = iter(keys)

    params["embedding"] = jax.random.normal(next(k_iter), (n_vocab, n_embed), jnp.float32)

    bound = 1.0 / jnp.sqrt(jnp.float32(n_hidden))
    lstm_layers = []
    for layer in range(n_layers):
        in_dim = n_embed if layer == 0 else n_hidden
        w_ih = jax.random.uniform(next(k_iter), (4 * n_hidden, in_dim), jnp.float32, -bound, bound)
        w_hh = jax.random.uniform(next(k_iter), (4 * n_hidden, n_hidden), jnp.float32, -bound, bound)
        b_ih = jax.random.uniform(next(k_iter), (4 * n_hidden,), jnp.float32, -bound, bound)
        b_hh = jax.random.uniform(next(k_iter), (4 * n_hidden,), jnp.float32, -bound, bound)
        lstm_layers.append({"w_ih": w_ih, "w_hh": w_hh, "b_ih": b_ih, "b_hh": b_hh})
    params["lstm"] = lstm_layers

    fc_bound = 1.0 / jnp.sqrt(jnp.float32(n_hidden))
    params["fc_w"] = jax.random.uniform(next(k_iter), (n_output, n_hidden), jnp.float32, -fc_bound, fc_bound)
    params["fc_b"] = jax.random.uniform(next(k_iter), (n_output,), jnp.float32, -fc_bound, fc_bound)
    return params


def _pad_gate_cols(w, h, hp):
    """(rows, 4h) -> (rows, 4hp): zero-pad each of the 4 PyTorch gate blocks to hp lanes."""
    rows = w.shape[0]
    out = jnp.zeros((rows, 4 * hp), w.dtype)
    for k in range(4):
        out = out.at[:, k * hp:k * hp + h].set(w[:, k * h:(k + 1) * h])
    return out


def _pad_rows(w, rows_p):
    return jnp.pad(w, ((0, rows_p - w.shape[0]), (0, 0)))


def prepare_params(params, n_hidden, n_output):
    """Pre-transpose, pre-combine biases, lane-pad, and cast matmul operands to bf16 (once)."""
    h = n_hidden
    hp = _round_up(h, 128)
    n_out_p = _round_up(n_output, 128)

    prepared = {"embedding": params["embedding"], "lstm": []}
    for layer_idx, p in enumerate(params["lstm"]):
        w_ih_t = _pad_gate_cols(jnp.transpose(p["w_ih"]), h, hp)          # (in, 4Hp)
        if layer_idx > 0:
            w_ih_t = _pad_rows(w_ih_t, hp)                                # prev layer h is Hp wide
        w_hh_t = _pad_rows(_pad_gate_cols(jnp.transpose(p["w_hh"]), h, hp), hp)  # (Hp, 4Hp)
        b = _pad_gate_cols((p["b_ih"] + p["b_hh"])[None, :], h, hp)       # (1, 4Hp)
        prepared["lstm"].append({
            "w_ih_t": w_ih_t.astype(jnp.bfloat16),
            "w_hh_t": w_hh_t.astype(jnp.bfloat16),
            "b": b.astype(jnp.float32),
        })

    fc_w_t = jnp.zeros((hp, n_out_p), jnp.float32).at[:h, :n_output].set(jnp.transpose(params["fc_w"]))
    fc_b = jnp.zeros((1, n_out_p), jnp.float32).at[0, :n_output].set(params["fc_b"])
    prepared["fc_w_t"] = fc_w_t.astype(jnp.bfloat16)
    prepared["fc_b"] = fc_b
    return prepared


# ------------------------------ Forward pass -------------------------------- #

@functools.partial(jax.jit, static_argnames=("n_hidden", "n_output"))
def sentiment_lstm_forward(prepared, input_words, n_hidden, n_output):
    """input_words: (B, T) int32 token ids. Returns (sigmoid_last (B,), h_n (L, B, H))."""
    B, T = input_words.shape
    n_layers = len(prepared["lstm"])
    hp = prepared["lstm"][0]["w_hh_t"].shape[0]
    n_out_p = prepared["fc_w_t"].shape[1]
    bp = _round_up(B, 8)  # sublane-align batch

    # Embedding lookup (gather glue in plain JAX), pad batch, go time-major, fold T into rows.
    emb = prepared["embedding"][input_words]                       # (B, T, E) f32
    emb = jnp.pad(emb, ((0, bp - B), (0, 0), (0, 0)))              # (Bp, T, E)
    x2d = jnp.transpose(emb, (1, 0, 2)).reshape(T * bp, -1).astype(jnp.bfloat16)

    inputs = [x2d]
    for lp in prepared["lstm"]:
        inputs += [lp["w_ih_t"], lp["w_hh_t"], lp["b"]]
    inputs += [prepared["fc_w_t"], prepared["fc_b"]]

    kernel = functools.partial(
        _fused_sentiment_kernel, n_layers=n_layers, seq_len=T, batch=bp, hp=hp)

    sig_p, hn_p = pl.pallas_call(
        kernel,
        out_shape=(
            jax.ShapeDtypeStruct((bp, n_out_p), jnp.float32),
            jax.ShapeDtypeStruct((n_layers, bp, hp), jnp.float32),
        ),
        in_specs=[pl.BlockSpec(memory_space=pltpu.MemorySpace.VMEM)] * len(inputs),
        out_specs=(
            pl.BlockSpec(memory_space=pltpu.MemorySpace.VMEM),
            pl.BlockSpec(memory_space=pltpu.MemorySpace.VMEM),
        ),
        scratch_shapes=[
            pltpu.VMEM((T * bp, hp), jnp.float32),       # inter-layer activations
            pltpu.VMEM((T * bp, 4 * hp), jnp.float32),   # hoisted input-projection gates
        ],
        compiler_params=pltpu.CompilerParams(vmem_limit_bytes=32 * 1024 * 1024),
    )(*inputs)

    # sigmoid_out.view(B, -1)[:, -1] == FC(last timestep)[:, n_output-1]
    sigmoid_last = sig_p[:B, n_output - 1]                 # (B,)
    h_n = hn_p[:, :B, :n_hidden]                           # (L, B, H)
    return sigmoid_last, h_n


# --------------------------------- Main ------------------------------------- #

if __name__ == "__main__":
    n_vocab, n_embed, n_hidden, n_output, n_layers = 100, 32, 32, 1, 2
    batch, seq_len = 2, 8

    key = jax.random.PRNGKey(0)
    pkey, xkey = jax.random.split(key)

    params = init_params(pkey, n_vocab, n_embed, n_hidden, n_output, n_layers)
    prepared = prepare_params(params, n_hidden, n_output)
    input_words = jax.random.randint(xkey, (batch, seq_len), 0, n_vocab, dtype=jnp.int32)

    sigmoid_last, h_n = sentiment_lstm_forward(
        prepared, input_words, n_hidden=n_hidden, n_output=n_output)
    jax.block_until_ready((sigmoid_last, h_n))

    assert sigmoid_last.shape == (batch,)
    assert h_n.shape == (n_layers, batch, n_hidden)
    assert bool(jnp.all(jnp.isfinite(sigmoid_last)))
    assert bool(jnp.all((sigmoid_last >= 0.0) & (sigmoid_last <= 1.0)))

    print("KERNEL_OK")
</pallas_src>

<mosaic_0001>
module attributes {stable_mosaic.version = 11 : i64} {
  func.func @_fused_sentiment_kernel(%arg0: memref<64x32xbf16, #tpu.memory_space<vmem>>, %arg1: memref<32x512xbf16, #tpu.memory_space<vmem>>, %arg2: memref<128x512xbf16, #tpu.memory_space<vmem>>, %arg3: memref<1x512xf32, #tpu.memory_space<vmem>>, %arg4: memref<128x512xbf16, #tpu.memory_space<vmem>>, %arg5: memref<128x512xbf16, #tpu.memory_space<vmem>>, %arg6: memref<1x512xf32, #tpu.memory_space<vmem>>, %arg7: memref<128x128xbf16, #tpu.memory_space<vmem>>, %arg8: memref<1x128xf32, #tpu.memory_space<vmem>>, %arg9: memref<8x128xf32, #tpu.memory_space<vmem>>, %arg10: memref<2x8x128xf32, #tpu.memory_space<vmem>>, %arg11: memref<64x128xf32, #tpu.memory_space<vmem>>, %arg12: memref<64x512xf32, #tpu.memory_space<vmem>>) attributes {dimension_semantics = [], scalar_prefetch = 0 : i64, scratch_operands = 2 : i64, tpu.core_type = #tpu.core_type<tc>} {
    %c0 = arith.constant 0 : index
    %c0_0 = arith.constant 0 : index
    %0 = vector.load %arg1[%c0, %c0_0] : memref<32x512xbf16, #tpu.memory_space<vmem>>, vector<32x512xbf16>
    %c0_1 = arith.constant 0 : index
    %c0_2 = arith.constant 0 : index
    %1 = vector.load %arg2[%c0_1, %c0_2] : memref<128x512xbf16, #tpu.memory_space<vmem>>, vector<128x512xbf16>
    %c0_3 = arith.constant 0 : index
    %c0_4 = arith.constant 0 : index
    %2 = vector.load %arg3[%c0_3, %c0_4] : memref<1x512xf32, #tpu.memory_space<vmem>>, vector<1x512xf32>
    %c0_5 = arith.constant 0 : index
    %c0_6 = arith.constant 0 : index
    %3 = vector.load %arg0[%c0_5, %c0_6] : memref<64x32xbf16, #tpu.memory_space<vmem>>, vector<64x32xbf16>
    %cst = arith.constant dense<0.000000e+00> : vector<64x512xf32>
    %4 = tpu.matmul %3, %0, %cst {dimension_numbers = #tpu.dot_dimension_numbers<[1], [0], [0], [1], [0, 0, 1, 1], [], []>} : vector<64x32xbf16>, vector<32x512xbf16>, vector<64x512xf32> -> vector<64x512xf32>
    %5 = vector.broadcast %2 : vector<1x512xf32> to vector<64x512xf32>
    %6 = arith.addf %4, %5 : vector<64x512xf32>
    %c0_7 = arith.constant 0 : index
    %c0_8 = arith.constant 0 : index
    %7 = vector.load %arg12[%c0_7, %c0_8] : memref<64x512xf32, #tpu.memory_space<vmem>>, vector<64x512xf32>
    tpu.vector_store %arg12[%c0_7, %c0_8], %6 {strides = array<i32>} : memref<64x512xf32, #tpu.memory_space<vmem>>, vector<64x512xf32>,
    %cst_9 = arith.constant 0.000000e+00 : f32
    %8 = vector.broadcast %cst_9 : f32 to vector<8x128xf32>
    %cst_10 = arith.constant 0.000000e+00 : f32
    %9 = vector.broadcast %cst_10 : f32 to vector<8x128xf32>
    %c0_i32 = arith.constant 0 : i32
    %c8_i32 = arith.constant 8 : i32
    %10 = arith.muli %c0_i32, %c8_i32 : i32
    %11 = tpu.assume_multiple %10, 8 : i32
    %12 = arith.index_cast %11 : i32 to index
    %c0_11 = arith.constant 0 : index
    %13 = vector.load %arg12[%12, %c0_11] : memref<64x512xf32, #tpu.memory_space<vmem>>, vector<8x512xf32>
    %14 = arith.truncf %8 : vector<8x128xf32> to vector<8x128xbf16>
    %cst_12 = arith.constant dense<0.000000e+00> : vector<8x512xf32>
    %15 = tpu.matmul %14, %1, %cst_12 {dimension_numbers = #tpu.dot_dimension_numbers<[1], [0], [0], [1], [0, 0, 1, 1], [], []>} : vector<8x128xbf16>, vector<128x512xbf16>, vector<8x512xf32> -> vector<8x512xf32>
    %16 = arith.addf %13, %15 : vector<8x512xf32>
    %17 = vector.extract_strided_slice %16 {offsets = [0, 0], sizes = [8, 128], strides = [1, 1]} : vector<8x512xf32> to vector<8x128xf32>
    %18 = arith.negf %17 : vector<8x128xf32>
    %19 = math.exp %18 : vector<8x128xf32>
    %cst_13 = arith.constant 1.000000e+00 : f32
    %20 = vector.broadcast %cst_13 : f32 to vector<8x128xf32>
    %21 = arith.addf %20, %19 : vector<8x128xf32>
    %22 = arith.divf %20, %21 : vector<8x128xf32>
    %23 = vector.extract_strided_slice %16 {offsets = [0, 128], sizes = [8, 128], strides = [1, 1]} : vector<8x512xf32> to vector<8x128xf32>
    %24 = arith.negf %23 : vector<8x128xf32>
    %25 = math.exp %24 : vector<8x128xf32>
    %cst_14 = arith.constant 1.000000e+00 : f32
    %26 = vector.broadcast %cst_14 : f32 to vector<8x128xf32>
    %27 = arith.addf %26, %25 : vector<8x128xf32>
    %28 = arith.divf %26, %27 : vector<8x128xf32>
    %29 = vector.extract_strided_slice %16 {offsets = [0, 256], sizes = [8, 128], strides = [1, 1]} : vector<8x512xf32> to vector<8x128xf32>
    %30 = math.tanh %29 : vector<8x128xf32>
    %31 = vector.extract_strided_slice %16 {offsets = [0, 384], sizes = [8, 128], strides = [1, 1]} : vector<8x512xf32> to vector<8x128xf32>
    %32 = arith.negf %31 : vector<8x128xf32>
    %33 = math.exp %32 : vector<8x128xf32>
    %cst_15 = arith.constant 1.000000e+00 : f32
    %34 = vector.broadcast %cst_15 : f32 to vector<8x128xf32>
    %35 = arith.addf %34, %33 : vector<8x128xf32>
    %36 = arith.divf %34, %35 : vector<8x128xf32>
    %37 = arith.mulf %28, %9 : vector<8x128xf32>
    %38 = arith.mulf %22, %30 : vector<8x128xf32>
    %39 = arith.addf %37, %38 : vector<8x128xf32>
    %40 = math.tanh %39 : vector<8x128xf32>
    %41 = arith.mulf %36, %40 : vector<8x128xf32>
    %42 = arith.index_cast %11 : i32 to index
    %c0_16 = arith.constant 0 : index
    %43 = vector.load %arg11[%42, %c0_16] : memref<64x128xf32, #tpu.memory_space<vmem>>, vector<8x128xf32>
    tpu.vector_store %arg11[%42, %c0_16], %41 {strides = array<i32>} : memref<64x128xf32, #tpu.memory_space<vmem>>, vector<8x128xf32>,
    %c1_i32 = arith.constant 1 : i32
    %c8_i32_17 = arith.constant 8 : i32
    %44 = arith.muli %c1_i32, %c8_i32_17 : i32
    %45 = tpu.assume_multiple %44, 8 : i32
    %46 = arith.index_cast %45 : i32 to index
    %c0_18 = arith.constant 0 : index
    %47 = vector.load %arg12[%46, %c0_18] : memref<64x512xf32, #tpu.memory_space<vmem>>, vector<8x512xf32>
    %48 = arith.truncf %41 : vector<8x128xf32> to vector<8x128xbf16>
    %cst_19 = arith.constant dense<0.000000e+00> : vector<8x512xf32>
    %49 = tpu.matmul %48, %1, %cst_19 {dimension_numbers = #tpu.dot_dimension_numbers<[1], [0], [0], [1], [0, 0, 1, 1], [], []>} : vector<8x128xbf16>, vector<128x512xbf16>, vector<8x512xf32> -> vector<8x512xf32>
    %50 = arith.addf %47, %49 : vector<8x512xf32>
    %51 = vector.extract_strided_slice %50 {offsets = [0, 0], sizes = [8, 128], strides = [1, 1]} : vector<8x512xf32> to vector<8x128xf32>
    %52 = arith.negf %51 : vector<8x128xf32>
    %53 = math.exp %52 : vector<8x128xf32>
    %cst_20 = arith.constant 1.000000e+00 : f32
    %54 = vector.broadcast %cst_20 : f32 to vector<8x128xf32>
    %55 = arith.addf %54, %53 : vector<8x128xf32>
    %56 = arith.divf %54, %55 : vector<8x128xf32>
    %57 = vector.extract_strided_slice %50 {offsets = [0, 128], sizes = [8, 128], strides = [1, 1]} : vector<8x512xf32> to vector<8x128xf32>
    %58 = arith.negf %57 : vector<8x128xf32>
    %59 = math.exp %58 : vector<8x128xf32>
    %cst_21 = arith.constant 1.000000e+00 : f32
    %60 = vector.broadcast %cst_21 : f32 to vector<8x128xf32>
    %61 = arith.addf %60, %59 : vector<8x128xf32>
    %62 = arith.divf %60, %61 : vector<8x128xf32>
    %63 = vector.extract_strided_slice %50 {offsets = [0, 256], sizes = [8, 128], strides = [1, 1]} : vector<8x512xf32> to vector<8x128xf32>
    %64 = math.tanh %63 : vector<8x128xf32>
    %65 = vector.extract_strided_slice %50 {offsets = [0, 384], sizes = [8, 128], strides = [1, 1]} : vector<8x512xf32> to vector<8x128xf32>
    %66 = arith.negf %65 : vector<8x128xf32>
    %67 = math.exp %66 : vector<8x128xf32>
    %cst_22 = arith.constant 1.000000e+00 : f32
    %68 = vector.broadcast %cst_22 : f32 to vector<8x128xf32>
    %69 = arith.addf %68, %67 : vector<8x128xf32>
    %70 = arith.divf %68, %69 : vector<8x128xf32>
    %71 = arith.mulf %62, %39 : vector<8x128xf32>
    %72 = arith.mulf %56, %64 : vector<8x128xf32>
    %73 = arith.addf %71, %72 : vector<8x128xf32>
    %74 = math.tanh %73 : vector<8x128xf32>
    %75 = arith.mulf %70, %74 : vector<8x128xf32>
    %76 = arith.index_cast %45 : i32 to index
    %c0_23 = arith.constant 0 : index
    %77 = vector.load %arg11[%76, %c0_23] : memref<64x128xf32, #tpu.memory_space<vmem>>, vector<8x128xf32>
    tpu.vector_store %arg11[%76, %c0_23], %75 {strides = array<i32>} : memref<64x128xf32, #tpu.memory_space<vmem>>, vector<8x128xf32>,
    %c2_i32 = arith.constant 2 : i32
    %c8_i32_24 = arith.constant 8 : i32
    %78 = arith.muli %c2_i32, %c8_i32_24 : i32
    %79 = tpu.assume_multiple %78, 8 : i32
    %80 = arith.index_cast %79 : i32 to index
    %c0_25 = arith.constant 0 : index
    %81 = vector.load %arg12[%80, %c0_25] : memref<64x512xf32, #tpu.memory_space<vmem>>, vector<8x512xf32>
    %82 = arith.truncf %75 : vector<8x128xf32> to vector<8x128xbf16>
    %cst_26 = arith.constant dense<0.000000e+00> : vector<8x512xf32>
    %83 = tpu.matmul %82, %1, %cst_26 {dimension_numbers = #tpu.dot_dimension_numbers<[1], [0], [0], [1], [0, 0, 1, 1], [], []>} : vector<8x128xbf16>, vector<128x512xbf16>, vector<8x512xf32> -> vector<8x512xf32>
    %84 = arith.addf %81, %83 : vector<8x512xf32>
    %85 = vector.extract_strided_slice %84 {offsets = [0, 0], sizes = [8, 128], strides = [1, 1]} : vector<8x512xf32> to vector<8x128xf32>
    %86 = arith.negf %85 : vector<8x128xf32>
    %87 = math.exp %86 : vector<8x128xf32>
    %cst_27 = arith.constant 1.000000e+00 : f32
    %88 = vector.broadcast %cst_27 : f32 to vector<8x128xf32>
    %89 = arith.addf %88, %87 : vector<8x128xf32>
    %90 = arith.divf %88, %89 : vector<8x128xf32>
    %91 = vector.extract_strided_slice %84 {offsets = [0, 128], sizes = [8, 128], strides = [1, 1]} : vector<8x512xf32> to vector<8x128xf32>
    %92 = arith.negf %91 : vector<8x128xf32>
    %93 = math.exp %92 : vector<8x128xf32>
    %cst_28 = arith.constant 1.000000e+00 : f32
    %94 = vector.broadcast %cst_28 : f32 to vector<8x128xf32>
    %95 = arith.addf %94, %93 : vector<8x128xf32>
    %96 = arith.divf %94, %95 : vector<8x128xf32>
    %97 = vector.extract_strided_slice %84 {offsets = [0, 256], sizes = [8, 128], strides = [1, 1]} : vector<8x512xf32> to vector<8x128xf32>
    %98 = math.tanh %97 : vector<8x128xf32>
    %99 = vector.extract_strided_slice %84 {offsets = [0, 384], sizes = [8, 128], strides = [1, 1]} : vector<8x512xf32> to vector<8x128xf32>
    %100 = arith.negf %99 : vector<8x128xf32>
    %101 = math.exp %100 : vector<8x128xf32>
    %cst_29 = arith.constant 1.000000e+00 : f32
    %102 = vector.broadcast %cst_29 : f32 to vector<8x128xf32>
    %103 = arith.addf %102, %101 : vector<8x128xf32>
    %104 = arith.divf %102, %103 : vector<8x128xf32>
    %105 = arith.mulf %96, %73 : vector<8x128xf32>
    %106 = arith.mulf %90, %98 : vector<8x128xf32>
    %107 = arith.addf %105, %106 : vector<8x128xf32>
    %108 = math.tanh %107 : vector<8x128xf32>
    %109 = arith.mulf %104, %108 : vector<8x128xf32>
    %110 = arith.index_cast %79 : i32 to index
    %c0_30 = arith.constant 0 : index
    %111 = vector.load %arg11[%110, %c0_30] : memref<64x128xf32, #tpu.memory_space<vmem>>, vector<8x128xf32>
    tpu.vector_store %arg11[%110, %c0_30], %109 {strides = array<i32>} : memref<64x128xf32, #tpu.memory_space<vmem>>, vector<8x128xf32>,
    %c3_i32 = arith.constant 3 : i32
    %c8_i32_31 = arith.constant 8 : i32
    %112 = arith.muli %c3_i32, %c8_i32_31 : i32
    %113 = tpu.assume_multiple %112, 8 : i32
    %114 = arith.index_cast %113 : i32 to index
    %c0_32 = arith.constant 0 : index
    %115 = vector.load %arg12[%114, %c0_32] : memref<64x512xf32, #tpu.memory_space<vmem>>, vector<8x512xf32>
    %116 = arith.truncf %109 : vector<8x128xf32> to vector<8x128xbf16>
    %cst_33 = arith.constant dense<0.000000e+00> : vector<8x512xf32>
    %117 = tpu.matmul %116, %1, %cst_33 {dimension_numbers = #tpu.dot_dimension_numbers<[1], [0], [0], [1], [0, 0, 1, 1], [], []>} : vector<8x128xbf16>, vector<128x512xbf16>, vector<8x512xf32> -> vector<8x512xf32>
    %118 = arith.addf %115, %117 : vector<8x512xf32>
    %119 = vector.extract_strided_slice %118 {offsets = [0, 0], sizes = [8, 128], strides = [1, 1]} : vector<8x512xf32> to vector<8x128xf32>
    %120 = arith.negf %119 : vector<8x128xf32>
    %121 = math.exp %120 : vector<8x128xf32>
    %cst_34 = arith.constant 1.000000e+00 : f32
    %122 = vector.broadcast %cst_34 : f32 to vector<8x128xf32>
    %123 = arith.addf %122, %121 : vector<8x128xf32>
    %124 = arith.divf %122, %123 : vector<8x128xf32>
    %125 = vector.extract_strided_slice %118 {offsets = [0, 128], sizes = [8, 128], strides = [1, 1]} : vector<8x512xf32> to vector<8x128xf32>
    %126 = arith.negf %125 : vector<8x128xf32>
    %127 = math.exp %126 : vector<8x128xf32>
    %cst_35 = arith.constant 1.000000e+00 : f32
    %128 = vector.broadcast %cst_35 : f32 to vector<8x128xf32>
    %129 = arith.addf %128, %127 : vector<8x128xf32>
    %130 = arith.divf %128, %129 : vector<8x128xf32>
    %131 = vector.extract_strided_slice %118 {offsets = [0, 256], sizes = [8, 128], strides = [1, 1]} : vector<8x512xf32> to vector<8x128xf32>
    %132 = math.tanh %131 : vector<8x128xf32>
    %133 = vector.extract_strided_slice %118 {offsets = [0, 384], sizes = [8, 128], strides = [1, 1]} : vector<8x512xf32> to vector<8x128xf32>
    %134 = arith.negf %133 : vector<8x128xf32>
    %135 = math.exp %134 : vector<8x128xf32>
    %cst_36 = arith.constant 1.000000e+00 : f32
    %136 = vector.broadcast %cst_36 : f32 to vector<8x128xf32>
    %137 = arith.addf %136, %135 : vector<8x128xf32>
    %138 = arith.divf %136, %137 : vector<8x128xf32>
    %139 = arith.mulf %130, %107 : vector<8x128xf32>
    %140 = arith.mulf %124, %132 : vector<8x128xf32>
    %141 = arith.addf %139, %140 : vector<8x128xf32>
    %142 = math.tanh %141 : vector<8x128xf32>
    %143 = arith.mulf %138, %142 : vector<8x128xf32>
    %144 = arith.index_cast %113 : i32 to index
    %c0_37 = arith.constant 0 : index
    %145 = vector.load %arg11[%144, %c0_37] : memref<64x128xf32, #tpu.memory_space<vmem>>, vector<8x128xf32>
    tpu.vector_store %arg11[%144, %c0_37], %143 {strides = array<i32>} : memref<64x128xf32, #tpu.memory_space<vmem>>, vector<8x128xf32>,
    %c4_i32 = arith.constant 4 : i32
    %c8_i32_38 = arith.constant 8 : i32
    %146 = arith.muli %c4_i32, %c8_i32_38 : i32
    %147 = tpu.assume_multiple %146, 8 : i32
    %148 = arith.index_cast %147 : i32 to index
    %c0_39 = arith.constant 0 : index
    %149 = vector.load %arg12[%148, %c0_39] : memref<64x512xf32, #tpu.memory_space<vmem>>, vector<8x512xf32>
    %150 = arith.truncf %143 : vector<8x128xf32> to vector<8x128xbf16>
    %cst_40 = arith.constant dense<0.000000e+00> : vector<8x512xf32>
    %151 = tpu.matmul %150, %1, %cst_40 {dimension_numbers = #tpu.dot_dimension_numbers<[1], [0], [0], [1], [0, 0, 1, 1], [], []>} : vector<8x128xbf16>, vector<128x512xbf16>, vector<8x512xf32> -> vector<8x512xf32>
    %152 = arith.addf %149, %151 : vector<8x512xf32>
    %153 = vector.extract_strided_slice %152 {offsets = [0, 0], sizes = [8, 128], strides = [1, 1]} : vector<8x512xf32> to vector<8x128xf32>
    %154 = arith.negf %153 : vector<8x128xf32>
    %155 = math.exp %154 : vector<8x128xf32>
    %cst_41 = arith.constant 1.000000e+00 : f32
    %156 = vector.broadcast %cst_41 : f32 to vector<8x128xf32>
    %157 = arith.addf %156, %155 : vector<8x128xf32>
    %158 = arith.divf %156, %157 : vector<8x128xf32>
    %159 = vector.extract_strided_slice %152 {offsets = [0, 128], sizes = [8, 128], strides = [1, 1]} : vector<8x512xf32> to vector<8x128xf32>
    %160 = arith.negf %159 : vector<8x128xf32>
    %161 = math.exp %160 : vector<8x128xf32>
    %cst_42 = arith.constant 1.000000e+00 : f32
    %162 = vector.broadcast %cst_42 : f32 to vector<8x128xf32>
    %163 = arith.addf %162, %161 : vector<8x128xf32>
    %164 = arith.divf %162, %163 : vector<8x128xf32>
    %165 = vector.extract_strided_slice %152 {offsets = [0, 256], sizes = [8, 128], strides = [1, 1]} : vector<8x512xf32> to vector<8x128xf32>
    %166 = math.tanh %165 : vector<8x128xf32>
    %167 = vector.extract_strided_slice %152 {offsets = [0, 384], sizes = [8, 128], strides = [1, 1]} : vector<8x512xf32> to vector<8x128xf32>
    %168 = arith.negf %167 : vector<8x128xf32>
    %169 = math.exp %168 : vector<8x128xf32>
    %cst_43 = arith.constant 1.000000e+00 : f32
    %170 = vector.broadcast %cst_43 : f32 to vector<8x128xf32>
    %171 = arith.addf %170, %169 : vector<8x128xf32>
    %172 = arith.divf %170, %171 : vector<8x128xf32>
    %173 = arith.mulf %164, %141 : vector<8x128xf32>
    %174 = arith.mulf %158, %166 : vector<8x128xf32>
    %175 = arith.addf %173, %174 : vector<8x128xf32>
    %176 = math.tanh %175 : vector<8x128xf32>
    %177 = arith.mulf %172, %176 : vector<8x128xf32>
    %178 = arith.index_cast %147 : i32 to index
    %c0_44 = arith.constant 0 : index
    %179 = vector.load %arg11[%178, %c0_44] : memref<64x128xf32, #tpu.memory_space<vmem>>, vector<8x128xf32>
    tpu.vector_store %arg11[%178, %c0_44], %177 {strides = array<i32>} : memref<64x128xf32, #tpu.memory_space<vmem>>, vector<8x128xf32>,
    %c5_i32 = arith.constant 5 : i32
    %c8_i32_45 = arith.constant 8 : i32
    %180 = arith.muli %c5_i32, %c8_i32_45 : i32
    %181 = tpu.assume_multiple %180, 8 : i32
    %182 = arith.index_cast %181 : i32 to index
    %c0_46 = arith.constant 0 : index
    %183 = vector.load %arg12[%182, %c0_46] : memref<64x512xf32, #tpu.memory_space<vmem>>, vector<8x512xf32>
    %184 = arith.truncf %177 : vector<8x128xf32> to vector<8x128xbf16>
    %cst_47 = arith.constant dense<0.000000e+00> : vector<8x512xf32>
    %185 = tpu.matmul %184, %1, %cst_47 {dimension_numbers = #tpu.dot_dimension_numbers<[1], [0], [0], [1], [0, 0, 1, 1], [], []>} : vector<8x128xbf16>, vector<128x512xbf16>, vector<8x512xf32> -> vector<8x512xf32>
    %186 = arith.addf %183, %185 : vector<8x512xf32>
    %187 = vector.extract_strided_slice %186 {offsets = [0, 0], sizes = [8, 128], strides = [1, 1]} : vector<8x512xf32> to vector<8x128xf32>
    %188 = arith.negf %187 : vector<8x128xf32>
    %189 = math.exp %188 : vector<8x128xf32>
    %cst_48 = arith.constant 1.000000e+00 : f32
    %190 = vector.broadcast %cst_48 : f32 to vector<8x128xf32>
    %191 = arith.addf %190, %189 : vector<8x128xf32>
    %192 = arith.divf %190, %191 : vector<8x128xf32>
    %193 = vector.extract_strided_slice %186 {offsets = [0, 128], sizes = [8, 128], strides = [1, 1]} : vector<8x512xf32> to vector<8x128xf32>
    %194 = arith.negf %193 : vector<8x128xf32>
    %195 = math.exp %194 : vector<8x128xf32>
    %cst_49 = arith.constant 1.000000e+00 : f32
    %196 = vector.broadcast %cst_49 : f32 to vector<8x128xf32>
    %197 = arith.addf %196, %195 : vector<8x128xf32>
    %198 = arith.divf %196, %197 : vector<8x128xf32>
    %199 = vector.extract_strided_slice %186 {offsets = [0, 256], sizes = [8, 128], strides = [1, 1]} : vector<8x512xf32> to vector<8x128xf32>
    %200 = math.tanh %199 : vector<8x128xf32>
    %201 = vector.extract_strided_slice %186 {offsets = [0, 384], sizes = [8, 128], strides = [1, 1]} : vector<8x512xf32> to vector<8x128xf32>
    %202 = arith.negf %201 : vector<8x128xf32>
    %203 = math.exp %202 : vector<8x128xf32>
    %cst_50 = arith.constant 1.000000e+00 : f32
    %204 = vector.broadcast %cst_50 : f32 to vector<8x128xf32>
    %205 = arith.addf %204, %203 : vector<8x128xf32>
    %206 = arith.divf %204, %205 : vector<8x128xf32>
    %207 = arith.mulf %198, %175 : vector<8x128xf32>
    %208 = arith.mulf %192, %200 : vector<8x128xf32>
    %209 = arith.addf %207, %208 : vector<8x128xf32>
    %210 = math.tanh %209 : vector<8x128xf32>
    %211 = arith.mulf %206, %210 : vector<8x128xf32>
    %212 = arith.index_cast %181 : i32 to index
    %c0_51 = arith.constant 0 : index
    %213 = vector.load %arg11[%212, %c0_51] : memref<64x128xf32, #tpu.memory_space<vmem>>, vector<8x128xf32>
    tpu.vector_store %arg11[%212, %c0_51], %211 {strides = array<i32>} : memref<64x128xf32, #tpu.memory_space<vmem>>, vector<8x128xf32>,
    %c6_i32 = arith.constant 6 : i32
    %c8_i32_52 = arith.constant 8 : i32
    %214 = arith.muli %c6_i32, %c8_i32_52 : i32
    %215 = tpu.assume_multiple %214, 8 : i32
    %216 = arith.index_cast %215 : i32 to index
    %c0_53 = arith.constant 0 : index
    %217 = vector.load %arg12[%216, %c0_53] : memref<64x512xf32, #tpu.memory_space<vmem>>, vector<8x512xf32>
    %218 = arith.truncf %211 : vector<8x128xf32> to vector<8x128xbf16>
    %cst_54 = arith.constant dense<0.000000e+00> : vector<8x512xf32>
    %219 = tpu.matmul %218, %1, %cst_54 {dimension_numbers = #tpu.dot_dimension_numbers<[1], [0], [0], [1], [0, 0, 1, 1], [], []>} : vector<8x128xbf16>, vector<128x512xbf16>, vector<8x512xf32> -> vector<8x512xf32>
    %220 = arith.addf %217, %219 : vector<8x512xf32>
    %221 = vector.extract_strided_slice %220 {offsets = [0, 0], sizes = [8, 128], strides = [1, 1]} : vector<8x512xf32> to vector<8x128xf32>
    %222 = arith.negf %221 : vector<8x128xf32>
    %223 = math.exp %222 : vector<8x128xf32>
    %cst_55 = arith.constant 1.000000e+00 : f32
    %224 = vector.broadcast %cst_55 : f32 to vector<8x128xf32>
    %225 = arith.addf %224, %223 : vector<8x128xf32>
    %226 = arith.divf %224, %225 : vector<8x128xf32>
    %227 = vector.extract_strided_slice %220 {offsets = [0, 128], sizes = [8, 128], strides = [1, 1]} : vector<8x512xf32> to vector<8x128xf32>
    %228 = arith.negf %227 : vector<8x128xf32>
    %229 = math.exp %228 : vector<8x128xf32>
    %cst_56 = arith.constant 1.000000e+00 : f32
    %230 = vector.broadcast %cst_56 : f32 to vector<8x128xf32>
    %231 = arith.addf %230, %229 : vector<8x128xf32>
    %232 = arith.divf %230, %231 : vector<8x128xf32>
    %233 = vector.extract_strided_slice %220 {offsets = [0, 256], sizes = [8, 128], strides = [1, 1]} : vector<8x512xf32> to vector<8x128xf32>
    %234 = math.tanh %233 : vector<8x128xf32>
    %235 = vector.extract_strided_slice %220 {offsets = [0, 384], sizes = [8, 128], strides = [1, 1]} : vector<8x512xf32> to vector<8x128xf32>
    %236 = arith.negf %235 : vector<8x128xf32>
    %237 = math.exp %236 : vector<8x128xf32>
    %cst_57 = arith.constant 1.000000e+00 : f32
    %238 = vector.broadcast %cst_57 : f32 to vector<8x128xf32>
    %239 = arith.addf %238, %237 : vector<8x128xf32>
    %240 = arith.divf %238, %239 : vector<8x128xf32>
    %241 = arith.mulf %232, %209 : vector<8x128xf32>
    %242 = arith.mulf %226, %234 : vector<8x128xf32>
    %243 = arith.addf %241, %242 : vector<8x128xf32>
    %244 = math.tanh %243 : vector<8x128xf32>
    %245 = arith.mulf %240, %244 : vector<8x128xf32>
    %246 = arith.index_cast %215 : i32 to index
    %c0_58 = arith.constant 0 : index
    %247 = vector.load %arg11[%246, %c0_58] : memref<64x128xf32, #tpu.memory_space<vmem>>, vector<8x128xf32>
    tpu.vector_store %arg11[%246, %c0_58], %245 {strides = array<i32>} : memref<64x128xf32, #tpu.memory_space<vmem>>, vector<8x128xf32>,
    %c7_i32 = arith.constant 7 : i32
    %c8_i32_59 = arith.constant 8 : i32
    %248 = arith.muli %c7_i32, %c8_i32_59 : i32
    %249 = tpu.assume_multiple %248, 8 : i32
    %250 = arith.index_cast %249 : i32 to index
    %c0_60 = arith.constant 0 : index
    %251 = vector.load %arg12[%250, %c0_60] : memref<64x512xf32, #tpu.memory_space<vmem>>, vector<8x512xf32>
    %252 = arith.truncf %245 : vector<8x128xf32> to vector<8x128xbf16>
    %cst_61 = arith.constant dense<0.000000e+00> : vector<8x512xf32>
    %253 = tpu.matmul %252, %1, %cst_61 {dimension_numbers = #tpu.dot_dimension_numbers<[1], [0], [0], [1], [0, 0, 1, 1], [], []>} : vector<8x128xbf16>, vector<128x512xbf16>, vector<8x512xf32> -> vector<8x512xf32>
    %254 = arith.addf %251, %253 : vector<8x512xf32>
    %255 = vector.extract_strided_slice %254 {offsets = [0, 0], sizes = [8, 128], strides = [1, 1]} : vector<8x512xf32> to vector<8x128xf32>
    %256 = arith.negf %255 : vector<8x128xf32>
    %257 = math.exp %256 : vector<8x128xf32>
    %cst_62 = arith.constant 1.000000e+00 : f32
    %258 = vector.broadcast %cst_62 : f32 to vector<8x128xf32>
    %259 = arith.addf %258, %257 : vector<8x128xf32>
    %260 = arith.divf %258, %259 : vector<8x128xf32>
    %261 = vector.extract_strided_slice %254 {offsets = [0, 128], sizes = [8, 128], strides = [1, 1]} : vector<8x512xf32> to vector<8x128xf32>
    %262 = arith.negf %261 : vector<8x128xf32>
    %263 = math.exp %262 : vector<8x128xf32>
    %cst_63 = arith.constant 1.000000e+00 : f32
    %264 = vector.broadcast %cst_63 : f32 to vector<8x128xf32>
    %265 = arith.addf %264, %263 : vector<8x128xf32>
    %266 = arith.divf %264, %265 : vector<8x128xf32>
    %267 = vector.extract_strided_slice %254 {offsets = [0, 256], sizes = [8, 128], strides = [1, 1]} : vector<8x512xf32> to vector<8x128xf32>
    %268 = math.tanh %267 : vector<8x128xf32>
    %269 = vector.extract_strided_slice %254 {offsets = [0, 384], sizes = [8, 128], strides = [1, 1]} : vector<8x512xf32> to vector<8x128xf32>
    %270 = arith.negf %269 : vector<8x128xf32>
    %271 = math.exp %270 : vector<8x128xf32>
    %cst_64 = arith.constant 1.000000e+00 : f32
    %272 = vector.broadcast %cst_64 : f32 to vector<8x128xf32>
    %273 = arith.addf %272, %271 : vector<8x128xf32>
    %274 = arith.divf %272, %273 : vector<8x128xf32>
    %275 = arith.mulf %266, %243 : vector<8x128xf32>
    %276 = arith.mulf %260, %268 : vector<8x128xf32>
    %277 = arith.addf %275, %276 : vector<8x128xf32>
    %278 = math.tanh %277 : vector<8x128xf32>
    %279 = arith.mulf %274, %278 : vector<8x128xf32>
    %280 = arith.index_cast %249 : i32 to index
    %c0_65 = arith.constant 0 : index
    %281 = vector.load %arg11[%280, %c0_65] : memref<64x128xf32, #tpu.memory_space<vmem>>, vector<8x128xf32>
    tpu.vector_store %arg11[%280, %c0_65], %279 {strides = array<i32>} : memref<64x128xf32, #tpu.memory_space<vmem>>, vector<8x128xf32>,
    %c8_i32_66 = arith.constant 8 : i32
    %c0_67 = arith.constant 0 : index
    %c0_68 = arith.constant 0 : index
    %c0_69 = arith.constant 0 : index
    %282 = vector.load %arg10[%c0_67, %c0_68, %c0_69] : memref<2x8x128xf32, #tpu.memory_space<vmem>>, vector<1x8x128xf32>
    %283 = vector.shape_cast %282 : vector<1x8x128xf32> to vector<8x128xf32>
    %284 = vector.shape_cast %279 : vector<8x128xf32> to vector<1x8x128xf32>
    tpu.vector_store %arg10[%c0_67, %c0_68, %c0_69], %284 {strides = array<i32>} : memref<2x8x128xf32, #tpu.memory_space<vmem>>, vector<1x8x128xf32>,
    %c0_70 = arith.constant 0 : index
    %c0_71 = arith.constant 0 : index
    %285 = vector.load %arg4[%c0_70, %c0_71] : memref<128x512xbf16, #tpu.memory_space<vmem>>, vector<128x512xbf16>
    %c0_72 = arith.constant 0 : index
    %c0_73 = arith.constant 0 : index
    %286 = vector.load %arg5[%c0_72, %c0_73] : memref<128x512xbf16, #tpu.memory_space<vmem>>, vector<128x512xbf16>
    %c0_74 = arith.constant 0 : index
    %c0_75 = arith.constant 0 : index
    %287 = vector.load %arg6[%c0_74, %c0_75] : memref<1x512xf32, #tpu.memory_space<vmem>>, vector<1x512xf32>
    %c0_76 = arith.constant 0 : index
    %c0_77 = arith.constant 0 : index
    %288 = vector.load %arg11[%c0_76, %c0_77] : memref<64x128xf32, #tpu.memory_space<vmem>>, vector<64x128xf32>
    %289 = arith.truncf %288 : vector<64x128xf32> to vector<64x128xbf16>
    %cst_78 = arith.constant dense<0.000000e+00> : vector<64x512xf32>
    %290 = tpu.matmul %289, %285, %cst_78 {dimension_numbers = #tpu.dot_dimension_numbers<[1], [0], [0], [1], [0, 0, 1, 1], [], []>} : vector<64x128xbf16>, vector<128x512xbf16>, vector<64x512xf32> -> vector<64x512xf32>
    %291 = vector.broadcast %287 : vector<1x512xf32> to vector<64x512xf32>
    %292 = arith.addf %290, %291 : vector<64x512xf32>
    %c0_79 = arith.constant 0 : index
    %c0_80 = arith.constant 0 : index
    %293 = vector.load %arg12[%c0_79, %c0_80] : memref<64x512xf32, #tpu.memory_space<vmem>>, vector<64x512xf32>
    tpu.vector_store %arg12[%c0_79, %c0_80], %292 {strides = array<i32>} : memref<64x512xf32, #tpu.memory_space<vmem>>, vector<64x512xf32>,
    %cst_81 = arith.constant 0.000000e+00 : f32
    %294 = vector.broadcast %cst_81 : f32 to vector<8x128xf32>
    %cst_82 = arith.constant 0.000000e+00 : f32
    %295 = vector.broadcast %cst_82 : f32 to vector<8x128xf32>
    %c0_i32_83 = arith.constant 0 : i32
    %c8_i32_84 = arith.constant 8 : i32
    %296 = arith.muli %c0_i32_83, %c8_i32_84 : i32
    %297 = tpu.assume_multiple %296, 8 : i32
    %298 = arith.index_cast %297 : i32 to index
    %c0_85 = arith.constant 0 : index
    %299 = vector.load %arg12[%298, %c0_85] : memref<64x512xf32, #tpu.memory_space<vmem>>, vector<8x512xf32>
    %300 = arith.truncf %294 : vector<8x128xf32> to vector<8x128xbf16>
    %cst_86 = arith.constant dense<0.000000e+00> : vector<8x512xf32>
    %301 = tpu.matmul %300, %286, %cst_86 {dimension_numbers = #tpu.dot_dimension_numbers<[1], [0], [0], [1], [0, 0, 1, 1], [], []>} : vector<8x128xbf16>, vector<128x512xbf16>, vector<8x512xf32> -> vector<8x512xf32>
    %302 = arith.addf %299, %301 : vector<8x512xf32>
    %303 = vector.extract_strided_slice %302 {offsets = [0, 0], sizes = [8, 128], strides = [1, 1]} : vector<8x512xf32> to vector<8x128xf32>
    %304 = arith.negf %303 : vector<8x128xf32>
    %305 = math.exp %304 : vector<8x128xf32>
    %cst_87 = arith.constant 1.000000e+00 : f32
    %306 = vector.broadcast %cst_87 : f32 to vector<8x128xf32>
    %307 = arith.addf %306, %305 : vector<8x128xf32>
    %308 = arith.divf %306, %307 : vector<8x128xf32>
    %309 = vector.extract_strided_slice %302 {offsets = [0, 128], sizes = [8, 128], strides = [1, 1]} : vector<8x512xf32> to vector<8x128xf32>
    %310 = arith.negf %309 : vector<8x128xf32>
    %311 = math.exp %310 : vector<8x128xf32>
    %cst_88 = arith.constant 1.000000e+00 : f32
    %312 = vector.broadcast %cst_88 : f32 to vector<8x128xf32>
    %313 = arith.addf %312, %311 : vector<8x128xf32>
    %314 = arith.divf %312, %313 : vector<8x128xf32>
    %315 = vector.extract_strided_slice %302 {offsets = [0, 256], sizes = [8, 128], strides = [1, 1]} : vector<8x512xf32> to vector<8x128xf32>
    %316 = math.tanh %315 : vector<8x128xf32>
    %317 = vector.extract_strided_slice %302 {offsets = [0, 384], sizes = [8, 128], strides = [1, 1]} : vector<8x512xf32> to vector<8x128xf32>
    %318 = arith.negf %317 : vector<8x128xf32>
    %319 = math.exp %318 : vector<8x128xf32>
    %cst_89 = arith.constant 1.000000e+00 : f32
    %320 = vector.broadcast %cst_89 : f32 to vector<8x128xf32>
    %321 = arith.addf %320, %319 : vector<8x128xf32>
    %322 = arith.divf %320, %321 : vector<8x128xf32>
    %323 = arith.mulf %314, %295 : vector<8x128xf32>
    %324 = arith.mulf %308, %316 : vector<8x128xf32>
    %325 = arith.addf %323, %324 : vector<8x128xf32>
    %326 = math.tanh %325 : vector<8x128xf32>
    %327 = arith.mulf %322, %326 : vector<8x128xf32>
    %c1_i32_90 = arith.constant 1 : i32
    %c8_i32_91 = arith.constant 8 : i32
    %328 = arith.muli %c1_i32_90, %c8_i32_91 : i32
    %329 = tpu.assume_multiple %328, 8 : i32
    %330 = arith.index_cast %329 : i32 to index
    %c0_92 = arith.constant 0 : index
    %331 = vector.load %arg12[%330, %c0_92] : memref<64x512xf32, #tpu.memory_space<vmem>>, vector<8x512xf32>
    %332 = arith.truncf %327 : vector<8x128xf32> to vector<8x128xbf16>
    %cst_93 = arith.constant dense<0.000000e+00> : vector<8x512xf32>
    %333 = tpu.matmul %332, %286, %cst_93 {dimension_numbers = #tpu.dot_dimension_numbers<[1], [0], [0], [1], [0, 0, 1, 1], [], []>} : vector<8x128xbf16>, vector<128x512xbf16>, vector<8x512xf32> -> vector<8x512xf32>
    %334 = arith.addf %331, %333 : vector<8x512xf32>
    %335 = vector.extract_strided_slice %334 {offsets = [0, 0], sizes = [8, 128], strides = [1, 1]} : vector<8x512xf32> to vector<8x128xf32>
    %336 = arith.negf %335 : vector<8x128xf32>
    %337 = math.exp %336 : vector<8x128xf32>
    %cst_94 = arith.constant 1.000000e+00 : f32
    %338 = vector.broadcast %cst_94 : f32 to vector<8x128xf32>
    %339 = arith.addf %338, %337 : vector<8x128xf32>
    %340 = arith.divf %338, %339 : vector<8x128xf32>
    %341 = vector.extract_strided_slice %334 {offsets = [0, 128], sizes = [8, 128], strides = [1, 1]} : vector<8x512xf32> to vector<8x128xf32>
    %342 = arith.negf %341 : vector<8x128xf32>
    %343 = math.exp %342 : vector<8x128xf32>
    %cst_95 = arith.constant 1.000000e+00 : f32
    %344 = vector.broadcast %cst_95 : f32 to vector<8x128xf32>
    %345 = arith.addf %344, %343 : vector<8x128xf32>
    %346 = arith.divf %344, %345 : vector<8x128xf32>
    %347 = vector.extract_strided_slice %334 {offsets = [0, 256], sizes = [8, 128], strides = [1, 1]} : vector<8x512xf32> to vector<8x128xf32>
    %348 = math.tanh %347 : vector<8x128xf32>
    %349 = vector.extract_strided_slice %334 {offsets = [0, 384], sizes = [8, 128], strides = [1, 1]} : vector<8x512xf32> to vector<8x128xf32>
    %350 = arith.negf %349 : vector<8x128xf32>
    %351 = math.exp %350 : vector<8x128xf32>
    %cst_96 = arith.constant 1.000000e+00 : f32
    %352 = vector.broadcast %cst_96 : f32 to vector<8x128xf32>
    %353 = arith.addf %352, %351 : vector<8x128xf32>
    %354 = arith.divf %352, %353 : vector<8x128xf32>
    %355 = arith.mulf %346, %325 : vector<8x128xf32>
    %356 = arith.mulf %340, %348 : vector<8x128xf32>
    %357 = arith.addf %355, %356 : vector<8x128xf32>
    %358 = math.tanh %357 : vector<8x128xf32>
    %359 = arith.mulf %354, %358 : vector<8x128xf32>
    %c2_i32_97 = arith.constant 2 : i32
    %c8_i32_98 = arith.constant 8 : i32
    %360 = arith.muli %c2_i32_97, %c8_i32_98 : i32
    %361 = tpu.assume_multiple %360, 8 : i32
    %362 = arith.index_cast %361 : i32 to index
    %c0_99 = arith.constant 0 : index
    %363 = vector.load %arg12[%362, %c0_99] : memref<64x512xf32, #tpu.memory_space<vmem>>, vector<8x512xf32>
    %364 = arith.truncf %359 : vector<8x128xf32> to vector<8x128xbf16>
    %cst_100 = arith.constant dense<0.000000e+00> : vector<8x512xf32>
    %365 = tpu.matmul %364, %286, %cst_100 {dimension_numbers = #tpu.dot_dimension_numbers<[1], [0], [0], [1], [0, 0, 1, 1], [], []>} : vector<8x128xbf16>, vector<128x512xbf16>, vector<8x512xf32> -> vector<8x512xf32>
    %366 = arith.addf %363, %365 : vector<8x512xf32>
    %367 = vector.extract_strided_slice %366 {offsets = [0, 0], sizes = [8, 128], strides = [1, 1]} : vector<8x512xf32> to vector<8x128xf32>
    %368 = arith.negf %367 : vector<8x128xf32>
    %369 = math.exp %368 : vector<8x128xf32>
    %cst_101 = arith.constant 1.000000e+00 : f32
    %370 = vector.broadcast %cst_101 : f32 to vector<8x128xf32>
    %371 = arith.addf %370, %369 : vector<8x128xf32>
    %372 = arith.divf %370, %371 : vector<8x128xf32>
    %373 = vector.extract_strided_slice %366 {offsets = [0, 128], sizes = [8, 128], strides = [1, 1]} : vector<8x512xf32> to vector<8x128xf32>
    %374 = arith.negf %373 : vector<8x128xf32>
    %375 = math.exp %374 : vector<8x128xf32>
    %cst_102 = arith.constant 1.000000e+00 : f32
    %376 = vector.broadcast %cst_102 : f32 to vector<8x128xf32>
    %377 = arith.addf %376, %375 : vector<8x128xf32>
    %378 = arith.divf %376, %377 : vector<8x128xf32>
    %379 = vector.extract_strided_slice %366 {offsets = [0, 256], sizes = [8, 128], strides = [1, 1]} : vector<8x512xf32> to vector<8x128xf32>
    %380 = math.tanh %379 : vector<8x128xf32>
    %381 = vector.extract_strided_slice %366 {offsets = [0, 384], sizes = [8, 128], strides = [1, 1]} : vector<8x512xf32> to vector<8x128xf32>
    %382 = arith.negf %381 : vector<8x128xf32>
    %383 = math.exp %382 : vector<8x128xf32>
    %cst_103 = arith.constant 1.000000e+00 : f32
    %384 = vector.broadcast %cst_103 : f32 to vector<8x128xf32>
    %385 = arith.addf %384, %383 : vector<8x128xf32>
    %386 = arith.divf %384, %385 : vector<8x128xf32>
    %387 = arith.mulf %378, %357 : vector<8x128xf32>
    %388 = arith.mulf %372, %380 : vector<8x128xf32>
    %389 = arith.addf %387, %388 : vector<8x128xf32>
    %390 = math.tanh %389 : vector<8x128xf32>
    %391 = arith.mulf %386, %390 : vector<8x128xf32>
    %c3_i32_104 = arith.constant 3 : i32
    %c8_i32_105 = arith.constant 8 : i32
    %392 = arith.muli %c3_i32_104, %c8_i32_105 : i32
    %393 = tpu.assume_multiple %392, 8 : i32
    %394 = arith.index_cast %393 : i32 to index
    %c0_106 = arith.constant 0 : index
    %395 = vector.load %arg12[%394, %c0_106] : memref<64x512xf32, #tpu.memory_space<vmem>>, vector<8x512xf32>
    %396 = arith.truncf %391 : vector<8x128xf32> to vector<8x128xbf16>
    %cst_107 = arith.constant dense<0.000000e+00> : vector<8x512xf32>
    %397 = tpu.matmul %396, %286, %cst_107 {dimension_numbers = #tpu.dot_dimension_numbers<[1], [0], [0], [1], [0, 0, 1, 1], [], []>} : vector<8x128xbf16>, vector<128x512xbf16>, vector<8x512xf32> -> vector<8x512xf32>
    %398 = arith.addf %395, %397 : vector<8x512xf32>
    %399 = vector.extract_strided_slice %398 {offsets = [0, 0], sizes = [8, 128], strides = [1, 1]} : vector<8x512xf32> to vector<8x128xf32>
    %400 = arith.negf %399 : vector<8x128xf32>
    %401 = math.exp %400 : vector<8x128xf32>
    %cst_108 = arith.constant 1.000000e+00 : f32
    %402 = vector.broadcast %cst_108 : f32 to vector<8x128xf32>
    %403 = arith.addf %402, %401 : vector<8x128xf32>
    %404 = arith.divf %402, %403 : vector<8x128xf32>
    %405 = vector.extract_strided_slice %398 {offsets = [0, 128], sizes = [8, 128], strides = [1, 1]} : vector<8x512xf32> to vector<8x128xf32>
    %406 = arith.negf %405 : vector<8x128xf32>
    %407 = math.exp %406 : vector<8x128xf32>
    %cst_109 = arith.constant 1.000000e+00 : f32
    %408 = vector.broadcast %cst_109 : f32 to vector<8x128xf32>
    %409 = arith.addf %408, %407 : vector<8x128xf32>
    %410 = arith.divf %408, %409 : vector<8x128xf32>
    %411 = vector.extract_strided_slice %398 {offsets = [0, 256], sizes = [8, 128], strides = [1, 1]} : vector<8x512xf32> to vector<8x128xf32>
    %412 = math.tanh %411 : vector<8x128xf32>
    %413 = vector.extract_strided_slice %398 {offsets = [0, 384], sizes = [8, 128], strides = [1, 1]} : vector<8x512xf32> to vector<8x128xf32>
    %414 = arith.negf %413 : vector<8x128xf32>
    %415 = math.exp %414 : vector<8x128xf32>
    %cst_110 = arith.constant 1.000000e+00 : f32
    %416 = vector.broadcast %cst_110 : f32 to vector<8x128xf32>
    %417 = arith.addf %416, %415 : vector<8x128xf32>
    %418 = arith.divf %416, %417 : vector<8x128xf32>
    %419 = arith.mulf %410, %389 : vector<8x128xf32>
    %420 = arith.mulf %404, %412 : vector<8x128xf32>
    %421 = arith.addf %419, %420 : vector<8x128xf32>
    %422 = math.tanh %421 : vector<8x128xf32>
    %423 = arith.mulf %418, %422 : vector<8x128xf32>
    %c4_i32_111 = arith.constant 4 : i32
    %c8_i32_112 = arith.constant 8 : i32
    %424 = arith.muli %c4_i32_111, %c8_i32_112 : i32
    %425 = tpu.assume_multiple %424, 8 : i32
    %426 = arith.index_cast %425 : i32 to index
    %c0_113 = arith.constant 0 : index
    %427 = vector.load %arg12[%426, %c0_113] : memref<64x512xf32, #tpu.memory_space<vmem>>, vector<8x512xf32>
    %428 = arith.truncf %423 : vector<8x128xf32> to vector<8x128xbf16>
    %cst_114 = arith.constant dense<0.000000e+00> : vector<8x512xf32>
    %429 = tpu.matmul %428, %286, %cst_114 {dimension_numbers = #tpu.dot_dimension_numbers<[1], [0], [0], [1], [0, 0, 1, 1], [], []>} : vector<8x128xbf16>, vector<128x512xbf16>, vector<8x512xf32> -> vector<8x512xf32>
    %430 = arith.addf %427, %429 : vector<8x512xf32>
    %431 = vector.extract_strided_slice %430 {offsets = [0, 0], sizes = [8, 128], strides = [1, 1]} : vector<8x512xf32> to vector<8x128xf32>
    %432 = arith.negf %431 : vector<8x128xf32>
    %433 = math.exp %432 : vector<8x128xf32>
    %cst_115 = arith.constant 1.000000e+00 : f32
    %434 = vector.broadcast %cst_115 : f32 to vector<8x128xf32>
    %435 = arith.addf %434, %433 : vector<8x128xf32>
    %436 = arith.divf %434, %435 : vector<8x128xf32>
    %437 = vector.extract_strided_slice %430 {offsets = [0, 128], sizes = [8, 128], strides = [1, 1]} : vector<8x512xf32> to vector<8x128xf32>
    %438 = arith.negf %437 : vector<8x128xf32>
    %439 = math.exp %438 : vector<8x128xf32>
    %cst_116 = arith.constant 1.000000e+00 : f32
    %440 = vector.broadcast %cst_116 : f32 to vector<8x128xf32>
    %441 = arith.addf %440, %439 : vector<8x128xf32>
    %442 = arith.divf %440, %441 : vector<8x128xf32>
    %443 = vector.extract_strided_slice %430 {offsets = [0, 256], sizes = [8, 128], strides = [1, 1]} : vector<8x512xf32> to vector<8x128xf32>
    %444 = math.tanh %443 : vector<8x128xf32>
    %445 = vector.extract_strided_slice %430 {offsets = [0, 384], sizes = [8, 128], strides = [1, 1]} : vector<8x512xf32> to vector<8x128xf32>
    %446 = arith.negf %445 : vector<8x128xf32>
    %447 = math.exp %446 : vector<8x128xf32>
    %cst_117 = arith.constant 1.000000e+00 : f32
    %448 = vector.broadcast %cst_117 : f32 to vector<8x128xf32>
    %449 = arith.addf %448, %447 : vector<8x128xf32>
    %450 = arith.divf %448, %449 : vector<8x128xf32>
    %451 = arith.mulf %442, %421 : vector<8x128xf32>
    %452 = arith.mulf %436, %444 : vector<8x128xf32>
    %453 = arith.addf %451, %452 : vector<8x128xf32>
    %454 = math.tanh %453 : vector<8x128xf32>
    %455 = arith.mulf %450, %454 : vector<8x128xf32>
    %c5_i32_118 = arith.constant 5 : i32
    %c8_i32_119 = arith.constant 8 : i32
    %456 = arith.muli %c5_i32_118, %c8_i32_119 : i32
    %457 = tpu.assume_multiple %456, 8 : i32
    %458 = arith.index_cast %457 : i32 to index
    %c0_120 = arith.constant 0 : index
    %459 = vector.load %arg12[%458, %c0_120] : memref<64x512xf32, #tpu.memory_space<vmem>>, vector<8x512xf32>
    %460 = arith.truncf %455 : vector<8x128xf32> to vector<8x128xbf16>
    %cst_121 = arith.constant dense<0.000000e+00> : vector<8x512xf32>
    %461 = tpu.matmul %460, %286, %cst_121 {dimension_numbers = #tpu.dot_dimension_numbers<[1], [0], [0], [1], [0, 0, 1, 1], [], []>} : vector<8x128xbf16>, vector<128x512xbf16>, vector<8x512xf32> -> vector<8x512xf32>
    %462 = arith.addf %459, %461 : vector<8x512xf32>
    %463 = vector.extract_strided_slice %462 {offsets = [0, 0], sizes = [8, 128], strides = [1, 1]} : vector<8x512xf32> to vector<8x128xf32>
    %464 = arith.negf %463 : vector<8x128xf32>
    %465 = math.exp %464 : vector<8x128xf32>
    %cst_122 = arith.constant 1.000000e+00 : f32
    %466 = vector.broadcast %cst_122 : f32 to vector<8x128xf32>
    %467 = arith.addf %466, %465 : vector<8x128xf32>
    %468 = arith.divf %466, %467 : vector<8x128xf32>
    %469 = vector.extract_strided_slice %462 {offsets = [0, 128], sizes = [8, 128], strides = [1, 1]} : vector<8x512xf32> to vector<8x128xf32>
    %470 = arith.negf %469 : vector<8x128xf32>
    %471 = math.exp %470 : vector<8x128xf32>
    %cst_123 = arith.constant 1.000000e+00 : f32
    %472 = vector.broadcast %cst_123 : f32 to vector<8x128xf32>
    %473 = arith.addf %472, %471 : vector<8x128xf32>
    %474 = arith.divf %472, %473 : vector<8x128xf32>
    %475 = vector.extract_strided_slice %462 {offsets = [0, 256], sizes = [8, 128], strides = [1, 1]} : vector<8x512xf32> to vector<8x128xf32>
    %476 = math.tanh %475 : vector<8x128xf32>
    %477 = vector.extract_strided_slice %462 {offsets = [0, 384], sizes = [8, 128], strides = [1, 1]} : vector<8x512xf32> to vector<8x128xf32>
    %478 = arith.negf %477 : vector<8x128xf32>
    %479 = math.exp %478 : vector<8x128xf32>
    %cst_124 = arith.constant 1.000000e+00 : f32
    %480 = vector.broadcast %cst_124 : f32 to vector<8x128xf32>
    %481 = arith.addf %480, %479 : vector<8x128xf32>
    %482 = arith.divf %480, %481 : vector<8x128xf32>
    %483 = arith.mulf %474, %453 : vector<8x128xf32>
    %484 = arith.mulf %468, %476 : vector<8x128xf32>
    %485 = arith.addf %483, %484 : vector<8x128xf32>
    %486 = math.tanh %485 : vector<8x128xf32>
    %487 = arith.mulf %482, %486 : vector<8x128xf32>
    %c6_i32_125 = arith.constant 6 : i32
    %c8_i32_126 = arith.constant 8 : i32
    %488 = arith.muli %c6_i32_125, %c8_i32_126 : i32
    %489 = tpu.assume_multiple %488, 8 : i32
    %490 = arith.index_cast %489 : i32 to index
    %c0_127 = arith.constant 0 : index
    %491 = vector.load %arg12[%490, %c0_127] : memref<64x512xf32, #tpu.memory_space<vmem>>, vector<8x512xf32>
    %492 = arith.truncf %487 : vector<8x128xf32> to vector<8x128xbf16>
    %cst_128 = arith.constant dense<0.000000e+00> : vector<8x512xf32>
    %493 = tpu.matmul %492, %286, %cst_128 {dimension_numbers = #tpu.dot_dimension_numbers<[1], [0], [0], [1], [0, 0, 1, 1], [], []>} : vector<8x128xbf16>, vector<128x512xbf16>, vector<8x512xf32> -> vector<8x512xf32>
    %494 = arith.addf %491, %493 : vector<8x512xf32>
    %495 = vector.extract_strided_slice %494 {offsets = [0, 0], sizes = [8, 128], strides = [1, 1]} : vector<8x512xf32> to vector<8x128xf32>
    %496 = arith.negf %495 : vector<8x128xf32>
    %497 = math.exp %496 : vector<8x128xf32>
    %cst_129 = arith.constant 1.000000e+00 : f32
    %498 = vector.broadcast %cst_129 : f32 to vector<8x128xf32>
    %499 = arith.addf %498, %497 : vector<8x128xf32>
    %500 = arith.divf %498, %499 : vector<8x128xf32>
    %501 = vector.extract_strided_slice %494 {offsets = [0, 128], sizes = [8, 128], strides = [1, 1]} : vector<8x512xf32> to vector<8x128xf32>
    %502 = arith.negf %501 : vector<8x128xf32>
    %503 = math.exp %502 : vector<8x128xf32>
    %cst_130 = arith.constant 1.000000e+00 : f32
    %504 = vector.broadcast %cst_130 : f32 to vector<8x128xf32>
    %505 = arith.addf %504, %503 : vector<8x128xf32>
    %506 = arith.divf %504, %505 : vector<8x128xf32>
    %507 = vector.extract_strided_slice %494 {offsets = [0, 256], sizes = [8, 128], strides = [1, 1]} : vector<8x512xf32> to vector<8x128xf32>
    %508 = math.tanh %507 : vector<8x128xf32>
    %509 = vector.extract_strided_slice %494 {offsets = [0, 384], sizes = [8, 128], strides = [1, 1]} : vector<8x512xf32> to vector<8x128xf32>
    %510 = arith.negf %509 : vector<8x128xf32>
    %511 = math.exp %510 : vector<8x128xf32>
    %cst_131 = arith.constant 1.000000e+00 : f32
    %512 = vector.broadcast %cst_131 : f32 to vector<8x128xf32>
    %513 = arith.addf %512, %511 : vector<8x128xf32>
    %514 = arith.divf %512, %513 : vector<8x128xf32>
    %515 = arith.mulf %506, %485 : vector<8x128xf32>
    %516 = arith.mulf %500, %508 : vector<8x128xf32>
    %517 = arith.addf %515, %516 : vector<8x128xf32>
    %518 = math.tanh %517 : vector<8x128xf32>
    %519 = arith.mulf %514, %518 : vector<8x128xf32>
    %c7_i32_132 = arith.constant 7 : i32
    %c8_i32_133 = arith.constant 8 : i32
    %520 = arith.muli %c7_i32_132, %c8_i32_133 : i32
    %521 = tpu.assume_multiple %520, 8 : i32
    %522 = arith.index_cast %521 : i32 to index
    %c0_134 = arith.constant 0 : index
    %523 = vector.load %arg12[%522, %c0_134] : memref<64x512xf32, #tpu.memory_space<vmem>>, vector<8x512xf32>
    %524 = arith.truncf %519 : vector<8x128xf32> to vector<8x128xbf16>
    %cst_135 = arith.constant dense<0.000000e+00> : vector<8x512xf32>
    %525 = tpu.matmul %524, %286, %cst_135 {dimension_numbers = #tpu.dot_dimension_numbers<[1], [0], [0], [1], [0, 0, 1, 1], [], []>} : vector<8x128xbf16>, vector<128x512xbf16>, vector<8x512xf32> -> vector<8x512xf32>
    %526 = arith.addf %523, %525 : vector<8x512xf32>
    %527 = vector.extract_strided_slice %526 {offsets = [0, 0], sizes = [8, 128], strides = [1, 1]} : vector<8x512xf32> to vector<8x128xf32>
    %528 = arith.negf %527 : vector<8x128xf32>
    %529 = math.exp %528 : vector<8x128xf32>
    %cst_136 = arith.constant 1.000000e+00 : f32
    %530 = vector.broadcast %cst_136 : f32 to vector<8x128xf32>
    %531 = arith.addf %530, %529 : vector<8x128xf32>
    %532 = arith.divf %530, %531 : vector<8x128xf32>
    %533 = vector.extract_strided_slice %526 {offsets = [0, 128], sizes = [8, 128], strides = [1, 1]} : vector<8x512xf32> to vector<8x128xf32>
    %534 = arith.negf %533 : vector<8x128xf32>
    %535 = math.exp %534 : vector<8x128xf32>
    %cst_137 = arith.constant 1.000000e+00 : f32
    %536 = vector.broadcast %cst_137 : f32 to vector<8x128xf32>
    %537 = arith.addf %536, %535 : vector<8x128xf32>
    %538 = arith.divf %536, %537 : vector<8x128xf32>
    %539 = vector.extract_strided_slice %526 {offsets = [0, 256], sizes = [8, 128], strides = [1, 1]} : vector<8x512xf32> to vector<8x128xf32>
    %540 = math.tanh %539 : vector<8x128xf32>
    %541 = vector.extract_strided_slice %526 {offsets = [0, 384], sizes = [8, 128], strides = [1, 1]} : vector<8x512xf32> to vector<8x128xf32>
    %542 = arith.negf %541 : vector<8x128xf32>
    %543 = math.exp %542 : vector<8x128xf32>
    %cst_138 = arith.constant 1.000000e+00 : f32
    %544 = vector.broadcast %cst_138 : f32 to vector<8x128xf32>
    %545 = arith.addf %544, %543 : vector<8x128xf32>
    %546 = arith.divf %544, %545 : vector<8x128xf32>
    %547 = arith.mulf %538, %517 : vector<8x128xf32>
    %548 = arith.mulf %532, %540 : vector<8x128xf32>
    %549 = arith.addf %547, %548 : vector<8x128xf32>
    %550 = math.tanh %549 : vector<8x128xf32>
    %551 = arith.mulf %546, %550 : vector<8x128xf32>
    %c8_i32_139 = arith.constant 8 : i32
    %c1 = arith.constant 1 : index
    %c0_140 = arith.constant 0 : index
    %c0_141 = arith.constant 0 : index
    %552 = vector.load %arg10[%c1, %c0_140, %c0_141] : memref<2x8x128xf32, #tpu.memory_space<vmem>>, vector<1x8x128xf32>
    %553 = vector.shape_cast %552 : vector<1x8x128xf32> to vector<8x128xf32>
    %554 = vector.shape_cast %551 : vector<8x128xf32> to vector<1x8x128xf32>
    tpu.vector_store %arg10[%c1, %c0_140, %c0_141], %554 {strides = array<i32>} : memref<2x8x128xf32, #tpu.memory_space<vmem>>, vector<1x8x128xf32>,
    %555 = arith.truncf %551 : vector<8x128xf32> to vector<8x128xbf16>
    %c0_142 = arith.constant 0 : index
    %c0_143 = arith.constant 0 : index
    %556 = vector.load %arg7[%c0_142, %c0_143] : memref<128x128xbf16, #tpu.memory_space<vmem>>, vector<128x128xbf16>
    %cst_144 = arith.constant dense<0.000000e+00> : vector<8x128xf32>
    %557 = tpu.matmul %555, %556, %cst_144 {dimension_numbers = #tpu.dot_dimension_numbers<[1], [0], [0], [1], [0, 0, 1, 1], [], []>} : vector<8x128xbf16>, vector<128x128xbf16>, vector<8x128xf32> -> vector<8x128xf32>
    %c0_145 = arith.constant 0 : index
    %c0_146 = arith.constant 0 : index
    %558 = vector.load %arg8[%c0_145, %c0_146] : memref<1x128xf32, #tpu.memory_space<vmem>>, vector<1x128xf32>
    %559 = vector.broadcast %558 : vector<1x128xf32> to vector<8x128xf32>
    %560 = arith.addf %557, %559 : vector<8x128xf32>
    %561 = arith.negf %560 : vector<8x128xf32>
    %562 = math.exp %561 : vector<8x128xf32>
    %cst_147 = arith.constant 1.000000e+00 : f32
    %563 = vector.broadcast %cst_147 : f32 to vector<8x128xf32>
    %564 = arith.addf %563, %562 : vector<8x128xf32>
    %565 = arith.divf %563, %564 : vector<8x128xf32>
    %c0_148 = arith.constant 0 : index
    %c0_149 = arith.constant 0 : index
    %566 = vector.load %arg9[%c0_148, %c0_149] : memref<8x128xf32, #tpu.memory_space<vmem>>, vector<8x128xf32>
    tpu.vector_store %arg9[%c0_148, %c0_149], %565 {strides = array<i32>} : memref<8x128xf32, #tpu.memory_space<vmem>>, vector<8x128xf32>,
    return
  }
}

</mosaic_0001>

<llo_original>
// kernel: sentiment_lstm_forward.1
$region0: #{sentiment_lstm_forward.1}
  #allocation0 [shape = 'u32[]', space=smem, size = 0x4, offset = 0x4, fixed_abs, tag = 'smem constant byte address 0x4 - core index']
  #allocation1 [shape = 'u32[72,128]{1,0:T(1,128)}', space=vmem, size = 0x9000, scoped, tag = 'internal scratch']
  #allocation2 [shape = 'f32[64,128]{1,0:T(8,128)}', space=vmem, size = 0x8000, scoped, tag = 'scratch operand']
  #allocation3 [shape = 'f32[64,512]{1,0:T(8,128)}', space=vmem, size = 0x20000, scoped, tag = 'scratch operand']
  %s0 = inlined_call_operand.vmem [shape: bf16[64,32], index: 0, kind: input, shape index: {}]
  %s1 = inlined_call_operand.vmem [shape: bf16[32,512], index: 1, kind: input, shape index: {}]
  %s2 = inlined_call_operand.hbm [shape: bf16[128,512], index: 2, kind: input, shape index: {}]
  %s3 = inlined_call_operand.vmem [shape: f32[1,512], index: 3, kind: input, shape index: {}]
  %s4 = inlined_call_operand.hbm [shape: bf16[128,512], index: 4, kind: input, shape index: {}]
  %s5 = inlined_call_operand.hbm [shape: bf16[128,512], index: 5, kind: input, shape index: {}]
  %s6 = inlined_call_operand.vmem [shape: f32[1,512], index: 6, kind: input, shape index: {}]
  %s7 = inlined_call_operand.vmem [shape: bf16[128,128], index: 7, kind: input, shape index: {}]
  %s8 = inlined_call_operand.vmem [shape: f32[1,128], index: 8, kind: input, shape index: {}]
  %s9 = inlined_call_operand.vmem [shape: f32[8,128], index: 9, kind: output, shape index: {0}]
  %s10 = inlined_call_operand.vmem [shape: f32[2,8,128], index: 10, kind: output, shape index: {1}]
  %11 = xla_tuple %s9, %s10
  %s12 = sld [smem:[#allocation0]]
  $region66: #{sentiment_lstm_forward.1} parent=0
    _
  %s14 = ssub.s32 1, %s12
  %s15 = scalar_select 0, %s14, %s12
  $region1: #{sentiment_lstm_forward.1} parent=0
    #allocation4 [shape = 'u8[131072]{0}', space=vmem, size = 0x20000, scoped, tag = 'input window, operand 2, single buffered']
    #allocation5 [shape = 's32[1]{0}', space=sflag, size = 0x4, scoped, tag = 'scoped memory for sentiment_lstm_forward.1']
    #allocation6 [shape = 'u8[131072]{0}', space=vmem, size = 0x20000, scoped, tag = 'input window, operand 4, single buffered']
    #allocation7 [shape = 's32[1]{0}', space=sflag, size = 0x4, scoped, tag = 'scoped memory for sentiment_lstm_forward.1']
    #allocation8 [shape = 'u8[131072]{0}', space=vmem, size = 0x20000, scoped, tag = 'input window, operand 5, single buffered']
    %16 = vsyncpa [#allocation5], 0
    %17 = vsyncpa [#allocation7], 0
    // Predicated region
    $region2: #{sentiment_lstm_forward.1} parent=1 // pred_check
      _
    $region3: #{sentiment_lstm_forward.1} parent=1 // pred_check_branch
      %19 = sbr.rel (0) target = $region5
    $region4: #{sentiment_lstm_forward.1} parent=1 // pred_region
      _
    $region5: #{sentiment_lstm_forward.1} parent=1 // pred_fallthru
      _
    // Predicated region
    $region6: #{sentiment_lstm_forward.1} parent=1 // pred_check
      _
    $region7: #{sentiment_lstm_forward.1} parent=1 // pred_check_branch
      %21 = sbr.rel (0) target = $region9
    $region8: #{sentiment_lstm_forward.1} parent=1 // pred_region
      _
    $region9: #{sentiment_lstm_forward.1} parent=1 // pred_fallthru
      _
    // Predicated region
    $region10: #{sentiment_lstm_forward.1} parent=1 // pred_check
      _
    $region11: #{sentiment_lstm_forward.1} parent=1 // pred_check_branch
      %23 = sbr.rel (0) target = $region13
    $region12: #{sentiment_lstm_forward.1} parent=1 // pred_region
      %25 = vsyncadd [#allocation5], 0
      %s26 = sshll.u32 %s2, 4
      %s27 = int_to_ptr.hbm [resolvable:$true] %s26
      %s28 = sshll.u32 [#allocation4], 4
      %s29 = int_to_ptr.vmem [resolvable:$true] %s28
      %34 = dma.hbm_to_vmem [thread:$0]  %s27, 4096, %s29, [#allocation5], 256, 256, 16
    $region13: #{sentiment_lstm_forward.1} parent=1 // pred_fallthru
      _
    // Predicated region
    $region14: #{sentiment_lstm_forward.1} parent=1 // pred_check
      _
    $region15: #{sentiment_lstm_forward.1} parent=1 // pred_check_branch
      %36 = sbr.rel (0) target = $region17
    $region16: #{sentiment_lstm_forward.1} parent=1 // pred_region
      _
    $region17: #{sentiment_lstm_forward.1} parent=1 // pred_fallthru
      _
    // Predicated region
    $region18: #{sentiment_lstm_forward.1} parent=1 // pred_check
      _
    $region19: #{sentiment_lstm_forward.1} parent=1 // pred_check_branch
      %38 = sbr.rel (0) target = $region21
    $region20: #{sentiment_lstm_forward.1} parent=1 // pred_region
      %40 = vsyncadd [#allocation7], 0
      %s41 = sshll.u32 %s4, 4
      %s42 = int_to_ptr.hbm [resolvable:$true] %s41
      %s43 = sshll.u32 [#allocation6], 4
      %s44 = int_to_ptr.vmem [resolvable:$true] %s43
      %49 = dma.hbm_to_vmem [thread:$0]  %s42, 4096, %s44, [#allocation7], 256, 256, 16
    $region21: #{sentiment_lstm_forward.1} parent=1 // pred_fallthru
      _
    // Predicated region
    $region22: #{sentiment_lstm_forward.1} parent=1 // pred_check
      _
    $region23: #{sentiment_lstm_forward.1} parent=1 // pred_check_branch
      %51 = sbr.rel (0) target = $region25
    $region24: #{sentiment_lstm_forward.1} parent=1 // pred_region
      %53 = vsyncadd [#allocation7], 0
      %s54 = sshll.u32 %s5, 4
      %s55 = int_to_ptr.hbm [resolvable:$true] %s54
      %s56 = sshll.u32 [#allocation8], 4
      %s57 = int_to_ptr.vmem [resolvable:$true] %s56
      %62 = dma.hbm_to_vmem [thread:$0]  %s55, 4096, %s57, [#allocation7], 256, 256, 16
    $region25: #{sentiment_lstm_forward.1} parent=1 // pred_fallthru
      _
    // Predicated region
    $region26: #{sentiment_lstm_forward.1} parent=1 // pred_check
      _
    $region27: #{sentiment_lstm_forward.1} parent=1 // pred_check_branch
      %64 = sbr.rel (0) target = $region29
    $region28: #{sentiment_lstm_forward.1} parent=1 // pred_region
      _
    $region29: #{sentiment_lstm_forward.1} parent=1 // pred_fallthru
      _
    // Predicated region
    $region30: #{sentiment_lstm_forward.1} parent=1 // pred_check
      _
    $region31: #{sentiment_lstm_forward.1} parent=1 // pred_check_branch
      %66 = sbr.rel (0) target = $region33
    $region32: #{sentiment_lstm_forward.1} parent=1 // pred_region
      _
    $region33: #{sentiment_lstm_forward.1} parent=1 // pred_fallthru
      _
    // Predicated region
    $region34: #{sentiment_lstm_forward.1} parent=1 // pred_check
      _
    $region35: #{sentiment_lstm_forward.1} parent=1 // pred_check_branch
      %68 = sbr.rel (0) target = $region37
    $region36: #{sentiment_lstm_forward.1} parent=1 // pred_region
      _
    $region37: #{sentiment_lstm_forward.1} parent=1 // pred_fallthru
      _
    // Predicated region
    $region38: #{sentiment_lstm_forward.1} parent=1 // pred_check
      _
    $region39: #{sentiment_lstm_forward.1} parent=1 // pred_check_branch
      %70 = sbr.rel (0) target = $region41
    $region40: #{sentiment_lstm_forward.1} parent=1 // pred_region
      %72 = dma.done [#allocation5], 4096
    $region41: #{sentiment_lstm_forward.1} parent=1 // pred_fallthru
      _
    // Predicated region
    $region42: #{sentiment_lstm_forward.1} parent=1 // pred_check
      _
    $region43: #{sentiment_lstm_forward.1} parent=1 // pred_check_branch
      %74 = sbr.rel (0) target = $region45
    $region44: #{sentiment_lstm_forward.1} parent=1 // pred_region
      %76 = dma.done [#allocation7], 4096
    $region45: #{sentiment_lstm_forward.1} parent=1 // pred_fallthru
      _
    // Predicated region
    $region46: #{sentiment_lstm_forward.1} parent=1 // pred_check
      _
    $region47: #{sentiment_lstm_forward.1} parent=1 // pred_check_branch
      %78 = sbr.rel (0) target = $region49
    $region48: #{sentiment_lstm_forward.1} parent=1 // pred_region
      %80 = dma.done [#allocation7], 4096
    $region49: #{sentiment_lstm_forward.1} parent=1 // pred_fallthru
      _
    %v82 = vld [vmem:[%s1] sm:$0xff]
    %v83 = vld [vmem:[%s1 + $0x8] sm:$0xff]
    %v84 = vld [vmem:[%s1 + $0x10] sm:$0xff]
    %v85 = vld [vmem:[%s1 + $0x18] sm:$0xff]
    %v86 = vld [vmem:[%s1 + $0x20] sm:$0xff]
    %v87 = vld [vmem:[%s1 + $0x28] sm:$0xff]
    %v88 = vld [vmem:[%s1 + $0x30] sm:$0xff]
    %v89 = vld [vmem:[%s1 + $0x38] sm:$0xff]
    %v90 = vld [vmem:[#allocation4] sm:$0xff]
    %v91 = vld [vmem:[#allocation4 + $0x8] sm:$0xff]
    %v92 = vld [vmem:[#allocation4 + $0x10] sm:$0xff]
    %v93 = vld [vmem:[#allocation4 + $0x18] sm:$0xff]
    %v94 = vld [vmem:[#allocation4 + $0x20] sm:$0xff]
    %v95 = vld [vmem:[#allocation4 + $0x28] sm:$0xff]
    %v96 = vld [vmem:[#allocation4 + $0x30] sm:$0xff]
    %v97 = vld [vmem:[#allocation4 + $0x38] sm:$0xff]
    %v98 = vld [vmem:[#allocation4 + $0x40] sm:$0xff]
    %v99 = vld [vmem:[#allocation4 + $0x48] sm:$0xff]
    %v100 = vld [vmem:[#allocation4 + $0x50] sm:$0xff]
    %v101 = vld [vmem:[#allocation4 + $0x58] sm:$0xff]
    %v102 = vld [vmem:[#allocation4 + $0x60] sm:$0xff]
    %v103 = vld [vmem:[#allocation4 + $0x68] sm:$0xff]
    %v104 = vld [vmem:[#allocation4 + $0x70] sm:$0xff]
    %v105 = vld [vmem:[#allocation4 + $0x78] sm:$0xff]
    %v106 = vld [vmem:[#allocation4 + $0x80] sm:$0xff]
    %v107 = vld [vmem:[#allocation4 + $0x88] sm:$0xff]
    %v108 = vld [vmem:[#allocation4 + $0x90] sm:$0xff]
    %v109 = vld [vmem:[#allocation4 + $0x98] sm:$0xff]
    %v110 = vld [vmem:[#allocation4 + $0xa0] sm:$0xff]
    %v111 = vld [vmem:[#allocation4 + $0xa8] sm:$0xff]
    %v112 = vld [vmem:[#allocation4 + $0xb0] sm:$0xff]
    %v113 = vld [vmem:[#allocation4 + $0xb8] sm:$0xff]
    %v114 = vld [vmem:[#allocation4 + $0xc0] sm:$0xff]
    %v115 = vld [vmem:[#allocation4 + $0xc8] sm:$0xff]
    %v116 = vld [vmem:[#allocation4 + $0xd0] sm:$0xff]
    %v117 = vld [vmem:[#allocation4 + $0xd8] sm:$0xff]
    %v118 = vld [vmem:[#allocation4 + $0xe0] sm:$0xff]
    %v119 = vld [vmem:[#allocation4 + $0xe8] sm:$0xff]
    %v120 = vld [vmem:[#allocation4 + $0xf0] sm:$0xff]
    %v121 = vld [vmem:[#allocation4 + $0xf8] sm:$0xff]
    %v122 = vld [vmem:[%s3] sm:$0xf]
    %v123 = vld [vmem:[%s0] sm:$0xf]
    %v124 = vld [vmem:[%s0 + $0x4] sm:$0xf]
    %v125 = vld [vmem:[%s0 + $0x8] sm:$0xf]
    %v126 = vld [vmem:[%s0 + $0xc] sm:$0xf]
    %v127 = vld [vmem:[%s0 + $0x10] sm:$0xf]
    %v128 = vld [vmem:[%s0 + $0x14] sm:$0xf]
    %v129 = vld [vmem:[%s0 + $0x18] sm:$0xf]
    %v130 = vld [vmem:[%s0 + $0x1c] sm:$0xf]
    %v132 = vperm.slane %v122, 0
    %v133 = vperm.slane %v122, 1
    %v134 = vperm.slane %v122, 2
    %v135 = vperm.slane %v122, 3
    %v148 = vunpack.c.l.b16 %v123
    %v149 = vunpack.c.l.b16 %v124
    %v150 = vunpack.c.l.b16 %v125
    %v151 = vunpack.c.l.b16 %v126
    %v152 = vunpack.c.l.b16 %v127
    %v153 = vunpack.c.l.b16 %v128
    %v154 = vunpack.c.l.b16 %v129
    %v155 = vunpack.c.l.b16 %v130
    %v156 = vpack.c.b16 %v149, %v148
    %v157 = vpack.c.b16 %v151, %v150
    %v158 = vpack.c.b16 %v153, %v152
    %v159 = vpack.c.b16 %v155, %v154
    %v168 = vunpack.c.l.b16 %v82
    %v169 = vunpack.c.h.b16 %v82
    %v170 = vunpack.c.l.b16 %v83
    %v171 = vunpack.c.h.b16 %v83
    %v172 = vunpack.c.l.b16 %v84
    %v173 = vunpack.c.h.b16 %v84
    %v174 = vunpack.c.l.b16 %v85
    %v175 = vunpack.c.h.b16 %v85
    %v176 = vunpack.c.l.b16 %v86
    %v177 = vunpack.c.h.b16 %v86
    %v178 = vunpack.c.l.b16 %v87
    %v179 = vunpack.c.h.b16 %v87
    %v180 = vunpack.c.l.b16 %v88
    %v181 = vunpack.c.h.b16 %v88
    %v182 = vunpack.c.l.b16 %v89
    %v183 = vunpack.c.h.b16 %v89
    %v184 = vpack.c.b16 %v172, %v168
    %v185 = vpack.c.b16 %v173, %v169
    %v186 = vpack.c.b16 %v174, %v170
    %v187 = vpack.c.b16 %v175, %v171
    %v188 = vpack.c.b16 %v180, %v176
    %v189 = vpack.c.b16 %v181, %v177
    %v190 = vpack.c.b16 %v182, %v178
    %v191 = vpack.c.b16 %v183, %v179
    %vm200 = vcmask 261120
    %v202 = vsel %vm200, %v156, 0
    %v205 = vsel %vm200, %v157, 0
    %v208 = vsel %vm200, %v158, 0
    %v211 = vsel %vm200, %v159, 0
    %213 = vmatpush.bf16.msra.mxu0 0
    %214 = vmatpush.bf16.msra.mxu0 0
    %215 = vmatpush.bf16.msra.mxu0 0
    %216 = vmatpush.bf16.msra.mxu0 0
    %217 = vmatpush.bf16.msra.mxu0 0
    %218 = vmatpush.bf16.msra.mxu0 0
    %219 = vmatpush.bf16.msra.mxu0 %v188
    %220 = vmatpush.bf16.msra.mxu0 %v184
    %221 = vmatmul.bf16.gmra.mxu0 %v202
    %v222 = vpop.f32.mrf.mxu0
    %v223 = vadd.f32 %v132, %v222
    %v224 = vpop.f32.mrf.mxu0
    %v225 = vadd.f32 %v132, %v224
    %226 = vmatmul.bf16.gmra.mxu0 %v205
    %v227 = vpop.f32.mrf.mxu0
    %v228 = vadd.f32 %v132, %v227
    %v229 = vpop.f32.mrf.mxu0
    %v230 = vadd.f32 %v132, %v229
    %231 = vmatmul.bf16.gmra.mxu0 %v208
    %v232 = vpop.f32.mrf.mxu0
    %v233 = vadd.f32 %v132, %v232
    %v234 = vpop.f32.mrf.mxu0
    %v235 = vadd.f32 %v132, %v234
    %236 = vmatmul.bf16.gmra.mxu0 %v211
    %v237 = vpop.f32.mrf.mxu0
    %v238 = vadd.f32 %v132, %v237
    %v239 = vpop.f32.mrf.mxu0
    %v240 = vadd.f32 %v132, %v239
    %241 = vdwg.mxu0
    %242 = vmatpush.bf16.msra.mxu0 0
    %243 = vmatpush.bf16.msra.mxu0 0
    %244 = vmatpush.bf16.msra.mxu0 0
    %245 = vmatpush.bf16.msra.mxu0 0
    %246 = vmatpush.bf16.msra.mxu0 0
    %247 = vmatpush.bf16.msra.mxu0 0
    %248 = vmatpush.bf16.msra.mxu0 %v189
    %249 = vmatpush.bf16.msra.mxu0 %v185
    %250 = vmatmul.bf16.gmra.mxu0 %v202
    %v251 = vpop.f32.mrf.mxu0
    %v252 = vadd.f32 %v133, %v251
    %v253 = vpop.f32.mrf.mxu0
    %v254 = vadd.f32 %v133, %v253
    %255 = vmatmul.bf16.gmra.mxu0 %v205
    %v256 = vpop.f32.mrf.mxu0
    %v257 = vadd.f32 %v133, %v256
    %v258 = vpop.f32.mrf.mxu0
    %v259 = vadd.f32 %v133, %v258
    %260 = vmatmul.bf16.gmra.mxu0 %v208
    %v261 = vpop.f32.mrf.mxu0
    %v262 = vadd.f32 %v133, %v261
    %v263 = vpop.f32.mrf.mxu0
    %v264 = vadd.f32 %v133, %v263
    %265 = vmatmul.bf16.gmra.mxu0 %v211
    %v266 = vpop.f32.mrf.mxu0
    %v267 = vadd.f32 %v133, %v266
    %v268 = vpop.f32.mrf.mxu0
    %v269 = vadd.f32 %v133, %v268
    %270 = vdwg.mxu0
    %271 = vmatpush.bf16.msra.mxu0 0
    %272 = vmatpush.bf16.msra.mxu0 0
    %273 = vmatpush.bf16.msra.mxu0 0
    %274 = vmatpush.bf16.msra.mxu0 0
    %275 = vmatpush.bf16.msra.mxu0 0
    %276 = vmatpush.bf16.msra.mxu0 0
    %277 = vmatpush.bf16.msra.mxu0 %v190
    %278 = vmatpush.bf16.msra.mxu0 %v186
    %279 = vmatmul.bf16.gmra.mxu0 %v202
    %v280 = vpop.f32.mrf.mxu0
    %v281 = vadd.f32 %v134, %v280
    %v282 = vpop.f32.mrf.mxu0
    %v283 = vadd.f32 %v134, %v282
    %284 = vmatmul.bf16.gmra.mxu0 %v205
    %v285 = vpop.f32.mrf.mxu0
    %v286 = vadd.f32 %v134, %v285
    %v287 = vpop.f32.mrf.mxu0
    %v288 = vadd.f32 %v134, %v287
    %289 = vmatmul.bf16.gmra.mxu0 %v208
    %v290 = vpop.f32.mrf.mxu0
    %v291 = vadd.f32 %v134, %v290
    %v292 = vpop.f32.mrf.mxu0
    %v293 = vadd.f32 %v134, %v292
    %294 = vmatmul.bf16.gmra.mxu0 %v211
    %v295 = vpop.f32.mrf.mxu0
    %v296 = vadd.f32 %v134, %v295
    %v297 = vpop.f32.mrf.mxu0
    %v298 = vadd.f32 %v134, %v297
    %299 = vdwg.mxu0
    %300 = vmatpush.bf16.msra.mxu0 0
    %301 = vmatpush.bf16.msra.mxu0 0
    %302 = vmatpush.bf16.msra.mxu0 0
    %303 = vmatpush.bf16.msra.mxu0 0
    %304 = vmatpush.bf16.msra.mxu0 0
    %305 = vmatpush.bf16.msra.mxu0 0
    %306 = vmatpush.bf16.msra.mxu0 %v191
    %307 = vmatpush.bf16.msra.mxu0 %v187
    %308 = vmatmul.bf16.gmra.mxu0 %v202
    %v309 = vpop.f32.mrf.mxu0
    %v310 = vadd.f32 %v135, %v309
    %v311 = vpop.f32.mrf.mxu0
    %v312 = vadd.f32 %v135, %v311
    %313 = vmatmul.bf16.gmra.mxu0 %v205
    %v314 = vpop.f32.mrf.mxu0
    %v315 = vadd.f32 %v135, %v314
    %v316 = vpop.f32.mrf.mxu0
    %v317 = vadd.f32 %v135, %v316
    %318 = vmatmul.bf16.gmra.mxu0 %v208
    %v319 = vpop.f32.mrf.mxu0
    %v320 = vadd.f32 %v135, %v319
    %v321 = vpop.f32.mrf.mxu0
    %v322 = vadd.f32 %v135, %v321
    %323 = vmatmul.bf16.gmra.mxu0 %v211
    %v324 = vpop.f32.mrf.mxu0
    %v325 = vadd.f32 %v135, %v324
    %v326 = vpop.f32.mrf.mxu0
    %v327 = vadd.f32 %v135, %v326
    %328 = vdwg.mxu0
    %329 = vst [vmem:[#allocation3] sm:$0xff] %v223
    %330 = vst [vmem:[#allocation3 + $0x8] sm:$0xff] %v252
    %331 = vst [vmem:[#allocation3 + $0x10] sm:$0xff] %v281
    %332 = vst [vmem:[#allocation3 + $0x18] sm:$0xff] %v310
    %333 = vst [vmem:[#allocation3 + $0x20] sm:$0xff] %v225
    %334 = vst [vmem:[#allocation3 + $0x28] sm:$0xff] %v254
    %335 = vst [vmem:[#allocation3 + $0x30] sm:$0xff] %v283
    %336 = vst [vmem:[#allocation3 + $0x38] sm:$0xff] %v312
    %337 = vst [vmem:[#allocation3 + $0x40] sm:$0xff] %v228
    %338 = vst [vmem:[#allocation3 + $0x48] sm:$0xff] %v257
    %339 = vst [vmem:[#allocation3 + $0x50] sm:$0xff] %v286
    %340 = vst [vmem:[#allocation3 + $0x58] sm:$0xff] %v315
    %341 = vst [vmem:[#allocation3 + $0x60] sm:$0xff] %v230
    %342 = vst [vmem:[#allocation3 + $0x68] sm:$0xff] %v259
    %343 = vst [vmem:[#allocation3 + $0x70] sm:$0xff] %v288
    %344 = vst [vmem:[#allocation3 + $0x78] sm:$0xff] %v317
    %345 = vst [vmem:[#allocation3 + $0x80] sm:$0xff] %v233
    %346 = vst [vmem:[#allocation3 + $0x88] sm:$0xff] %v262
    %347 = vst [vmem:[#allocation3 + $0x90] sm:$0xff] %v291
    %348 = vst [vmem:[#allocation3 + $0x98] sm:$0xff] %v320
    %349 = vst [vmem:[#allocation3 + $0xa0] sm:$0xff] %v235
    %350 = vst [vmem:[#allocation3 + $0xa8] sm:$0xff] %v264
    %351 = vst [vmem:[#allocation3 + $0xb0] sm:$0xff] %v293
    %352 = vst [vmem:[#allocation3 + $0xb8] sm:$0xff] %v322
    %353 = vst [vmem:[#allocation3 + $0xc0] sm:$0xff] %v238
    %354 = vst [vmem:[#allocation3 + $0xc8] sm:$0xff] %v267
    %355 = vst [vmem:[#allocation3 + $0xd0] sm:$0xff] %v296
    %356 = vst [vmem:[#allocation3 + $0xd8] sm:$0xff] %v325
    %357 = vst [vmem:[#allocation3 + $0xe0] sm:$0xff] %v240
    %358 = vst [vmem:[#allocation3 + $0xe8] sm:$0xff] %v269
    %359 = vst [vmem:[#allocation3 + $0xf0] sm:$0xff] %v298
    %360 = vst [vmem:[#allocation3 + $0xf8] sm:$0xff] %v327
    %s361 = smul.u32 0, 4
    %s362 = smul.addr %s361, 8
    %s363 = scalar_lea.vmem [#allocation3], %s362
    %v364 = vld [vmem:[%s363] sm:$0xff]
    %v365 = vld [vmem:[%s363 + $0x8] sm:$0xff]
    %v366 = vld [vmem:[%s363 + $0x10] sm:$0xff]
    %v367 = vld [vmem:[%s363 + $0x18] sm:$0xff]
    %v400 = vunpack.c.l.b16 %v90
    %v401 = vunpack.c.h.b16 %v90
    %v402 = vunpack.c.l.b16 %v91
    %v403 = vunpack.c.h.b16 %v91
    %v404 = vunpack.c.l.b16 %v92
    %v405 = vunpack.c.h.b16 %v92
    %v406 = vunpack.c.l.b16 %v93
    %v407 = vunpack.c.h.b16 %v93
    %v408 = vunpack.c.l.b16 %v94
    %v409 = vunpack.c.h.b16 %v94
    %v410 = vunpack.c.l.b16 %v95
    %v411 = vunpack.c.h.b16 %v95
    %v412 = vunpack.c.l.b16 %v96
    %v413 = vunpack.c.h.b16 %v96
    %v414 = vunpack.c.l.b16 %v97
    %v415 = vunpack.c.h.b16 %v97
    %v416 = vunpack.c.l.b16 %v98
    %v417 = vunpack.c.h.b16 %v98
    %v418 = vunpack.c.l.b16 %v99
    %v419 = vunpack.c.h.b16 %v99
    %v420 = vunpack.c.l.b16 %v100
    %v421 = vunpack.c.h.b16 %v100
    %v422 = vunpack.c.l.b16 %v101
    %v423 = vunpack.c.h.b16 %v101
    %v424 = vunpack.c.l.b16 %v102
    %v425 = vunpack.c.h.b16 %v102
    %v426 = vunpack.c.l.b16 %v103
    %v427 = vunpack.c.h.b16 %v103
    %v428 = vunpack.c.l.b16 %v104
    %v429 = vunpack.c.h.b16 %v104
    %v430 = vunpack.c.l.b16 %v105
    %v431 = vunpack.c.h.b16 %v105
    %v432 = vunpack.c.l.b16 %v106
    %v433 = vunpack.c.h.b16 %v106
    %v434 = vunpack.c.l.b16 %v107
    %v435 = vunpack.c.h.b16 %v107
    %v436 = vunpack.c.l.b16 %v108
    %v437 = vunpack.c.h.b16 %v108
    %v438 = vunpack.c.l.b16 %v109
    %v439 = vunpack.c.h.b16 %v109
    %v440 = vunpack.c.l.b16 %v110
    %v441 = vunpack.c.h.b16 %v110
    %v442 = vunpack.c.l.b16 %v111
    %v443 = vunpack.c.h.b16 %v111
    %v444 = vunpack.c.l.b16 %v112
    %v445 = vunpack.c.h.b16 %v112
    %v446 = vunpack.c.l.b16 %v113
    %v447 = vunpack.c.h.b16 %v113
    %v448 = vunpack.c.l.b16 %v114
    %v449 = vunpack.c.h.b16 %v114
    %v450 = vunpack.c.l.b16 %v115
    %v451 = vunpack.c.h.b16 %v115
    %v452 = vunpack.c.l.b16 %v116
    %v453 = vunpack.c.h.b16 %v116
    %v454 = vunpack.c.l.b16 %v117
    %v455 = vunpack.c.h.b16 %v117
    %v456 = vunpack.c.l.b16 %v118
    %v457 = vunpack.c.h.b16 %v118
    %v458 = vunpack.c.l.b16 %v119
    %v459 = vunpack.c.h.b16 %v119
    %v460 = vunpack.c.l.b16 %v120
    %v461 = vunpack.c.h.b16 %v120
    %v462 = vunpack.c.l.b16 %v121
    %v463 = vunpack.c.h.b16 %v121
    %v464 = vpack.c.b16 %v404, %v400
    %v465 = vpack.c.b16 %v405, %v401
    %v466 = vpack.c.b16 %v406, %v402
    %v467 = vpack.c.b16 %v407, %v403
    %v468 = vpack.c.b16 %v412, %v408
    %v469 = vpack.c.b16 %v413, %v409
    %v470 = vpack.c.b16 %v414, %v410
    %v471 = vpack.c.b16 %v415, %v411
    %v472 = vpack.c.b16 %v420, %v416
    %v473 = vpack.c.b16 %v421, %v417
    %v474 = vpack.c.b16 %v422, %v418
    %v475 = vpack.c.b16 %v423, %v419
    %v476 = vpack.c.b16 %v428, %v424
    %v477 = vpack.c.b16 %v429, %v425
    %v478 = vpack.c.b16 %v430, %v426
    %v479 = vpack.c.b16 %v431, %v427
    %v480 = vpack.c.b16 %v436, %v432
    %v481 = vpack.c.b16 %v437, %v433
    %v482 = vpack.c.b16 %v438, %v434
    %v483 = vpack.c.b16 %v439, %v435
    %v484 = vpack.c.b16 %v444, %v440
    %v485 = vpack.c.b16 %v445, %v441
    %v486 = vpack.c.b16 %v446, %v442
    %v487 = vpack.c.b16 %v447, %v443
    %v488 = vpack.c.b16 %v452, %v448
    %v489 = vpack.c.b16 %v453, %v449
    %v490 = vpack.c.b16 %v454, %v450
    %v491 = vpack.c.b16 %v455, %v451
    %v492 = vpack.c.b16 %v460, %v456
    %v493 = vpack.c.b16 %v461, %v457
    %v494 = vpack.c.b16 %v462, %v458
    %v495 = vpack.c.b16 %v463, %v459
    %528 = vmatpush.bf16.msra.mxu0 %v492
    %529 = vmatpush.bf16.msra.mxu0 %v488
    %530 = vmatpush.bf16.msra.mxu0 %v484
    %531 = vmatpush.bf16.msra.mxu0 %v480
    %532 = vmatpush.bf16.msra.mxu0 %v476
    %533 = vmatpush.bf16.msra.mxu0 %v472
    %534 = vmatpush.bf16.msra.mxu0 %v468
    %535 = vmatpush.bf16.msra.mxu0 %v464
    %536 = vmatmul.bf16.gmra.mxu0 0
    %v537 = vpop.f32.mrf.mxu0
    %v538 = vadd.f32 0.0, %v537
    %v539 = vpop.f32.mrf.mxu0
    %540 = vdwg.mxu0
    %541 = vmatpush.bf16.msra.mxu0 %v493
    %542 = vmatpush.bf16.msra.mxu0 %v489
    %543 = vmatpush.bf16.msra.mxu0 %v485
    %544 = vmatpush.bf16.msra.mxu0 %v481
    %545 = vmatpush.bf16.msra.mxu0 %v477
    %546 = vmatpush.bf16.msra.mxu0 %v473
    %547 = vmatpush.bf16.msra.mxu0 %v469
    %548 = vmatpush.bf16.msra.mxu0 %v465
    %549 = vmatmul.bf16.gmra.mxu0 0
    %v550 = vpop.f32.mrf.mxu0
    %v551 = vadd.f32 0.0, %v550
    %v552 = vpop.f32.mrf.mxu0
    %553 = vdwg.mxu0
    %554 = vmatpush.bf16.msra.mxu0 %v494
    %555 = vmatpush.bf16.msra.mxu0 %v490
    %556 = vmatpush.bf16.msra.mxu0 %v486
    %557 = vmatpush.bf16.msra.mxu0 %v482
    %558 = vmatpush.bf16.msra.mxu0 %v478
    %559 = vmatpush.bf16.msra.mxu0 %v474
    %560 = vmatpush.bf16.msra.mxu0 %v470
    %561 = vmatpush.bf16.msra.mxu0 %v466
    %562 = vmatmul.bf16.gmra.mxu0 0
    %v563 = vpop.f32.mrf.mxu0
    %v564 = vadd.f32 0.0, %v563
    %v565 = vpop.f32.mrf.mxu0
    %566 = vdwg.mxu0
    %567 = vmatpush.bf16.msra.mxu0 %v495
    %568 = vmatpush.bf16.msra.mxu0 %v491
    %569 = vmatpush.bf16.msra.mxu0 %v487
    %570 = vmatpush.bf16.msra.mxu0 %v483
    %571 = vmatpush.bf16.msra.mxu0 %v479
    %572 = vmatpush.bf16.msra.mxu0 %v475
    %573 = vmatpush.bf16.msra.mxu0 %v471
    %574 = vmatpush.bf16.msra.mxu0 %v467
    %575 = vmatmul.bf16.gmra.mxu0 0
    %v576 = vpop.f32.mrf.mxu0
    %v577 = vadd.f32 0.0, %v576
    %v578 = vpop.f32.mrf.mxu0
    %579 = vdwg.mxu0
    %v580 = vadd.f32 %v364, %v538
    %v581 = vadd.f32 %v365, %v551
    %v582 = vadd.f32 %v366, %v564
    %v583 = vadd.f32 %v367, %v577
    %v584 = vxor.u32 %v580, 2147483648
    %v585 = vmul.f32 %v584, 1.442695
    %v586 = vpow.pop %v585
    %v587 = vadd.f32 %v586, 1.0
    %v588 = vrcp.pop %v587
    %v589 = vmul.f32 %v587, %v588
    %v590 = vsub.f32 1.0, %v589
    %v591 = vmul.f32 %v588, %v590
    %v592 = vadd.f32 %v588, %v591
    %vm593 = vweird.f32 %v587
    %vm594 = vweird.f32 %v588
    %vm595 = vmor %vm593, %vm594
    %v596 = vsel %vm595, %v588, %v592
    %v597 = vand.u32 2147483647, %v587
    %vm598 = vcmp.eq.f32.partialorder %v597, 8.507059e+37
    %v599 = vand.u32 %v587, 2147483648
    %v600 = vor.u32 1.1754944e-38, %v599
    %v601 = vsel %vm598, %v600, %v596
    %v602 = vmul.f32 1.0, %v601
    %v603 = vxor.u32 %v581, 2147483648
    %v604 = vmul.f32 %v603, 1.442695
    %v605 = vpow.pop %v604
    %v606 = vadd.f32 %v605, 1.0
    %v607 = vrcp.pop %v606
    %v608 = vmul.f32 %v606, %v607
    %v609 = vsub.f32 1.0, %v608
    %v610 = vmul.f32 %v607, %v609
    %v611 = vadd.f32 %v607, %v610
    %vm612 = vweird.f32 %v606
    %vm613 = vweird.f32 %v607
    %vm614 = vmor %vm612, %vm613
    %v615 = vsel %vm614, %v607, %v611
    %v616 = vand.u32 2147483647, %v606
    %vm617 = vcmp.eq.f32.partialorder %v616, 8.507059e+37
    %v618 = vand.u32 %v606, 2147483648
    %v619 = vor.u32 1.1754944e-38, %v618
    %v620 = vsel %vm617, %v619, %v615
    %v621 = vmul.f32 1.0, %v620
    %v622 = vtanh.pop %v582
    %v623 = vxor.u32 %v583, 2147483648
    %v624 = vmul.f32 %v623, 1.442695
    %v625 = vpow.pop %v624
    %v626 = vadd.f32 %v625, 1.0
    %v627 = vrcp.pop %v626
    %v628 = vmul.f32 %v626, %v627
    %v629 = vsub.f32 1.0, %v628
    %v630 = vmul.f32 %v627, %v629
    %v631 = vadd.f32 %v627, %v630
    %vm632 = vweird.f32 %v626
    %vm633 = vweird.f32 %v627
    %vm634 = vmor %vm632, %vm633
    %v635 = vsel %vm634, %v627, %v631
    %v636 = vand.u32 2147483647, %v626
    %vm637 = vcmp.eq.f32.partialorder %v636, 8.507059e+37
    %v638 = vand.u32 %v626, 2147483648
    %v639 = vor.u32 1.1754944e-38, %v638
    %v640 = vsel %vm637, %v639, %v635
    %v641 = vmul.f32 1.0, %v640
    %v642 = vmul.f32 %v621, 0.0
    %v643 = vmul.f32 %v602, %v622
    %v644 = vadd.f32 %v642, %v643
    %v645 = vtanh.pop %v644
    %v646 = vmul.f32 %v641, %v645
    %647 = vst [vmem:[#allocation2] sm:$0xff] %v646
    %s648 = smul.u32 1, 4
    %s649 = smul.addr %s648, 8
    %s650 = scalar_lea.vmem [#allocation3], %s649
    %v651 = vld [vmem:[%s650] sm:$0xff]
    %v652 = vld [vmem:[%s650 + $0x8] sm:$0xff]
    %v653 = vld [vmem:[%s650 + $0x10] sm:$0xff]
    %v654 = vld [vmem:[%s650 + $0x18] sm:$0xff]
    %v655 = vpack.c.bf16 %v646, %v646
    %656 = vmatpush.bf16.msra.mxu0 %v492
    %657 = vmatpush.bf16.msra.mxu0 %v488
    %658 = vmatpush.bf16.msra.mxu0 %v484
    %659 = vmatpush.bf16.msra.mxu0 %v480
    %660 = vmatpush.bf16.msra.mxu0 %v476
    %661 = vmatpush.bf16.msra.mxu0 %v472
    %662 = vmatpush.bf16.msra.mxu0 %v468
    %663 = vmatpush.bf16.msra.mxu0 %v464
    %664 = vmatmul.bf16.gmra.mxu0 %v655
    %v665 = vpop.f32.mrf.mxu0
    %v666 = vadd.f32 0.0, %v665
    %v667 = vpop.f32.mrf.mxu0
    %668 = vdwg.mxu0
    %669 = vmatpush.bf16.msra.mxu0 %v493
    %670 = vmatpush.bf16.msra.mxu0 %v489
    %671 = vmatpush.bf16.msra.mxu0 %v485
    %672 = vmatpush.bf16.msra.mxu0 %v481
    %673 = vmatpush.bf16.msra.mxu0 %v477
    %674 = vmatpush.bf16.msra.mxu0 %v473
    %675 = vmatpush.bf16.msra.mxu0 %v469
    %676 = vmatpush.bf16.msra.mxu0 %v465
    %677 = vmatmul.bf16.gmra.mxu0 %v655
    %v678 = vpop.f32.mrf.mxu0
    %v679 = vadd.f32 0.0, %v678
    %v680 = vpop.f32.mrf.mxu0
    %681 = vdwg.mxu0
    %682 = vmatpush.bf16.msra.mxu0 %v494
    %683 = vmatpush.bf16.msra.mxu0 %v490
    %684 = vmatpush.bf16.msra.mxu0 %v486
    %685 = vmatpush.bf16.msra.mxu0 %v482
    %686 = vmatpush.bf16.msra.mxu0 %v478
    %687 = vmatpush.bf16.msra.mxu0 %v474
    %688 = vmatpush.bf16.msra.mxu0 %v470
    %689 = vmatpush.bf16.msra.mxu0 %v466
    %690 = vmatmul.bf16.gmra.mxu0 %v655
    %v691 = vpop.f32.mrf.mxu0
    %v692 = vadd.f32 0.0, %v691
    %v693 = vpop.f32.mrf.mxu0
    %694 = vdwg.mxu0
    %695 = vmatpush.bf16.msra.mxu0 %v495
    %696 = vmatpush.bf16.msra.mxu0 %v491
    %697 = vmatpush.bf16.msra.mxu0 %v487
    %698 = vmatpush.bf16.msra.mxu0 %v483
    %699 = vmatpush.bf16.msra.mxu0 %v479
    %700 = vmatpush.bf16.msra.mxu0 %v475
    %701 = vmatpush.bf16.msra.mxu0 %v471
    %702 = vmatpush.bf16.msra.mxu0 %v467
    %703 = vmatmul.bf16.gmra.mxu0 %v655
    %v704 = vpop.f32.mrf.mxu0
    %v705 = vadd.f32 0.0, %v704
    %v706 = vpop.f32.mrf.mxu0
    %707 = vdwg.mxu0
    %v708 = vadd.f32 %v651, %v666
    %v709 = vadd.f32 %v652, %v679
    %v710 = vadd.f32 %v653, %v692
    %v711 = vadd.f32 %v654, %v705
    %v712 = vxor.u32 %v708, 2147483648
    %v713 = vmul.f32 %v712, 1.442695
    %v714 = vpow.pop %v713
    %v715 = vadd.f32 %v714, 1.0
    %v716 = vrcp.pop %v715
    %v717 = vmul.f32 %v715, %v716
    %v718 = vsub.f32 1.0, %v717
    %v719 = vmul.f32 %v716, %v718
    %v720 = vadd.f32 %v716, %v719
    %vm721 = vweird.f32 %v715
    %vm722 = vweird.f32 %v716
    %vm723 = vmor %vm721, %vm722
    %v724 = vsel %vm723, %v716, %v720
    %v725 = vand.u32 2147483647, %v715
    %vm726 = vcmp.eq.f32.partialorder %v725, 8.507059e+37
    %v727 = vand.u32 %v715, 2147483648
    %v728 = vor.u32 1.1754944e-38, %v727
    %v729 = vsel %vm726, %v728, %v724
    %v730 = vmul.f32 1.0, %v729
    %v731 = vxor.u32 %v709, 2147483648
    %v732 = vmul.f32 %v731, 1.442695
    %v733 = vpow.pop %v732
    %v734 = vadd.f32 %v733, 1.0
    %v735 = vrcp.pop %v734
    %v736 = vmul.f32 %v734, %v735
    %v737 = vsub.f32 1.0, %v736
    %v738 = vmul.f32 %v735, %v737
    %v739 = vadd.f32 %v735, %v738
    %vm740 = vweird.f32 %v734
    %vm741 = vweird.f32 %v735
    %vm742 = vmor %vm740, %vm741
    %v743 = vsel %vm742, %v735, %v739
    %v744 = vand.u32 2147483647, %v734
    %vm745 = vcmp.eq.f32.partialorder %v744, 8.507059e+37
    %v746 = vand.u32 %v734, 2147483648
    %v747 = vor.u32 1.1754944e-38, %v746
    %v748 = vsel %vm745, %v747, %v743
    %v749 = vmul.f32 1.0, %v748
    %v750 = vtanh.pop %v710
    %v751 = vxor.u32 %v711, 2147483648
    %v752 = vmul.f32 %v751, 1.442695
    %v753 = vpow.pop %v752
    %v754 = vadd.f32 %v753, 1.0
    %v755 = vrcp.pop %v754
    %v756 = vmul.f32 %v754, %v755
    %v757 = vsub.f32 1.0, %v756
    %v758 = vmul.f32 %v755, %v757
    %v759 = vadd.f32 %v755, %v758
    %vm760 = vweird.f32 %v754
    %vm761 = vweird.f32 %v755
    %vm762 = vmor %vm760, %vm761
    %v763 = vsel %vm762, %v755, %v759
    %v764 = vand.u32 2147483647, %v754
    %vm765 = vcmp.eq.f32.partialorder %v764, 8.507059e+37
    %v766 = vand.u32 %v754, 2147483648
    %v767 = vor.u32 1.1754944e-38, %v766
    %v768 = vsel %vm765, %v767, %v763
    %v769 = vmul.f32 1.0, %v768
    %v770 = vmul.f32 %v749, %v644
    %v771 = vmul.f32 %v730, %v750
    %v772 = vadd.f32 %v770, %v771
    %v773 = vtanh.pop %v772
    %v774 = vmul.f32 %v769, %v773
    %s775 = scalar_lea.vmem [#allocation2], 8
    %776 = vst [vmem:[%s775] sm:$0xff] %v774
    %s777 = smul.u32 2, 4
    %s778 = smul.addr %s777, 8
    %s779 = scalar_lea.vmem [#allocation3], %s778
    %v780 = vld [vmem:[%s779] sm:$0xff]
    %v781 = vld [vmem:[%s779 + $0x8] sm:$0xff]
    %v782 = vld [vmem:[%s779 + $0x10] sm:$0xff]
    %v783 = vld [vmem:[%s779 + $0x18] sm:$0xff]
    %v784 = vpack.c.bf16 %v774, %v774
    %785 = vmatpush.bf16.msra.mxu0 %v492
    %786 = vmatpush.bf16.msra.mxu0 %v488
    %787 = vmatpush.bf16.msra.mxu0 %v484
    %788 = vmatpush.bf16.msra.mxu0 %v480
    %789 = vmatpush.bf16.msra.mxu0 %v476
    %790 = vmatpush.bf16.msra.mxu0 %v472
    %791 = vmatpush.bf16.msra.mxu0 %v468
    %792 = vmatpush.bf16.msra.mxu0 %v464
    %793 = vmatmul.bf16.gmra.mxu0 %v784
    %v794 = vpop.f32.mrf.mxu0
    %v795 = vadd.f32 0.0, %v794
    %v796 = vpop.f32.mrf.mxu0
    %797 = vdwg.mxu0
    %798 = vmatpush.bf16.msra.mxu0 %v493
    %799 = vmatpush.bf16.msra.mxu0 %v489
    %800 = vmatpush.bf16.msra.mxu0 %v485
    %801 = vmatpush.bf16.msra.mxu0 %v481
    %802 = vmatpush.bf16.msra.mxu0 %v477
    %803 = vmatpush.bf16.msra.mxu0 %v473
    %804 = vmatpush.bf16.msra.mxu0 %v469
    %805 = vmatpush.bf16.msra.mxu0 %v465
    %806 = vmatmul.bf16.gmra.mxu0 %v784
    %v807 = vpop.f32.mrf.mxu0
    %v808 = vadd.f32 0.0, %v807
    %v809 = vpop.f32.mrf.mxu0
    %810 = vdwg.mxu0
    %811 = vmatpush.bf16.msra.mxu0 %v494
    %812 = vmatpush.bf16.msra.mxu0 %v490
    %813 = vmatpush.bf16.msra.mxu0 %v486
    %814 = vmatpush.bf16.msra.mxu0 %v482
    %815 = vmatpush.bf16.msra.mxu0 %v478
    %816 = vmatpush.bf16.msra.mxu0 %v474
    %817 = vmatpush.bf16.msra.mxu0 %v470
    %818 = vmatpush.bf16.msra.mxu0 %v466
    %819 = vmatmul.bf16.gmra.mxu0 %v784
    %v820 = vpop.f32.mrf.mxu0
    %v821 = vadd.f32 0.0, %v820
    %v822 = vpop.f32.mrf.mxu0
    %823 = vdwg.mxu0
    %824 = vmatpush.bf16.msra.mxu0 %v495
    %825 = vmatpush.bf16.msra.mxu0 %v491
    %826 = vmatpush.bf16.msra.mxu0 %v487
    %827 = vmatpush.bf16.msra.mxu0 %v483
    %828 = vmatpush.bf16.msra.mxu0 %v479
    %829 = vmatpush.bf16.msra.mxu0 %v475
    %830 = vmatpush.bf16.msra.mxu0 %v471
    %831 = vmatpush.bf16.msra.mxu0 %v467
    %832 = vmatmul.bf16.gmra.mxu0 %v784
    %v833 = vpop.f32.mrf.mxu0
    %v834 = vadd.f32 0.0, %v833
    %v835 = vpop.f32.mrf.mxu0
    %836 = vdwg.mxu0
    %v837 = vadd.f32 %v780, %v795
    %v838 = vadd.f32 %v781, %v808
    %v839 = vadd.f32 %v782, %v821
    %v840 = vadd.f32 %v783, %v834
    %v841 = vxor.u32 %v837, 2147483648
    %v842 = vmul.f32 %v841, 1.442695
    %v843 = vpow.pop %v842
    %v844 = vadd.f32 %v843, 1.0
    %v845 = vrcp.pop %v844
    %v846 = vmul.f32 %v844, %v845
    %v847 = vsub.f32 1.0, %v846
    %v848 = vmul.f32 %v845, %v847
    %v849 = vadd.f32 %v845, %v848
    %vm850 = vweird.f32 %v844
    %vm851 = vweird.f32 %v845
    %vm852 = vmor %vm850, %vm851
    %v853 = vsel %vm852, %v845, %v849
    %v854 = vand.u32 2147483647, %v844
    %vm855 = vcmp.eq.f32.partialorder %v854, 8.507059e+37
    %v856 = vand.u32 %v844, 2147483648
    %v857 = vor.u32 1.1754944e-38, %v856
    %v858 = vsel %vm855, %v857, %v853
    %v859 = vmul.f32 1.0, %v858
    %v860 = vxor.u32 %v838, 2147483648
    %v861 = vmul.f32 %v860, 1.442695
    %v862 = vpow.pop %v861
    %v863 = vadd.f32 %v862, 1.0
    %v864 = vrcp.pop %v863
    %v865 = vmul.f32 %v863, %v864
    %v866 = vsub.f32 1.0, %v865
    %v867 = vmul.f32 %v864, %v866
    %v868 = vadd.f32 %v864, %v867
    %vm869 = vweird.f32 %v863
    %vm870 = vweird.f32 %v864
    %vm871 = vmor %vm869, %vm870
    %v872 = vsel %vm871, %v864, %v868
    %v873 = vand.u32 2147483647, %v863
    %vm874 = vcmp.eq.f32.partialorder %v873, 8.507059e+37
    %v875 = vand.u32 %v863, 2147483648
    %v876 = vor.u32 1.1754944e-38, %v875
    %v877 = vsel %vm874, %v876, %v872
    %v878 = vmul.f32 1.0, %v877
    %v879 = vtanh.pop %v839
    %v880 = vxor.u32 %v840, 2147483648
    %v881 = vmul.f32 %v880, 1.442695
    %v882 = vpow.pop %v881
    %v883 = vadd.f32 %v882, 1.0
    %v884 = vrcp.pop %v883
    %v885 = vmul.f32 %v883, %v884
    %v886 = vsub.f32 1.0, %v885
    %v887 = vmul.f32 %v884, %v886
    %v888 = vadd.f32 %v884, %v887
    %vm889 = vweird.f32 %v883
    %vm890 = vweird.f32 %v884
    %vm891 = vmor %vm889, %vm890
    %v892 = vsel %vm891, %v884, %v888
    %v893 = vand.u32 2147483647, %v883
    %vm894 = vcmp.eq.f32.partialorder %v893, 8.507059e+37
    %v895 = vand.u32 %v883, 2147483648
    %v896 = vor.u32 1.1754944e-38, %v895
    %v897 = vsel %vm894, %v896, %v892
    %v898 = vmul.f32 1.0, %v897
    %v899 = vmul.f32 %v878, %v772
    %v900 = vmul.f32 %v859, %v879
    %v901 = vadd.f32 %v899, %v900
    %v902 = vtanh.pop %v901
    %v903 = vmul.f32 %v898, %v902
    %s904 = scalar_lea.vmem [#allocation2], 16
    %905 = vst [vmem:[%s904] sm:$0xff] %v903
    %s906 = smul.u32 3, 4
    %s907 = smul.addr %s906, 8
    %s908 = scalar_lea.vmem [#allocation3], %s907
    %v909 = vld [vmem:[%s908] sm:$0xff]
    %v910 = vld [vmem:[%s908 + $0x8] sm:$0xff]
    %v911 = vld [vmem:[%s908 + $0x10] sm:$0xff]
    %v912 = vld [vmem:[%s908 + $0x18] sm:$0xff]
    %v913 = vpack.c.bf16 %v903, %v903
    %914 = vmatpush.bf16.msra.mxu0 %v492
    %915 = vmatpush.bf16.msra.mxu0 %v488
    %916 = vmatpush.bf16.msra.mxu0 %v484
    %917 = vmatpush.bf16.msra.mxu0 %v480
    %918 = vmatpush.bf16.msra.mxu0 %v476
    %919 = vmatpush.bf16.msra.mxu0 %v472
    %920 = vmatpush.bf16.msra.mxu0 %v468
    %921 = vmatpush.bf16.msra.mxu0 %v464
    %922 = vmatmul.bf16.gmra.mxu0 %v913
    %v923 = vpop.f32.mrf.mxu0
    %v924 = vadd.f32 0.0, %v923
    %v925 = vpop.f32.mrf.mxu0
    %926 = vdwg.mxu0
    %927 = vmatpush.bf16.msra.mxu0 %v493
    %928 = vmatpush.bf16.msra.mxu0 %v489
    %929 = vmatpush.bf16.msra.mxu0 %v485
    %930 = vmatpush.bf16.msra.mxu0 %v481
    %931 = vmatpush.bf16.msra.mxu0 %v477
    %932 = vmatpush.bf16.msra.mxu0 %v473
    %933 = vmatpush.bf16.msra.mxu0 %v469
    %934 = vmatpush.bf16.msra.mxu0 %v465
    %935 = vmatmul.bf16.gmra.mxu0 %v913
    %v936 = vpop.f32.mrf.mxu0
    %v937 = vadd.f32 0.0, %v936
    %v938 = vpop.f32.mrf.mxu0
    %939 = vdwg.mxu0
    %940 = vmatpush.bf16.msra.mxu0 %v494
    %941 = vmatpush.bf16.msra.mxu0 %v490
    %942 = vmatpush.bf16.msra.mxu0 %v486
    %943 = vmatpush.bf16.msra.mxu0 %v482
    %944 = vmatpush.bf16.msra.mxu0 %v478
    %945 = vmatpush.bf16.msra.mxu0 %v474
    %946 = vmatpush.bf16.msra.mxu0 %v470
    %947 = vmatpush.bf16.msra.mxu0 %v466
    %948 = vmatmul.bf16.gmra.mxu0 %v913
    %v949 = vpop.f32.mrf.mxu0
    %v950 = vadd.f32 0.0, %v949
    %v951 = vpop.f32.mrf.mxu0
    %952 = vdwg.mxu0
    %953 = vmatpush.bf16.msra.mxu0 %v495
    %954 = vmatpush.bf16.msra.mxu0 %v491
    %955 = vmatpush.bf16.msra.mxu0 %v487
    %956 = vmatpush.bf16.msra.mxu0 %v483
    %957 = vmatpush.bf16.msra.mxu0 %v479
    %958 = vmatpush.bf16.msra.mxu0 %v475
    %959 = vmatpush.bf16.msra.mxu0 %v471
    %960 = vmatpush.bf16.msra.mxu0 %v467
    %961 = vmatmul.bf16.gmra.mxu0 %v913
    %v962 = vpop.f32.mrf.mxu0
    %v963 = vadd.f32 0.0, %v962
    %v964 = vpop.f32.mrf.mxu0
    %965 = vdwg.mxu0
    %v966 = vadd.f32 %v909, %v924
    %v967 = vadd.f32 %v910, %v937
    %v968 = vadd.f32 %v911, %v950
    %v969 = vadd.f32 %v912, %v963
    %v970 = vxor.u32 %v966, 2147483648
    %v971 = vmul.f32 %v970, 1.442695
    %v972 = vpow.pop %v971
    %v973 = vadd.f32 %v972, 1.0
    %v974 = vrcp.pop %v973
    %v975 = vmul.f32 %v973, %v974
    %v976 = vsub.f32 1.0, %v975
    %v977 = vmul.f32 %v974, %v976
    %v978 = vadd.f32 %v974, %v977
    %vm979 = vweird.f32 %v973
    %vm980 = vweird.f32 %v974
    %vm981 = vmor %vm979, %vm980
    %v982 = vsel %vm981, %v974, %v978
    %v983 = vand.u32 2147483647, %v973
    %vm984 = vcmp.eq.f32.partialorder %v983, 8.507059e+37
    %v985 = vand.u32 %v973, 2147483648
    %v986 = vor.u32 1.1754944e-38, %v985
    %v987 = vsel %vm984, %v986, %v982
    %v988 = vmul.f32 1.0, %v987
    %v989 = vxor.u32 %v967, 2147483648
    %v990 = vmul.f32 %v989, 1.442695
    %v991 = vpow.pop %v990
    %v992 = vadd.f32 %v991, 1.0
    %v993 = vrcp.pop %v992
    %v994 = vmul.f32 %v992, %v993
    %v995 = vsub.f32 1.0, %v994
    %v996 = vmul.f32 %v993, %v995
    %v997 = vadd.f32 %v993, %v996
    %vm998 = vweird.f32 %v992
    %vm999 = vweird.f32 %v993
    %vm1000 = vmor %vm998, %vm999
    %v1001 = vsel %vm1000, %v993, %v997
    %v1002 = vand.u32 2147483647, %v992
    %vm1003 = vcmp.eq.f32.partialorder %v1002, 8.507059e+37
    %v1004 = vand.u32 %v992, 2147483648
    %v1005 = vor.u32 1.1754944e-38, %v1004
    %v1006 = vsel %vm1003, %v1005, %v1001
    %v1007 = vmul.f32 1.0, %v1006
    %v1008 = vtanh.pop %v968
    %v1009 = vxor.u32 %v969, 2147483648
    %v1010 = vmul.f32 %v1009, 1.442695
    %v1011 = vpow.pop %v1010
    %v1012 = vadd.f32 %v1011, 1.0
    %v1013 = vrcp.pop %v1012
    %v1014 = vmul.f32 %v1012, %v1013
    %v1015 = vsub.f32 1.0, %v1014
    %v1016 = vmul.f32 %v1013, %v1015
    %v1017 = vadd.f32 %v1013, %v1016
    %vm1018 = vweird.f32 %v1012
    %vm1019 = vweird.f32 %v1013
    %vm1020 = vmor %vm1018, %vm1019
    %v1021 = vsel %vm1020, %v1013, %v1017
    %v1022 = vand.u32 2147483647, %v1012
    %vm1023 = vcmp.eq.f32.partialorder %v1022, 8.507059e+37
    %v1024 = vand.u32 %v1012, 2147483648
    %v1025 = vor.u32 1.1754944e-38, %v1024
    %v1026 = vsel %vm1023, %v1025, %v1021
    %v1027 = vmul.f32 1.0, %v1026
    %v1028 = vmul.f32 %v1007, %v901
    %v1029 = vmul.f32 %v988, %v1008
    %v1030 = vadd.f32 %v1028, %v1029
    %v1031 = vtanh.pop %v1030
    %v1032 = vmul.f32 %v1027, %v1031
    %s1033 = scalar_lea.vmem [#allocation2], 24
    %1034 = vst [vmem:[%s1033] sm:$0xff] %v1032
    %s1035 = smul.u32 4, 4
    %s1036 = smul.addr %s1035, 8
    %s1037 = scalar_lea.vmem [#allocation3], %s1036
    %v1038 = vld [vmem:[%s1037] sm:$0xff]
    %v1039 = vld [vmem:[%s1037 + $0x8] sm:$0xff]
    %v1040 = vld [vmem:[%s1037 + $0x10] sm:$0xff]
    %v1041 = vld [vmem:[%s1037 + $0x18] sm:$0xff]
    %v1042 = vpack.c.bf16 %v1032, %v1032
    %1043 = vmatpush.bf16.msra.mxu0 %v492
    %1044 = vmatpush.bf16.msra.mxu0 %v488
    %1045 = vmatpush.bf16.msra.mxu0 %v484
    %1046 = vmatpush.bf16.msra.mxu0 %v480
    %1047 = vmatpush.bf16.msra.mxu0 %v476
    %1048 = vmatpush.bf16.msra.mxu0 %v472
    %1049 = vmatpush.bf16.msra.mxu0 %v468
    %1050 = vmatpush.bf16.msra.mxu0 %v464
    %1051 = vmatmul.bf16.gmra.mxu0 %v1042
    %v1052 = vpop.f32.mrf.mxu0
    %v1053 = vadd.f32 0.0, %v1052
    %v1054 = vpop.f32.mrf.mxu0
    %1055 = vdwg.mxu0
    %1056 = vmatpush.bf16.msra.mxu0 %v493
    %1057 = vmatpush.bf16.msra.mxu0 %v489
    %1058 = vmatpush.bf16.msra.mxu0 %v485
    %1059 = vmatpush.bf16.msra.mxu0 %v481
    %1060 = vmatpush.bf16.msra.mxu0 %v477
    %1061 = vmatpush.bf16.msra.mxu0 %v473
    %1062 = vmatpush.bf16.msra.mxu0 %v469
    %1063 = vmatpush.bf16.msra.mxu0 %v465
    %1064 = vmatmul.bf16.gmra.mxu0 %v1042
    %v1065 = vpop.f32.mrf.mxu0
    %v1066 = vadd.f32 0.0, %v1065
    %v1067 = vpop.f32.mrf.mxu0
    %1068 = vdwg.mxu0
    %1069 = vmatpush.bf16.msra.mxu0 %v494
    %1070 = vmatpush.bf16.msra.mxu0 %v490
    %1071 = vmatpush.bf16.msra.mxu0 %v486
    %1072 = vmatpush.bf16.msra.mxu0 %v482
    %1073 = vmatpush.bf16.msra.mxu0 %v478
    %1074 = vmatpush.bf16.msra.mxu0 %v474
    %1075 = vmatpush.bf16.msra.mxu0 %v470
    %1076 = vmatpush.bf16.msra.mxu0 %v466
    %1077 = vmatmul.bf16.gmra.mxu0 %v1042
    %v1078 = vpop.f32.mrf.mxu0
    %v1079 = vadd.f32 0.0, %v1078
    %v1080 = vpop.f32.mrf.mxu0
    %1081 = vdwg.mxu0
    %1082 = vmatpush.bf16.msra.mxu0 %v495
    %1083 = vmatpush.bf16.msra.mxu0 %v491
    %1084 = vmatpush.bf16.msra.mxu0 %v487
    %1085 = vmatpush.bf16.msra.mxu0 %v483
    %1086 = vmatpush.bf16.msra.mxu0 %v479
    %1087 = vmatpush.bf16.msra.mxu0 %v475
    %1088 = vmatpush.bf16.msra.mxu0 %v471
    %1089 = vmatpush.bf16.msra.mxu0 %v467
    %1090 = vmatmul.bf16.gmra.mxu0 %v1042
    %v1091 = vpop.f32.mrf.mxu0
    %v1092 = vadd.f32 0.0, %v1091
    %v1093 = vpop.f32.mrf.mxu0
    %1094 = vdwg.mxu0
    %v1095 = vadd.f32 %v1038, %v1053
    %v1096 = vadd.f32 %v1039, %v1066
    %v1097 = vadd.f32 %v1040, %v1079
    %v1098 = vadd.f32 %v1041, %v1092
    %v1099 = vxor.u32 %v1095, 2147483648
    %v1100 = vmul.f32 %v1099, 1.442695
    %v1101 = vpow.pop %v1100
    %v1102 = vadd.f32 %v1101, 1.0
    %v1103 = vrcp.pop %v1102
    %v1104 = vmul.f32 %v1102, %v1103
    %v1105 = vsub.f32 1.0, %v1104
    %v1106 = vmul.f32 %v1103, %v1105
    %v1107 = vadd.f32 %v1103, %v1106
    %vm1108 = vweird.f32 %v1102
    %vm1109 = vweird.f32 %v1103
    %vm1110 = vmor %vm1108, %vm1109
    %v1111 = vsel %vm1110, %v1103, %v1107
    %v1112 = vand.u32 2147483647, %v1102
    %vm1113 = vcmp.eq.f32.partialorder %v1112, 8.507059e+37
    %v1114 = vand.u32 %v1102, 2147483648
    %v1115 = vor.u32 1.1754944e-38, %v1114
    %v1116 = vsel %vm1113, %v1115, %v1111
    %v1117 = vmul.f32 1.0, %v1116
    %v1118 = vxor.u32 %v1096, 2147483648
    %v1119 = vmul.f32 %v1118, 1.442695
    %v1120 = vpow.pop %v1119
    %v1121 = vadd.f32 %v1120, 1.0
    %v1122 = vrcp.pop %v1121
    %v1123 = vmul.f32 %v1121, %v1122
    %v1124 = vsub.f32 1.0, %v1123
    %v1125 = vmul.f32 %v1122, %v1124
    %v1126 = vadd.f32 %v1122, %v1125
    %vm1127 = vweird.f32 %v1121
    %vm1128 = vweird.f32 %v1122
    %vm1129 = vmor %vm1127, %vm1128
    %v1130 = vsel %vm1129, %v1122, %v1126
    %v1131 = vand.u32 2147483647, %v1121
    %vm1132 = vcmp.eq.f32.partialorder %v1131, 8.507059e+37
    %v1133 = vand.u32 %v1121, 2147483648
    %v1134 = vor.u32 1.1754944e-38, %v1133
    %v1135 = vsel %vm1132, %v1134, %v1130
    %v1136 = vmul.f32 1.0, %v1135
    %v1137 = vtanh.pop %v1097
    %v1138 = vxor.u32 %v1098, 2147483648
    %v1139 = vmul.f32 %v1138, 1.442695
    %v1140 = vpow.pop %v1139
    %v1141 = vadd.f32 %v1140, 1.0
    %v1142 = vrcp.pop %v1141
    %v1143 = vmul.f32 %v1141, %v1142
    %v1144 = vsub.f32 1.0, %v1143
    %v1145 = vmul.f32 %v1142, %v1144
    %v1146 = vadd.f32 %v1142, %v1145
    %vm1147 = vweird.f32 %v1141
    %vm1148 = vweird.f32 %v1142
    %vm1149 = vmor %vm1147, %vm1148
    %v1150 = vsel %vm1149, %v1142, %v1146
    %v1151 = vand.u32 2147483647, %v1141
    %vm1152 = vcmp.eq.f32.partialorder %v1151, 8.507059e+37
    %v1153 = vand.u32 %v1141, 2147483648
    %v1154 = vor.u32 1.1754944e-38, %v1153
    %v1155 = vsel %vm1152, %v1154, %v1150
    %v1156 = vmul.f32 1.0, %v1155
    %v1157 = vmul.f32 %v1136, %v1030
    %v1158 = vmul.f32 %v1117, %v1137
    %v1159 = vadd.f32 %v1157, %v1158
    %v1160 = vtanh.pop %v1159
    %v1161 = vmul.f32 %v1156, %v1160
    %s1162 = scalar_lea.vmem [#allocation2], 32
    %1163 = vst [vmem:[%s1162] sm:$0xff] %v1161
    %s1164 = smul.u32 5, 4
    %s1165 = smul.addr %s1164, 8
    %s1166 = scalar_lea.vmem [#allocation3], %s1165
    %v1167 = vld [vmem:[%s1166] sm:$0xff]
    %v1168 = vld [vmem:[%s1166 + $0x8] sm:$0xff]
    %v1169 = vld [vmem:[%s1166 + $0x10] sm:$0xff]
    %v1170 = vld [vmem:[%s1166 + $0x18] sm:$0xff]
    %v1171 = vpack.c.bf16 %v1161, %v1161
    %1172 = vmatpush.bf16.msra.mxu0 %v492
    %1173 = vmatpush.bf16.msra.mxu0 %v488
    %1174 = vmatpush.bf16.msra.mxu0 %v484
    %1175 = vmatpush.bf16.msra.mxu0 %v480
    %1176 = vmatpush.bf16.msra.mxu0 %v476
    %1177 = vmatpush.bf16.msra.mxu0 %v472
    %1178 = vmatpush.bf16.msra.mxu0 %v468
    %1179 = vmatpush.bf16.msra.mxu0 %v464
    %1180 = vmatmul.bf16.gmra.mxu0 %v1171
    %v1181 = vpop.f32.mrf.mxu0
    %v1182 = vadd.f32 0.0, %v1181
    %v1183 = vpop.f32.mrf.mxu0
    %1184 = vdwg.mxu0
    %1185 = vmatpush.bf16.msra.mxu0 %v493
    %1186 = vmatpush.bf16.msra.mxu0 %v489
    %1187 = vmatpush.bf16.msra.mxu0 %v485
    %1188 = vmatpush.bf16.msra.mxu0 %v481
    %1189 = vmatpush.bf16.msra.mxu0 %v477
    %1190 = vmatpush.bf16.msra.mxu0 %v473
    %1191 = vmatpush.bf16.msra.mxu0 %v469
    %1192 = vmatpush.bf16.msra.mxu0 %v465
    %1193 = vmatmul.bf16.gmra.mxu0 %v1171
    %v1194 = vpop.f32.mrf.mxu0
    %v1195 = vadd.f32 0.0, %v1194
    %v1196 = vpop.f32.mrf.mxu0
    %1197 = vdwg.mxu0
    %1198 = vmatpush.bf16.msra.mxu0 %v494
    %1199 = vmatpush.bf16.msra.mxu0 %v490
    %1200 = vmatpush.bf16.msra.mxu0 %v486
    %1201 = vmatpush.bf16.msra.mxu0 %v482
    %1202 = vmatpush.bf16.msra.mxu0 %v478
    %1203 = vmatpush.bf16.msra.mxu0 %v474
    %1204 = vmatpush.bf16.msra.mxu0 %v470
    %1205 = vmatpush.bf16.msra.mxu0 %v466
    %1206 = vmatmul.bf16.gmra.mxu0 %v1171
    %v1207 = vpop.f32.mrf.mxu0
    %v1208 = vadd.f32 0.0, %v1207
    %v1209 = vpop.f32.mrf.mxu0
    %1210 = vdwg.mxu0
    %1211 = vmatpush.bf16.msra.mxu0 %v495
    %1212 = vmatpush.bf16.msra.mxu0 %v491
    %1213 = vmatpush.bf16.msra.mxu0 %v487
    %1214 = vmatpush.bf16.msra.mxu0 %v483
    %1215 = vmatpush.bf16.msra.mxu0 %v479
    %1216 = vmatpush.bf16.msra.mxu0 %v475
    %1217 = vmatpush.bf16.msra.mxu0 %v471
    %1218 = vmatpush.bf16.msra.mxu0 %v467
    %1219 = vmatmul.bf16.gmra.mxu0 %v1171
    %v1220 = vpop.f32.mrf.mxu0
    %v1221 = vadd.f32 0.0, %v1220
    %v1222 = vpop.f32.mrf.mxu0
    %1223 = vdwg.mxu0
    %v1224 = vadd.f32 %v1167, %v1182
    %v1225 = vadd.f32 %v1168, %v1195
    %v1226 = vadd.f32 %v1169, %v1208
    %v1227 = vadd.f32 %v1170, %v1221
    %v1228 = vxor.u32 %v1224, 2147483648
    %v1229 = vmul.f32 %v1228, 1.442695
    %v1230 = vpow.pop %v1229
    %v1231 = vadd.f32 %v1230, 1.0
    %v1232 = vrcp.pop %v1231
    %v1233 = vmul.f32 %v1231, %v1232
    %v1234 = vsub.f32 1.0, %v1233
    %v1235 = vmul.f32 %v1232, %v1234
    %v1236 = vadd.f32 %v1232, %v1235
    %vm1237 = vweird.f32 %v1231
    %vm1238 = vweird.f32 %v1232
    %vm1239 = vmor %vm1237, %vm1238
    %v1240 = vsel %vm1239, %v1232, %v1236
    %v1241 = vand.u32 2147483647, %v1231
    %vm1242 = vcmp.eq.f32.partialorder %v1241, 8.507059e+37
    %v1243 = vand.u32 %v1231, 2147483648
    %v1244 = vor.u32 1.1754944e-38, %v1243
    %v1245 = vsel %vm1242, %v1244, %v1240
    %v1246 = vmul.f32 1.0, %v1245
    %v1247 = vxor.u32 %v1225, 2147483648
    %v1248 = vmul.f32 %v1247, 1.442695
    %v1249 = vpow.pop %v1248
    %v1250 = vadd.f32 %v1249, 1.0
    %v1251 = vrcp.pop %v1250
    %v1252 = vmul.f32 %v1250, %v1251
    %v1253 = vsub.f32 1.0, %v1252
    %v1254 = vmul.f32 %v1251, %v1253
    %v1255 = vadd.f32 %v1251, %v1254
    %vm1256 = vweird.f32 %v1250
    %vm1257 = vweird.f32 %v1251
    %vm1258 = vmor %vm1256, %vm1257
    %v1259 = vsel %vm1258, %v1251, %v1255
    %v1260 = vand.u32 2147483647, %v1250
    %vm1261 = vcmp.eq.f32.partialorder %v1260, 8.507059e+37
    %v1262 = vand.u32 %v1250, 2147483648
    %v1263 = vor.u32 1.1754944e-38, %v1262
    %v1264 = vsel %vm1261, %v1263, %v1259
    %v1265 = vmul.f32 1.0, %v1264
    %v1266 = vtanh.pop %v1226
    %v1267 = vxor.u32 %v1227, 2147483648
    %v1268 = vmul.f32 %v1267, 1.442695
    %v1269 = vpow.pop %v1268
    %v1270 = vadd.f32 %v1269, 1.0
    %v1271 = vrcp.pop %v1270
    %v1272 = vmul.f32 %v1270, %v1271
    %v1273 = vsub.f32 1.0, %v1272
    %v1274 = vmul.f32 %v1271, %v1273
    %v1275 = vadd.f32 %v1271, %v1274
    %vm1276 = vweird.f32 %v1270
    %vm1277 = vweird.f32 %v1271
    %vm1278 = vmor %vm1276, %vm1277
    %v1279 = vsel %vm1278, %v1271, %v1275
    %v1280 = vand.u32 2147483647, %v1270
    %vm1281 = vcmp.eq.f32.partialorder %v1280, 8.507059e+37
    %v1282 = vand.u32 %v1270, 2147483648
    %v1283 = vor.u32 1.1754944e-38, %v1282
    %v1284 = vsel %vm1281, %v1283, %v1279
    %v1285 = vmul.f32 1.0, %v1284
    %v1286 = vmul.f32 %v1265, %v1159
    %v1287 = vmul.f32 %v1246, %v1266
    %v1288 = vadd.f32 %v1286, %v1287
    %v1289 = vtanh.pop %v1288
    %v1290 = vmul.f32 %v1285, %v1289
    %s1291 = scalar_lea.vmem [#allocation2], 40
    %1292 = vst [vmem:[%s1291] sm:$0xff] %v1290
    %s1293 = smul.u32 6, 4
    %s1294 = smul.addr %s1293, 8
    %s1295 = scalar_lea.vmem [#allocation3], %s1294
    %v1296 = vld [vmem:[%s1295] sm:$0xff]
    %v1297 = vld [vmem:[%s1295 + $0x8] sm:$0xff]
    %v1298 = vld [vmem:[%s1295 + $0x10] sm:$0xff]
    %v1299 = vld [vmem:[%s1295 + $0x18] sm:$0xff]
    %v1300 = vpack.c.bf16 %v1290, %v1290
    %1301 = vmatpush.bf16.msra.mxu0 %v492
    %1302 = vmatpush.bf16.msra.mxu0 %v488
    %1303 = vmatpush.bf16.msra.mxu0 %v484
    %1304 = vmatpush.bf16.msra.mxu0 %v480
    %1305 = vmatpush.bf16.msra.mxu0 %v476
    %1306 = vmatpush.bf16.msra.mxu0 %v472
    %1307 = vmatpush.bf16.msra.mxu0 %v468
    %1308 = vmatpush.bf16.msra.mxu0 %v464
    %1309 = vmatmul.bf16.gmra.mxu0 %v1300
    %v1310 = vpop.f32.mrf.mxu0
    %v1311 = vadd.f32 0.0, %v1310
    %v1312 = vpop.f32.mrf.mxu0
    %1313 = vdwg.mxu0
    %1314 = vmatpush.bf16.msra.mxu0 %v493
    %1315 = vmatpush.bf16.msra.mxu0 %v489
    %1316 = vmatpush.bf16.msra.mxu0 %v485
    %1317 = vmatpush.bf16.msra.mxu0 %v481
    %1318 = vmatpush.bf16.msra.mxu0 %v477
    %1319 = vmatpush.bf16.msra.mxu0 %v473
    %1320 = vmatpush.bf16.msra.mxu0 %v469
    %1321 = vmatpush.bf16.msra.mxu0 %v465
    %1322 = vmatmul.bf16.gmra.mxu0 %v1300
    %v1323 = vpop.f32.mrf.mxu0
    %v1324 = vadd.f32 0.0, %v1323
    %v1325 = vpop.f32.mrf.mxu0
    %1326 = vdwg.mxu0
    %1327 = vmatpush.bf16.msra.mxu0 %v494
    %1328 = vmatpush.bf16.msra.mxu0 %v490
    %1329 = vmatpush.bf16.msra.mxu0 %v486
    %1330 = vmatpush.bf16.msra.mxu0 %v482
    %1331 = vmatpush.bf16.msra.mxu0 %v478
    %1332 = vmatpush.bf16.msra.mxu0 %v474
    %1333 = vmatpush.bf16.msra.mxu0 %v470
    %1334 = vmatpush.bf16.msra.mxu0 %v466
    %1335 = vmatmul.bf16.gmra.mxu0 %v1300
    %v1336 = vpop.f32.mrf.mxu0
    %v1337 = vadd.f32 0.0, %v1336
    %v1338 = vpop.f32.mrf.mxu0
    %1339 = vdwg.mxu0
    %1340 = vmatpush.bf16.msra.mxu0 %v495
    %1341 = vmatpush.bf16.msra.mxu0 %v491
    %1342 = vmatpush.bf16.msra.mxu0 %v487
    %1343 = vmatpush.bf16.msra.mxu0 %v483
    %1344 = vmatpush.bf16.msra.mxu0 %v479
    %1345 = vmatpush.bf16.msra.mxu0 %v475
    %1346 = vmatpush.bf16.msra.mxu0 %v471
    %1347 = vmatpush.bf16.msra.mxu0 %v467
    %1348 = vmatmul.bf16.gmra.mxu0 %v1300
    %v1349 = vpop.f32.mrf.mxu0
    %v1350 = vadd.f32 0.0, %v1349
    %v1351 = vpop.f32.mrf.mxu0
    %1352 = vdwg.mxu0
    %v1353 = vadd.f32 %v1296, %v1311
    %v1354 = vadd.f32 %v1297, %v1324
    %v1355 = vadd.f32 %v1298, %v1337
    %v1356 = vadd.f32 %v1299, %v1350
    %v1357 = vxor.u32 %v1353, 2147483648
    %v1358 = vmul.f32 %v1357, 1.442695
    %v1359 = vpow.pop %v1358
    %v1360 = vadd.f32 %v1359, 1.0
    %v1361 = vrcp.pop %v1360
    %v1362 = vmul.f32 %v1360, %v1361
    %v1363 = vsub.f32 1.0, %v1362
    %v1364 = vmul.f32 %v1361, %v1363
    %v1365 = vadd.f32 %v1361, %v1364
    %vm1366 = vweird.f32 %v1360
    %vm1367 = vweird.f32 %v1361
    %vm1368 = vmor %vm1366, %vm1367
    %v1369 = vsel %vm1368, %v1361, %v1365
    %v1370 = vand.u32 2147483647, %v1360
    %vm1371 = vcmp.eq.f32.partialorder %v1370, 8.507059e+37
    %v1372 = vand.u32 %v1360, 2147483648
    %v1373 = vor.u32 1.1754944e-38, %v1372
    %v1374 = vsel %vm1371, %v1373, %v1369
    %v1375 = vmul.f32 1.0, %v1374
    %v1376 = vxor.u32 %v1354, 2147483648
    %v1377 = vmul.f32 %v1376, 1.442695
    %v1378 = vpow.pop %v1377
    %v1379 = vadd.f32 %v1378, 1.0
    %v1380 = vrcp.pop %v1379
    %v1381 = vmul.f32 %v1379, %v1380
    %v1382 = vsub.f32 1.0, %v1381
    %v1383 = vmul.f32 %v1380, %v1382
    %v1384 = vadd.f32 %v1380, %v1383
    %vm1385 = vweird.f32 %v1379
    %vm1386 = vweird.f32 %v1380
    %vm1387 = vmor %vm1385, %vm1386
    %v1388 = vsel %vm1387, %v1380, %v1384
    %v1389 = vand.u32 2147483647, %v1379
    %vm1390 = vcmp.eq.f32.partialorder %v1389, 8.507059e+37
    %v1391 = vand.u32 %v1379, 2147483648
    %v1392 = vor.u32 1.1754944e-38, %v1391
    %v1393 = vsel %vm1390, %v1392, %v1388
    %v1394 = vmul.f32 1.0, %v1393
    %v1395 = vtanh.pop %v1355
    %v1396 = vxor.u32 %v1356, 2147483648
    %v1397 = vmul.f32 %v1396, 1.442695
    %v1398 = vpow.pop %v1397
    %v1399 = vadd.f32 %v1398, 1.0
    %v1400 = vrcp.pop %v1399
    %v1401 = vmul.f32 %v1399, %v1400
    %v1402 = vsub.f32 1.0, %v1401
    %v1403 = vmul.f32 %v1400, %v1402
    %v1404 = vadd.f32 %v1400, %v1403
    %vm1405 = vweird.f32 %v1399
    %vm1406 = vweird.f32 %v1400
    %vm1407 = vmor %vm1405, %vm1406
    %v1408 = vsel %vm1407, %v1400, %v1404
    %v1409 = vand.u32 2147483647, %v1399
    %vm1410 = vcmp.eq.f32.partialorder %v1409, 8.507059e+37
    %v1411 = vand.u32 %v1399, 2147483648
    %v1412 = vor.u32 1.1754944e-38, %v1411
    %v1413 = vsel %vm1410, %v1412, %v1408
    %v1414 = vmul.f32 1.0, %v1413
    %v1415 = vmul.f32 %v1394, %v1288
    %v1416 = vmul.f32 %v1375, %v1395
    %v1417 = vadd.f32 %v1415, %v1416
    %v1418 = vtanh.pop %v1417
    %v1419 = vmul.f32 %v1414, %v1418
    %s1420 = scalar_lea.vmem [#allocation2], 48
    %1421 = vst [vmem:[%s1420] sm:$0xff] %v1419
    %s1422 = smul.u32 7, 4
    %s1423 = smul.addr %s1422, 8
    %s1424 = scalar_lea.vmem [#allocation3], %s1423
    %v1425 = vld [vmem:[%s1424] sm:$0xff]
    %v1426 = vld [vmem:[%s1424 + $0x8] sm:$0xff]
    %v1427 = vld [vmem:[%s1424 + $0x10] sm:$0xff]
    %v1428 = vld [vmem:[%s1424 + $0x18] sm:$0xff]
    %v1429 = vpack.c.bf16 %v1419, %v1419
    %1430 = vmatpush.bf16.msra.mxu0 %v492
    %1431 = vmatpush.bf16.msra.mxu0 %v488
    %1432 = vmatpush.bf16.msra.mxu0 %v484
    %1433 = vmatpush.bf16.msra.mxu0 %v480
    %1434 = vmatpush.bf16.msra.mxu0 %v476
    %1435 = vmatpush.bf16.msra.mxu0 %v472
    %1436 = vmatpush.bf16.msra.mxu0 %v468
    %1437 = vmatpush.bf16.msra.mxu0 %v464
    %1438 = vmatmul.bf16.gmra.mxu0 %v1429
    %v1439 = vpop.f32.mrf.mxu0
    %v1440 = vadd.f32 0.0, %v1439
    %v1441 = vpop.f32.mrf.mxu0
    %1442 = vdwg.mxu0
    %1443 = vmatpush.bf16.msra.mxu0 %v493
    %1444 = vmatpush.bf16.msra.mxu0 %v489
    %1445 = vmatpush.bf16.msra.mxu0 %v485
    %1446 = vmatpush.bf16.msra.mxu0 %v481
    %1447 = vmatpush.bf16.msra.mxu0 %v477
    %1448 = vmatpush.bf16.msra.mxu0 %v473
    %1449 = vmatpush.bf16.msra.mxu0 %v469
    %1450 = vmatpush.bf16.msra.mxu0 %v465
    %1451 = vmatmul.bf16.gmra.mxu0 %v1429
    %v1452 = vpop.f32.mrf.mxu0
    %v1453 = vadd.f32 0.0, %v1452
    %v1454 = vpop.f32.mrf.mxu0
    %1455 = vdwg.mxu0
    %1456 = vmatpush.bf16.msra.mxu0 %v494
    %1457 = vmatpush.bf16.msra.mxu0 %v490
    %1458 = vmatpush.bf16.msra.mxu0 %v486
    %1459 = vmatpush.bf16.msra.mxu0 %v482
    %1460 = vmatpush.bf16.msra.mxu0 %v478
    %1461 = vmatpush.bf16.msra.mxu0 %v474
    %1462 = vmatpush.bf16.msra.mxu0 %v470
    %1463 = vmatpush.bf16.msra.mxu0 %v466
    %1464 = vmatmul.bf16.gmra.mxu0 %v1429
    %v1465 = vpop.f32.mrf.mxu0
    %v1466 = vadd.f32 0.0, %v1465
    %v1467 = vpop.f32.mrf.mxu0
    %1468 = vdwg.mxu0
    %1469 = vmatpush.bf16.msra.mxu0 %v495
    %1470 = vmatpush.bf16.msra.mxu0 %v491
    %1471 = vmatpush.bf16.msra.mxu0 %v487
    %1472 = vmatpush.bf16.msra.mxu0 %v483
    %1473 = vmatpush.bf16.msra.mxu0 %v479
    %1474 = vmatpush.bf16.msra.mxu0 %v475
    %1475 = vmatpush.bf16.msra.mxu0 %v471
    %1476 = vmatpush.bf16.msra.mxu0 %v467
    %1477 = vmatmul.bf16.gmra.mxu0 %v1429
    %v1478 = vpop.f32.mrf.mxu0
    %v1479 = vadd.f32 0.0, %v1478
    %v1480 = vpop.f32.mrf.mxu0
    %1481 = vdwg.mxu0
    %v1482 = vadd.f32 %v1425, %v1440
    %v1483 = vadd.f32 %v1426, %v1453
    %v1484 = vadd.f32 %v1427, %v1466
    %v1485 = vadd.f32 %v1428, %v1479
    %v1486 = vxor.u32 %v1482, 2147483648
    %v1487 = vmul.f32 %v1486, 1.442695
    %v1488 = vpow.pop %v1487
    %v1489 = vadd.f32 %v1488, 1.0
    %v1490 = vrcp.pop %v1489
    %v1491 = vmul.f32 %v1489, %v1490
    %v1492 = vsub.f32 1.0, %v1491
    %v1493 = vmul.f32 %v1490, %v1492
    %v1494 = vadd.f32 %v1490, %v1493
    %vm1495 = vweird.f32 %v1489
    %vm1496 = vweird.f32 %v1490
    %vm1497 = vmor %vm1495, %vm1496
    %v1498 = vsel %vm1497, %v1490, %v1494
    %v1499 = vand.u32 2147483647, %v1489
    %vm1500 = vcmp.eq.f32.partialorder %v1499, 8.507059e+37
    %v1501 = vand.u32 %v1489, 2147483648
    %v1502 = vor.u32 1.1754944e-38, %v1501
    %v1503 = vsel %vm1500, %v1502, %v1498
    %v1504 = vmul.f32 1.0, %v1503
    %v1505 = vxor.u32 %v1483, 2147483648
    %v1506 = vmul.f32 %v1505, 1.442695
    %v1507 = vpow.pop %v1506
    %v1508 = vadd.f32 %v1507, 1.0
    %v1509 = vrcp.pop %v1508
    %v1510 = vmul.f32 %v1508, %v1509
    %v1511 = vsub.f32 1.0, %v1510
    %v1512 = vmul.f32 %v1509, %v1511
    %v1513 = vadd.f32 %v1509, %v1512
    %vm1514 = vweird.f32 %v1508
    %vm1515 = vweird.f32 %v1509
    %vm1516 = vmor %vm1514, %vm1515
    %v1517 = vsel %vm1516, %v1509, %v1513
    %v1518 = vand.u32 2147483647, %v1508
    %vm1519 = vcmp.eq.f32.partialorder %v1518, 8.507059e+37
    %v1520 = vand.u32 %v1508, 2147483648
    %v1521 = vor.u32 1.1754944e-38, %v1520
    %v1522 = vsel %vm1519, %v1521, %v1517
    %v1523 = vmul.f32 1.0, %v1522
    %v1524 = vtanh.pop %v1484
    %v1525 = vxor.u32 %v1485, 2147483648
    %v1526 = vmul.f32 %v1525, 1.442695
    %v1527 = vpow.pop %v1526
    %v1528 = vadd.f32 %v1527, 1.0
    %v1529 = vrcp.pop %v1528
    %v1530 = vmul.f32 %v1528, %v1529
    %v1531 = vsub.f32 1.0, %v1530
    %v1532 = vmul.f32 %v1529, %v1531
    %v1533 = vadd.f32 %v1529, %v1532
    %vm1534 = vweird.f32 %v1528
    %vm1535 = vweird.f32 %v1529
    %vm1536 = vmor %vm1534, %vm1535
    %v1537 = vsel %vm1536, %v1529, %v1533
    %v1538 = vand.u32 2147483647, %v1528
    %vm1539 = vcmp.eq.f32.partialorder %v1538, 8.507059e+37
    %v1540 = vand.u32 %v1528, 2147483648
    %v1541 = vor.u32 1.1754944e-38, %v1540
    %v1542 = vsel %vm1539, %v1541, %v1537
    %v1543 = vmul.f32 1.0, %v1542
    %v1544 = vmul.f32 %v1523, %v1417
    %v1545 = vmul.f32 %v1504, %v1524
    %v1546 = vadd.f32 %v1544, %v1545
    %v1547 = vtanh.pop %v1546
    %v1548 = vmul.f32 %v1543, %v1547
    %s1549 = scalar_lea.vmem [#allocation2], 56
    %1550 = vst [vmem:[%s1549] sm:$0xff] %v1548
    %1551 = vst [vmem:[%s10] sm:$0xff] %v1548
    %v1552 = vld [vmem:[#allocation6] sm:$0xff]
    %v1553 = vld [vmem:[#allocation6 + $0x8] sm:$0xff]
    %v1554 = vld [vmem:[#allocation6 + $0x10] sm:$0xff]
    %v1555 = vld [vmem:[#allocation6 + $0x18] sm:$0xff]
    %v1556 = vld [vmem:[#allocation6 + $0x20] sm:$0xff]
    %v1557 = vld [vmem:[#allocation6 + $0x28] sm:$0xff]
    %v1558 = vld [vmem:[#allocation6 + $0x30] sm:$0xff]
    %v1559 = vld [vmem:[#allocation6 + $0x38] sm:$0xff]
    %v1560 = vld [vmem:[#allocation6 + $0x40] sm:$0xff]
    %v1561 = vld [vmem:[#allocation6 + $0x48] sm:$0xff]
    %v1562 = vld [vmem:[#allocation6 + $0x50] sm:$0xff]
    %v1563 = vld [vmem:[#allocation6 + $0x58] sm:$0xff]
    %v1564 = vld [vmem:[#allocation6 + $0x60] sm:$0xff]
    %v1565 = vld [vmem:[#allocation6 + $0x68] sm:$0xff]
    %v1566 = vld [vmem:[#allocation6 + $0x70] sm:$0xff]
    %v1567 = vld [vmem:[#allocation6 + $0x78] sm:$0xff]
    %v1568 = vld [vmem:[#allocation6 + $0x80] sm:$0xff]
    %v1569 = vld [vmem:[#allocation6 + $0x88] sm:$0xff]
    %v1570 = vld [vmem:[#allocation6 + $0x90] sm:$0xff]
    %v1571 = vld [vmem:[#allocation6 + $0x98] sm:$0xff]
    %v1572 = vld [vmem:[#allocation6 + $0xa0] sm:$0xff]
    %v1573 = vld [vmem:[#allocation6 + $0xa8] sm:$0xff]
    %v1574 = vld [vmem:[#allocation6 + $0xb0] sm:$0xff]
    %v1575 = vld [vmem:[#allocation6 + $0xb8] sm:$0xff]
    %v1576 = vld [vmem:[#allocation6 + $0xc0] sm:$0xff]
    %v1577 = vld [vmem:[#allocation6 + $0xc8] sm:$0xff]
    %v1578 = vld [vmem:[#allocation6 + $0xd0] sm:$0xff]
    %v1579 = vld [vmem:[#allocation6 + $0xd8] sm:$0xff]
    %v1580 = vld [vmem:[#allocation6 + $0xe0] sm:$0xff]
    %v1581 = vld [vmem:[#allocation6 + $0xe8] sm:$0xff]
    %v1582 = vld [vmem:[#allocation6 + $0xf0] sm:$0xff]
    %v1583 = vld [vmem:[#allocation6 + $0xf8] sm:$0xff]
    %v1584 = vld [vmem:[#allocation8] sm:$0xff]
    %v1585 = vld [vmem:[#allocation8 + $0x8] sm:$0xff]
    %v1586 = vld [vmem:[#allocation8 + $0x10] sm:$0xff]
    %v1587 = vld [vmem:[#allocation8 + $0x18] sm:$0xff]
    %v1588 = vld [vmem:[#allocation8 + $0x20] sm:$0xff]
    %v1589 = vld [vmem:[#allocation8 + $0x28] sm:$0xff]
    %v1590 = vld [vmem:[#allocation8 + $0x30] sm:$0xff]
    %v1591 = vld [vmem:[#allocation8 + $0x38] sm:$0xff]
    %v1592 = vld [vmem:[#allocation8 + $0x40] sm:$0xff]
    %v1593 = vld [vmem:[#allocation8 + $0x48] sm:$0xff]
    %v1594 = vld [vmem:[#allocation8 + $0x50] sm:$0xff]
    %v1595 = vld [vmem:[#allocation8 + $0x58] sm:$0xff]
    %v1596 = vld [vmem:[#allocation8 + $0x60] sm:$0xff]
    %v1597 = vld [vmem:[#allocation8 + $0x68] sm:$0xff]
    %v1598 = vld [vmem:[#allocation8 + $0x70] sm:$0xff]
    %v1599 = vld [vmem:[#allocation8 + $0x78] sm:$0xff]
    %v1600 = vld [vmem:[#allocation8 + $0x80] sm:$0xff]
    %v1601 = vld [vmem:[#allocation8 + $0x88] sm:$0xff]
    %v1602 = vld [vmem:[#allocation8 + $0x90] sm:$0xff]
    %v1603 = vld [vmem:[#allocation8 + $0x98] sm:$0xff]
    %v1604 = vld [vmem:[#allocation8 + $0xa0] sm:$0xff]
    %v1605 = vld [vmem:[#allocation8 + $0xa8] sm:$0xff]
    %v1606 = vld [vmem:[#allocation8 + $0xb0] sm:$0xff]
    %v1607 = vld [vmem:[#allocation8 + $0xb8] sm:$0xff]
    %v1608 = vld [vmem:[#allocation8 + $0xc0] sm:$0xff]
    %v1609 = vld [vmem:[#allocation8 + $0xc8] sm:$0xff]
    %v1610 = vld [vmem:[#allocation8 + $0xd0] sm:$0xff]
    %v1611 = vld [vmem:[#allocation8 + $0xd8] sm:$0xff]
    %v1612 = vld [vmem:[#allocation8 + $0xe0] sm:$0xff]
    %v1613 = vld [vmem:[#allocation8 + $0xe8] sm:$0xff]
    %v1614 = vld [vmem:[#allocation8 + $0xf0] sm:$0xff]
    %v1615 = vld [vmem:[#allocation8 + $0xf8] sm:$0xff]
    %v1616 = vld [vmem:[%s6] sm:$0xf]
    %v1617 = vld [vmem:[#allocation2] sm:$0xff]
    %v1618 = vld [vmem:[#allocation2 + $0x8] sm:$0xff]
    %v1619 = vld [vmem:[#allocation2 + $0x10] sm:$0xff]
    %v1620 = vld [vmem:[#allocation2 + $0x18] sm:$0xff]
    %v1621 = vld [vmem:[#allocation2 + $0x20] sm:$0xff]
    %v1622 = vld [vmem:[#allocation2 + $0x28] sm:$0xff]
    %v1623 = vld [vmem:[#allocation2 + $0x30] sm:$0xff]
    %v1624 = vld [vmem:[#allocation2 + $0x38] sm:$0xff]
    %v1625 = vpack.c.bf16 %v1618, %v1617
    %v1626 = vpack.c.bf16 %v1620, %v1619
    %v1627 = vpack.c.bf16 %v1622, %v1621
    %v1628 = vpack.c.bf16 %v1624, %v1623
    %v1630 = vperm.slane %v1616, 0
    %v1631 = vperm.slane %v1616, 1
    %v1632 = vperm.slane %v1616, 2
    %v1633 = vperm.slane %v1616, 3
    %v1670 = vunpack.c.l.b16 %v1552
    %v1671 = vunpack.c.h.b16 %v1552
    %v1672 = vunpack.c.l.b16 %v1553
    %v1673 = vunpack.c.h.b16 %v1553
    %v1674 = vunpack.c.l.b16 %v1554
    %v1675 = vunpack.c.h.b16 %v1554
    %v1676 = vunpack.c.l.b16 %v1555
    %v1677 = vunpack.c.h.b16 %v1555
    %v1678 = vunpack.c.l.b16 %v1556
    %v1679 = vunpack.c.h.b16 %v1556
    %v1680 = vunpack.c.l.b16 %v1557
    %v1681 = vunpack.c.h.b16 %v1557
    %v1682 = vunpack.c.l.b16 %v1558
    %v1683 = vunpack.c.h.b16 %v1558
    %v1684 = vunpack.c.l.b16 %v1559
    %v1685 = vunpack.c.h.b16 %v1559
    %v1686 = vunpack.c.l.b16 %v1560
    %v1687 = vunpack.c.h.b16 %v1560
    %v1688 = vunpack.c.l.b16 %v1561
    %v1689 = vunpack.c.h.b16 %v1561
    %v1690 = vunpack.c.l.b16 %v1562
    %v1691 = vunpack.c.h.b16 %v1562
    %v1692 = vunpack.c.l.b16 %v1563
    %v1693 = vunpack.c.h.b16 %v1563
    %v1694 = vunpack.c.l.b16 %v1564
    %v1695 = vunpack.c.h.b16 %v1564
    %v1696 = vunpack.c.l.b16 %v1565
    %v1697 = vunpack.c.h.b16 %v1565
    %v1698 = vunpack.c.l.b16 %v1566
    %v1699 = vunpack.c.h.b16 %v1566
    %v1700 = vunpack.c.l.b16 %v1567
    %v1701 = vunpack.c.h.b16 %v1567
    %v1702 = vunpack.c.l.b16 %v1568
    %v1703 = vunpack.c.h.b16 %v1568
    %v1704 = vunpack.c.l.b16 %v1569
    %v1705 = vunpack.c.h.b16 %v1569
    %v1706 = vunpack.c.l.b16 %v1570
    %v1707 = vunpack.c.h.b16 %v1570
    %v1708 = vunpack.c.l.b16 %v1571
    %v1709 = vunpack.c.h.b16 %v1571
    %v1710 = vunpack.c.l.b16 %v1572
    %v1711 = vunpack.c.h.b16 %v1572
    %v1712 = vunpack.c.l.b16 %v1573
    %v1713 = vunpack.c.h.b16 %v1573
    %v1714 = vunpack.c.l.b16 %v1574
    %v1715 = vunpack.c.h.b16 %v1574
    %v1716 = vunpack.c.l.b16 %v1575
    %v1717 = vunpack.c.h.b16 %v1575
    %v1718 = vunpack.c.l.b16 %v1576
    %v1719 = vunpack.c.h.b16 %v1576
    %v1720 = vunpack.c.l.b16 %v1577
    %v1721 = vunpack.c.h.b16 %v1577
    %v1722 = vunpack.c.l.b16 %v1578
    %v1723 = vunpack.c.h.b16 %v1578
    %v1724 = vunpack.c.l.b16 %v1579
    %v1725 = vunpack.c.h.b16 %v1579
    %v1726 = vunpack.c.l.b16 %v1580
    %v1727 = vunpack.c.h.b16 %v1580
    %v1728 = vunpack.c.l.b16 %v1581
    %v1729 = vunpack.c.h.b16 %v1581
    %v1730 = vunpack.c.l.b16 %v1582
    %v1731 = vunpack.c.h.b16 %v1582
    %v1732 = vunpack.c.l.b16 %v1583
    %v1733 = vunpack.c.h.b16 %v1583
    %v1734 = vpack.c.b16 %v1674, %v1670
    %v1735 = vpack.c.b16 %v1675, %v1671
    %v1736 = vpack.c.b16 %v1676, %v1672
    %v1737 = vpack.c.b16 %v1677, %v1673
    %v1738 = vpack.c.b16 %v1682, %v1678
    %v1739 = vpack.c.b16 %v1683, %v1679
    %v1740 = vpack.c.b16 %v1684, %v1680
    %v1741 = vpack.c.b16 %v1685, %v1681
    %v1742 = vpack.c.b16 %v1690, %v1686
    %v1743 = vpack.c.b16 %v1691, %v1687
    %v1744 = vpack.c.b16 %v1692, %v1688
    %v1745 = vpack.c.b16 %v1693, %v1689
    %v1746 = vpack.c.b16 %v1698, %v1694
    %v1747 = vpack.c.b16 %v1699, %v1695
    %v1748 = vpack.c.b16 %v1700, %v1696
    %v1749 = vpack.c.b16 %v1701, %v1697
    %v1750 = vpack.c.b16 %v1706, %v1702
    %v1751 = vpack.c.b16 %v1707, %v1703
    %v1752 = vpack.c.b16 %v1708, %v1704
    %v1753 = vpack.c.b16 %v1709, %v1705
    %v1754 = vpack.c.b16 %v1714, %v1710
    %v1755 = vpack.c.b16 %v1715, %v1711
    %v1756 = vpack.c.b16 %v1716, %v1712
    %v1757 = vpack.c.b16 %v1717, %v1713
    %v1758 = vpack.c.b16 %v1722, %v1718
    %v1759 = vpack.c.b16 %v1723, %v1719
    %v1760 = vpack.c.b16 %v1724, %v1720
    %v1761 = vpack.c.b16 %v1725, %v1721
    %v1762 = vpack.c.b16 %v1730, %v1726
    %v1763 = vpack.c.b16 %v1731, %v1727
    %v1764 = vpack.c.b16 %v1732, %v1728
    %v1765 = vpack.c.b16 %v1733, %v1729
    %1798 = vmatpush.bf16.msra.mxu0 %v1762
    %1799 = vmatpush.bf16.msra.mxu0 %v1758
    %1800 = vmatpush.bf16.msra.mxu0 %v1754
    %1801 = vmatpush.bf16.msra.mxu0 %v1750
    %1802 = vmatpush.bf16.msra.mxu0 %v1746
    %1803 = vmatpush.bf16.msra.mxu0 %v1742
    %1804 = vmatpush.bf16.msra.mxu0 %v1738
    %1805 = vmatpush.bf16.msra.mxu0 %v1734
    %1806 = vmatmul.bf16.gmra.mxu0 %v1625
    %v1807 = vpop.f32.mrf.mxu0
    %v1808 = vadd.f32 %v1630, %v1807
    %v1809 = vpop.f32.mrf.mxu0
    %v1810 = vadd.f32 %v1630, %v1809
    %1811 = vmatmul.bf16.gmra.mxu0 %v1626
    %v1812 = vpop.f32.mrf.mxu0
    %v1813 = vadd.f32 %v1630, %v1812
    %v1814 = vpop.f32.mrf.mxu0
    %v1815 = vadd.f32 %v1630, %v1814
    %1816 = vmatmul.bf16.gmra.mxu0 %v1627
    %v1817 = vpop.f32.mrf.mxu0
    %v1818 = vadd.f32 %v1630, %v1817
    %v1819 = vpop.f32.mrf.mxu0
    %v1820 = vadd.f32 %v1630, %v1819
    %1821 = vmatmul.bf16.gmra.mxu0 %v1628
    %v1822 = vpop.f32.mrf.mxu0
    %v1823 = vadd.f32 %v1630, %v1822
    %v1824 = vpop.f32.mrf.mxu0
    %v1825 = vadd.f32 %v1630, %v1824
    %1826 = vdwg.mxu0
    %1827 = vmatpush.bf16.msra.mxu0 %v1763
    %1828 = vmatpush.bf16.msra.mxu0 %v1759
    %1829 = vmatpush.bf16.msra.mxu0 %v1755
    %1830 = vmatpush.bf16.msra.mxu0 %v1751
    %1831 = vmatpush.bf16.msra.mxu0 %v1747
    %1832 = vmatpush.bf16.msra.mxu0 %v1743
    %1833 = vmatpush.bf16.msra.mxu0 %v1739
    %1834 = vmatpush.bf16.msra.mxu0 %v1735
    %1835 = vmatmul.bf16.gmra.mxu0 %v1625
    %v1836 = vpop.f32.mrf.mxu0
    %v1837 = vadd.f32 %v1631, %v1836
    %v1838 = vpop.f32.mrf.mxu0
    %v1839 = vadd.f32 %v1631, %v1838
    %1840 = vmatmul.bf16.gmra.mxu0 %v1626
    %v1841 = vpop.f32.mrf.mxu0
    %v1842 = vadd.f32 %v1631, %v1841
    %v1843 = vpop.f32.mrf.mxu0
    %v1844 = vadd.f32 %v1631, %v1843
    %1845 = vmatmul.bf16.gmra.mxu0 %v1627
    %v1846 = vpop.f32.mrf.mxu0
    %v1847 = vadd.f32 %v1631, %v1846
    %v1848 = vpop.f32.mrf.mxu0
    %v1849 = vadd.f32 %v1631, %v1848
    %1850 = vmatmul.bf16.gmra.mxu0 %v1628
    %v1851 = vpop.f32.mrf.mxu0
    %v1852 = vadd.f32 %v1631, %v1851
    %v1853 = vpop.f32.mrf.mxu0
    %v1854 = vadd.f32 %v1631, %v1853
    %1855 = vdwg.mxu0
    %1856 = vmatpush.bf16.msra.mxu0 %v1764
    %1857 = vmatpush.bf16.msra.mxu0 %v1760
    %1858 = vmatpush.bf16.msra.mxu0 %v1756
    %1859 = vmatpush.bf16.msra.mxu0 %v1752
    %1860 = vmatpush.bf16.msra.mxu0 %v1748
    %1861 = vmatpush.bf16.msra.mxu0 %v1744
    %1862 = vmatpush.bf16.msra.mxu0 %v1740
    %1863 = vmatpush.bf16.msra.mxu0 %v1736
    %1864 = vmatmul.bf16.gmra.mxu0 %v1625
    %v1865 = vpop.f32.mrf.mxu0
    %v1866 = vadd.f32 %v1632, %v1865
    %v1867 = vpop.f32.mrf.mxu0
    %v1868 = vadd.f32 %v1632, %v1867
    %1869 = vmatmul.bf16.gmra.mxu0 %v1626
    %v1870 = vpop.f32.mrf.mxu0
    %v1871 = vadd.f32 %v1632, %v1870
    %v1872 = vpop.f32.mrf.mxu0
    %v1873 = vadd.f32 %v1632, %v1872
    %1874 = vmatmul.bf16.gmra.mxu0 %v1627
    %v1875 = vpop.f32.mrf.mxu0
    %v1876 = vadd.f32 %v1632, %v1875
    %v1877 = vpop.f32.mrf.mxu0
    %v1878 = vadd.f32 %v1632, %v1877
    %1879 = vmatmul.bf16.gmra.mxu0 %v1628
    %v1880 = vpop.f32.mrf.mxu0
    %v1881 = vadd.f32 %v1632, %v1880
    %v1882 = vpop.f32.mrf.mxu0
    %v1883 = vadd.f32 %v1632, %v1882
    %1884 = vdwg.mxu0
    %1885 = vmatpush.bf16.msra.mxu0 %v1765
    %1886 = vmatpush.bf16.msra.mxu0 %v1761
    %1887 = vmatpush.bf16.msra.mxu0 %v1757
    %1888 = vmatpush.bf16.msra.mxu0 %v1753
    %1889 = vmatpush.bf16.msra.mxu0 %v1749
    %1890 = vmatpush.bf16.msra.mxu0 %v1745
    %1891 = vmatpush.bf16.msra.mxu0 %v1741
    %1892 = vmatpush.bf16.msra.mxu0 %v1737
    %1893 = vmatmul.bf16.gmra.mxu0 %v1625
    %v1894 = vpop.f32.mrf.mxu0
    %v1895 = vadd.f32 %v1633, %v1894
    %v1896 = vpop.f32.mrf.mxu0
    %v1897 = vadd.f32 %v1633, %v1896
    %1898 = vmatmul.bf16.gmra.mxu0 %v1626
    %v1899 = vpop.f32.mrf.mxu0
    %v1900 = vadd.f32 %v1633, %v1899
    %v1901 = vpop.f32.mrf.mxu0
    %v1902 = vadd.f32 %v1633, %v1901
    %1903 = vmatmul.bf16.gmra.mxu0 %v1627
    %v1904 = vpop.f32.mrf.mxu0
    %v1905 = vadd.f32 %v1633, %v1904
    %v1906 = vpop.f32.mrf.mxu0
    %v1907 = vadd.f32 %v1633, %v1906
    %1908 = vmatmul.bf16.gmra.mxu0 %v1628
    %v1909 = vpop.f32.mrf.mxu0
    %v1910 = vadd.f32 %v1633, %v1909
    %v1911 = vpop.f32.mrf.mxu0
    %v1912 = vadd.f32 %v1633, %v1911
    %1913 = vdwg.mxu0
    %1914 = vst [vmem:[#allocation3] sm:$0xff] %v1808
    %1915 = vst [vmem:[#allocation3 + $0x8] sm:$0xff] %v1837
    %1916 = vst [vmem:[#allocation3 + $0x10] sm:$0xff] %v1866
    %1917 = vst [vmem:[#allocation3 + $0x18] sm:$0xff] %v1895
    %1918 = vst [vmem:[#allocation3 + $0x20] sm:$0xff] %v1810
    %1919 = vst [vmem:[#allocation3 + $0x28] sm:$0xff] %v1839
    %1920 = vst [vmem:[#allocation3 + $0x30] sm:$0xff] %v1868
    %1921 = vst [vmem:[#allocation3 + $0x38] sm:$0xff] %v1897
    %1922 = vst [vmem:[#allocation3 + $0x40] sm:$0xff] %v1813
    %1923 = vst [vmem:[#allocation3 + $0x48] sm:$0xff] %v1842
    %1924 = vst [vmem:[#allocation3 + $0x50] sm:$0xff] %v1871
    %1925 = vst [vmem:[#allocation3 + $0x58] sm:$0xff] %v1900
    %1926 = vst [vmem:[#allocation3 + $0x60] sm:$0xff] %v1815
    %1927 = vst [vmem:[#allocation3 + $0x68] sm:$0xff] %v1844
    %1928 = vst [vmem:[#allocation3 + $0x70] sm:$0xff] %v1873
    %1929 = vst [vmem:[#allocation3 + $0x78] sm:$0xff] %v1902
    %1930 = vst [vmem:[#allocation3 + $0x80] sm:$0xff] %v1818
    %1931 = vst [vmem:[#allocation3 + $0x88] sm:$0xff] %v1847
    %1932 = vst [vmem:[#allocation3 + $0x90] sm:$0xff] %v1876
    %1933 = vst [vmem:[#allocation3 + $0x98] sm:$0xff] %v1905
    %1934 = vst [vmem:[#allocation3 + $0xa0] sm:$0xff] %v1820
    %1935 = vst [vmem:[#allocation3 + $0xa8] sm:$0xff] %v1849
    %1936 = vst [vmem:[#allocation3 + $0xb0] sm:$0xff] %v1878
    %1937 = vst [vmem:[#allocation3 + $0xb8] sm:$0xff] %v1907
    %1938 = vst [vmem:[#allocation3 + $0xc0] sm:$0xff] %v1823
    %1939 = vst [vmem:[#allocation3 + $0xc8] sm:$0xff] %v1852
    %1940 = vst [vmem:[#allocation3 + $0xd0] sm:$0xff] %v1881
    %1941 = vst [vmem:[#allocation3 + $0xd8] sm:$0xff] %v1910
    %1942 = vst [vmem:[#allocation3 + $0xe0] sm:$0xff] %v1825
    %1943 = vst [vmem:[#allocation3 + $0xe8] sm:$0xff] %v1854
    %1944 = vst [vmem:[#allocation3 + $0xf0] sm:$0xff] %v1883
    %1945 = vst [vmem:[#allocation3 + $0xf8] sm:$0xff] %v1912
    %v1946 = vld [vmem:[%s363] sm:$0xff]
    %v1947 = vld [vmem:[%s363 + $0x8] sm:$0xff]
    %v1948 = vld [vmem:[%s363 + $0x10] sm:$0xff]
    %v1949 = vld [vmem:[%s363 + $0x18] sm:$0xff]
    %v1982 = vunpack.c.l.b16 %v1584
    %v1983 = vunpack.c.h.b16 %v1584
    %v1984 = vunpack.c.l.b16 %v1585
    %v1985 = vunpack.c.h.b16 %v1585
    %v1986 = vunpack.c.l.b16 %v1586
    %v1987 = vunpack.c.h.b16 %v1586
    %v1988 = vunpack.c.l.b16 %v1587
    %v1989 = vunpack.c.h.b16 %v1587
    %v1990 = vunpack.c.l.b16 %v1588
    %v1991 = vunpack.c.h.b16 %v1588
    %v1992 = vunpack.c.l.b16 %v1589
    %v1993 = vunpack.c.h.b16 %v1589
    %v1994 = vunpack.c.l.b16 %v1590
    %v1995 = vunpack.c.h.b16 %v1590
    %v1996 = vunpack.c.l.b16 %v1591
    %v1997 = vunpack.c.h.b16 %v1591
    %v1998 = vunpack.c.l.b16 %v1592
    %v1999 = vunpack.c.h.b16 %v1592
    %v2000 = vunpack.c.l.b16 %v1593
    %v2001 = vunpack.c.h.b16 %v1593
    %v2002 = vunpack.c.l.b16 %v1594
    %v2003 = vunpack.c.h.b16 %v1594
    %v2004 = vunpack.c.l.b16 %v1595
    %v2005 = vunpack.c.h.b16 %v1595
    %v2006 = vunpack.c.l.b16 %v1596
    %v2007 = vunpack.c.h.b16 %v1596
    %v2008 = vunpack.c.l.b16 %v1597
    %v2009 = vunpack.c.h.b16 %v1597
    %v2010 = vunpack.c.l.b16 %v1598
    %v2011 = vunpack.c.h.b16 %v1598
    %v2012 = vunpack.c.l.b16 %v1599
    %v2013 = vunpack.c.h.b16 %v1599
    %v2014 = vunpack.c.l.b16 %v1600
    %v2015 = vunpack.c.h.b16 %v1600
    %v2016 = vunpack.c.l.b16 %v1601
    %v2017 = vunpack.c.h.b16 %v1601
    %v2018 = vunpack.c.l.b16 %v1602
    %v2019 = vunpack.c.h.b16 %v1602
    %v2020 = vunpack.c.l.b16 %v1603
    %v2021 = vunpack.c.h.b16 %v1603
    %v2022 = vunpack.c.l.b16 %v1604
    %v2023 = vunpack.c.h.b16 %v1604
    %v2024 = vunpack.c.l.b16 %v1605
    %v2025 = vunpack.c.h.b16 %v1605
    %v2026 = vunpack.c.l.b16 %v1606
    %v2027 = vunpack.c.h.b16 %v1606
    %v2028 = vunpack.c.l.b16 %v1607
    %v2029 = vunpack.c.h.b16 %v1607
    %v2030 = vunpack.c.l.b16 %v1608
    %v2031 = vunpack.c.h.b16 %v1608
    %v2032 = vunpack.c.l.b16 %v1609
    %v2033 = vunpack.c.h.b16 %v1609
    %v2034 = vunpack.c.l.b16 %v1610
    %v2035 = vunpack.c.h.b16 %v1610
    %v2036 = vunpack.c.l.b16 %v1611
    %v2037 = vunpack.c.h.b16 %v1611
    %v2038 = vunpack.c.l.b16 %v1612
    %v2039 = vunpack.c.h.b16 %v1612
    %v2040 = vunpack.c.l.b16 %v1613
    %v2041 = vunpack.c.h.b16 %v1613
    %v2042 = vunpack.c.l.b16 %v1614
    %v2043 = vunpack.c.h.b16 %v1614
    %v2044 = vunpack.c.l.b16 %v1615
    %v2045 = vunpack.c.h.b16 %v1615
    %v2046 = vpack.c.b16 %v1986, %v1982
    %v2047 = vpack.c.b16 %v1987, %v1983
    %v2048 = vpack.c.b16 %v1988, %v1984
    %v2049 = vpack.c.b16 %v1989, %v1985
    %v2050 = vpack.c.b16 %v1994, %v1990
    %v2051 = vpack.c.b16 %v1995, %v1991
    %v2052 = vpack.c.b16 %v1996, %v1992
    %v2053 = vpack.c.b16 %v1997, %v1993
    %v2054 = vpack.c.b16 %v2002, %v1998
    %v2055 = vpack.c.b16 %v2003, %v1999
    %v2056 = vpack.c.b16 %v2004, %v2000
    %v2057 = vpack.c.b16 %v2005, %v2001
    %v2058 = vpack.c.b16 %v2010, %v2006
    %v2059 = vpack.c.b16 %v2011, %v2007
    %v2060 = vpack.c.b16 %v2012, %v2008
    %v2061 = vpack.c.b16 %v2013, %v2009
    %v2062 = vpack.c.b16 %v2018, %v2014
    %v2063 = vpack.c.b16 %v2019, %v2015
    %v2064 = vpack.c.b16 %v2020, %v2016
    %v2065 = vpack.c.b16 %v2021, %v2017
    %v2066 = vpack.c.b16 %v2026, %v2022
    %v2067 = vpack.c.b16 %v2027, %v2023
    %v2068 = vpack.c.b16 %v2028, %v2024
    %v2069 = vpack.c.b16 %v2029, %v2025
    %v2070 = vpack.c.b16 %v2034, %v2030
    %v2071 = vpack.c.b16 %v2035, %v2031
    %v2072 = vpack.c.b16 %v2036, %v2032
    %v2073 = vpack.c.b16 %v2037, %v2033
    %v2074 = vpack.c.b16 %v2042, %v2038
    %v2075 = vpack.c.b16 %v2043, %v2039
    %v2076 = vpack.c.b16 %v2044, %v2040
    %v2077 = vpack.c.b16 %v2045, %v2041
    %2110 = vmatpush.bf16.msra.mxu0 %v2074
    %2111 = vmatpush.bf16.msra.mxu0 %v2070
    %2112 = vmatpush.bf16.msra.mxu0 %v2066
    %2113 = vmatpush.bf16.msra.mxu0 %v2062
    %2114 = vmatpush.bf16.msra.mxu0 %v2058
    %2115 = vmatpush.bf16.msra.mxu0 %v2054
    %2116 = vmatpush.bf16.msra.mxu0 %v2050
    %2117 = vmatpush.bf16.msra.mxu0 %v2046
    %2118 = vmatmul.bf16.gmra.mxu0 0
    %v2119 = vpop.f32.mrf.mxu0
    %v2120 = vadd.f32 0.0, %v2119
    %v2121 = vpop.f32.mrf.mxu0
    %2122 = vdwg.mxu0
    %2123 = vmatpush.bf16.msra.mxu0 %v2075
    %2124 = vmatpush.bf16.msra.mxu0 %v2071
    %2125 = vmatpush.bf16.msra.mxu0 %v2067
    %2126 = vmatpush.bf16.msra.mxu0 %v2063
    %2127 = vmatpush.bf16.msra.mxu0 %v2059
    %2128 = vmatpush.bf16.msra.mxu0 %v2055
    %2129 = vmatpush.bf16.msra.mxu0 %v2051
    %2130 = vmatpush.bf16.msra.mxu0 %v2047
    %2131 = vmatmul.bf16.gmra.mxu0 0
    %v2132 = vpop.f32.mrf.mxu0
    %v2133 = vadd.f32 0.0, %v2132
    %v2134 = vpop.f32.mrf.mxu0
    %2135 = vdwg.mxu0
    %2136 = vmatpush.bf16.msra.mxu0 %v2076
    %2137 = vmatpush.bf16.msra.mxu0 %v2072
    %2138 = vmatpush.bf16.msra.mxu0 %v2068
    %2139 = vmatpush.bf16.msra.mxu0 %v2064
    %2140 = vmatpush.bf16.msra.mxu0 %v2060
    %2141 = vmatpush.bf16.msra.mxu0 %v2056
    %2142 = vmatpush.bf16.msra.mxu0 %v2052
    %2143 = vmatpush.bf16.msra.mxu0 %v2048
    %2144 = vmatmul.bf16.gmra.mxu0 0
    %v2145 = vpop.f32.mrf.mxu0
    %v2146 = vadd.f32 0.0, %v2145
    %v2147 = vpop.f32.mrf.mxu0
    %2148 = vdwg.mxu0
    %2149 = vmatpush.bf16.msra.mxu0 %v2077
    %2150 = vmatpush.bf16.msra.mxu0 %v2073
    %2151 = vmatpush.bf16.msra.mxu0 %v2069
    %2152 = vmatpush.bf16.msra.mxu0 %v2065
    %2153 = vmatpush.bf16.msra.mxu0 %v2061
    %2154 = vmatpush.bf16.msra.mxu0 %v2057
    %2155 = vmatpush.bf16.msra.mxu0 %v2053
    %2156 = vmatpush.bf16.msra.mxu0 %v2049
    %2157 = vmatmul.bf16.gmra.mxu0 0
    %v2158 = vpop.f32.mrf.mxu0
    %v2159 = vadd.f32 0.0, %v2158
    %v2160 = vpop.f32.mrf.mxu0
    %2161 = vdwg.mxu0
    %v2162 = vadd.f32 %v1946, %v2120
    %v2163 = vadd.f32 %v1947, %v2133
    %v2164 = vadd.f32 %v1948, %v2146
    %v2165 = vadd.f32 %v1949, %v2159
    %v2166 = vxor.u32 %v2162, 2147483648
    %v2167 = vmul.f32 %v2166, 1.442695
    %v2168 = vpow.pop %v2167
    %v2169 = vadd.f32 %v2168, 1.0
    %v2170 = vrcp.pop %v2169
    %v2171 = vmul.f32 %v2169, %v2170
    %v2172 = vsub.f32 1.0, %v2171
    %v2173 = vmul.f32 %v2170, %v2172
    %v2174 = vadd.f32 %v2170, %v2173
    %vm2175 = vweird.f32 %v2169
    %vm2176 = vweird.f32 %v2170
    %vm2177 = vmor %vm2175, %vm2176
    %v2178 = vsel %vm2177, %v2170, %v2174
    %v2179 = vand.u32 2147483647, %v2169
    %vm2180 = vcmp.eq.f32.partialorder %v2179, 8.507059e+37
    %v2181 = vand.u32 %v2169, 2147483648
    %v2182 = vor.u32 1.1754944e-38, %v2181
    %v2183 = vsel %vm2180, %v2182, %v2178
    %v2184 = vmul.f32 1.0, %v2183
    %v2185 = vxor.u32 %v2163, 2147483648
    %v2186 = vmul.f32 %v2185, 1.442695
    %v2187 = vpow.pop %v2186
    %v2188 = vadd.f32 %v2187, 1.0
    %v2189 = vrcp.pop %v2188
    %v2190 = vmul.f32 %v2188, %v2189
    %v2191 = vsub.f32 1.0, %v2190
    %v2192 = vmul.f32 %v2189, %v2191
    %v2193 = vadd.f32 %v2189, %v2192
    %vm2194 = vweird.f32 %v2188
    %vm2195 = vweird.f32 %v2189
    %vm2196 = vmor %vm2194, %vm2195
    %v2197 = vsel %vm2196, %v2189, %v2193
    %v2198 = vand.u32 2147483647, %v2188
    %vm2199 = vcmp.eq.f32.partialorder %v2198, 8.507059e+37
    %v2200 = vand.u32 %v2188, 2147483648
    %v2201 = vor.u32 1.1754944e-38, %v2200
    %v2202 = vsel %vm2199, %v2201, %v2197
    %v2203 = vmul.f32 1.0, %v2202
    %v2204 = vtanh.pop %v2164
    %v2205 = vxor.u32 %v2165, 2147483648
    %v2206 = vmul.f32 %v2205, 1.442695
    %v2207 = vpow.pop %v2206
    %v2208 = vadd.f32 %v2207, 1.0
    %v2209 = vrcp.pop %v2208
    %v2210 = vmul.f32 %v2208, %v2209
    %v2211 = vsub.f32 1.0, %v2210
    %v2212 = vmul.f32 %v2209, %v2211
    %v2213 = vadd.f32 %v2209, %v2212
    %vm2214 = vweird.f32 %v2208
    %vm2215 = vweird.f32 %v2209
    %vm2216 = vmor %vm2214, %vm2215
    %v2217 = vsel %vm2216, %v2209, %v2213
    %v2218 = vand.u32 2147483647, %v2208
    %vm2219 = vcmp.eq.f32.partialorder %v2218, 8.507059e+37
    %v2220 = vand.u32 %v2208, 2147483648
    %v2221 = vor.u32 1.1754944e-38, %v2220
    %v2222 = vsel %vm2219, %v2221, %v2217
    %v2223 = vmul.f32 1.0, %v2222
    %v2224 = vmul.f32 %v2203, 0.0
    %v2225 = vmul.f32 %v2184, %v2204
    %v2226 = vadd.f32 %v2224, %v2225
    %v2227 = vtanh.pop %v2226
    %v2228 = vmul.f32 %v2223, %v2227
    %v2229 = vld [vmem:[%s650] sm:$0xff]
    %v2230 = vld [vmem:[%s650 + $0x8] sm:$0xff]
    %v2231 = vld [vmem:[%s650 + $0x10] sm:$0xff]
    %v2232 = vld [vmem:[%s650 + $0x18] sm:$0xff]
    %v2233 = vpack.c.bf16 %v2228, %v2228
    %2234 = vmatpush.bf16.msra.mxu0 %v2074
    %2235 = vmatpush.bf16.msra.mxu0 %v2070
    %2236 = vmatpush.bf16.msra.mxu0 %v2066
    %2237 = vmatpush.bf16.msra.mxu0 %v2062
    %2238 = vmatpush.bf16.msra.mxu0 %v2058
    %2239 = vmatpush.bf16.msra.mxu0 %v2054
    %2240 = vmatpush.bf16.msra.mxu0 %v2050
    %2241 = vmatpush.bf16.msra.mxu0 %v2046
    %2242 = vmatmul.bf16.gmra.mxu0 %v2233
    %v2243 = vpop.f32.mrf.mxu0
    %v2244 = vadd.f32 0.0, %v2243
    %v2245 = vpop.f32.mrf.mxu0
    %2246 = vdwg.mxu0
    %2247 = vmatpush.bf16.msra.mxu0 %v2075
    %2248 = vmatpush.bf16.msra.mxu0 %v2071
    %2249 = vmatpush.bf16.msra.mxu0 %v2067
    %2250 = vmatpush.bf16.msra.mxu0 %v2063
    %2251 = vmatpush.bf16.msra.mxu0 %v2059
    %2252 = vmatpush.bf16.msra.mxu0 %v2055
    %2253 = vmatpush.bf16.msra.mxu0 %v2051
    %2254 = vmatpush.bf16.msra.mxu0 %v2047
    %2255 = vmatmul.bf16.gmra.mxu0 %v2233
    %v2256 = vpop.f32.mrf.mxu0
    %v2257 = vadd.f32 0.0, %v2256
    %v2258 = vpop.f32.mrf.mxu0
    %2259 = vdwg.mxu0
    %2260 = vmatpush.bf16.msra.mxu0 %v2076
    %2261 = vmatpush.bf16.msra.mxu0 %v2072
    %2262 = vmatpush.bf16.msra.mxu0 %v2068
    %2263 = vmatpush.bf16.msra.mxu0 %v2064
    %2264 = vmatpush.bf16.msra.mxu0 %v2060
    %2265 = vmatpush.bf16.msra.mxu0 %v2056
    %2266 = vmatpush.bf16.msra.mxu0 %v2052
    %2267 = vmatpush.bf16.msra.mxu0 %v2048
    %2268 = vmatmul.bf16.gmra.mxu0 %v2233
    %v2269 = vpop.f32.mrf.mxu0
    %v2270 = vadd.f32 0.0, %v2269
    %v2271 = vpop.f32.mrf.mxu0
    %2272 = vdwg.mxu0
    %2273 = vmatpush.bf16.msra.mxu0 %v2077
    %2274 = vmatpush.bf16.msra.mxu0 %v2073
    %2275 = vmatpush.bf16.msra.mxu0 %v2069
    %2276 = vmatpush.bf16.msra.mxu0 %v2065
    %2277 = vmatpush.bf16.msra.mxu0 %v2061
    %2278 = vmatpush.bf16.msra.mxu0 %v2057
    %2279 = vmatpush.bf16.msra.mxu0 %v2053
    %2280 = vmatpush.bf16.msra.mxu0 %v2049
    %2281 = vmatmul.bf16.gmra.mxu0 %v2233
    %v2282 = vpop.f32.mrf.mxu0
    %v2283 = vadd.f32 0.0, %v2282
    %v2284 = vpop.f32.mrf.mxu0
    %2285 = vdwg.mxu0
    %v2286 = vadd.f32 %v2229, %v2244
    %v2287 = vadd.f32 %v2230, %v2257
    %v2288 = vadd.f32 %v2231, %v2270
    %v2289 = vadd.f32 %v2232, %v2283
    %v2290 = vxor.u32 %v2286, 2147483648
    %v2291 = vmul.f32 %v2290, 1.442695
    %v2292 = vpow.pop %v2291
    %v2293 = vadd.f32 %v2292, 1.0
    %v2294 = vrcp.pop %v2293
    %v2295 = vmul.f32 %v2293, %v2294
    %v2296 = vsub.f32 1.0, %v2295
    %v2297 = vmul.f32 %v2294, %v2296
    %v2298 = vadd.f32 %v2294, %v2297
    %vm2299 = vweird.f32 %v2293
    %vm2300 = vweird.f32 %v2294
    %vm2301 = vmor %vm2299, %vm2300
    %v2302 = vsel %vm2301, %v2294, %v2298
    %v2303 = vand.u32 2147483647, %v2293
    %vm2304 = vcmp.eq.f32.partialorder %v2303, 8.507059e+37
    %v2305 = vand.u32 %v2293, 2147483648
    %v2306 = vor.u32 1.1754944e-38, %v2305
    %v2307 = vsel %vm2304, %v2306, %v2302
    %v2308 = vmul.f32 1.0, %v2307
    %v2309 = vxor.u32 %v2287, 2147483648
    %v2310 = vmul.f32 %v2309, 1.442695
    %v2311 = vpow.pop %v2310
    %v2312 = vadd.f32 %v2311, 1.0
    %v2313 = vrcp.pop %v2312
    %v2314 = vmul.f32 %v2312, %v2313
    %v2315 = vsub.f32 1.0, %v2314
    %v2316 = vmul.f32 %v2313, %v2315
    %v2317 = vadd.f32 %v2313, %v2316
    %vm2318 = vweird.f32 %v2312
    %vm2319 = vweird.f32 %v2313
    %vm2320 = vmor %vm2318, %vm2319
    %v2321 = vsel %vm2320, %v2313, %v2317
    %v2322 = vand.u32 2147483647, %v2312
    %vm2323 = vcmp.eq.f32.partialorder %v2322, 8.507059e+37
    %v2324 = vand.u32 %v2312, 2147483648
    %v2325 = vor.u32 1.1754944e-38, %v2324
    %v2326 = vsel %vm2323, %v2325, %v2321
    %v2327 = vmul.f32 1.0, %v2326
    %v2328 = vtanh.pop %v2288
    %v2329 = vxor.u32 %v2289, 2147483648
    %v2330 = vmul.f32 %v2329, 1.442695
    %v2331 = vpow.pop %v2330
    %v2332 = vadd.f32 %v2331, 1.0
    %v2333 = vrcp.pop %v2332
    %v2334 = vmul.f32 %v2332, %v2333
    %v2335 = vsub.f32 1.0, %v2334
    %v2336 = vmul.f32 %v2333, %v2335
    %v2337 = vadd.f32 %v2333, %v2336
    %vm2338 = vweird.f32 %v2332
    %vm2339 = vweird.f32 %v2333
    %vm2340 = vmor %vm2338, %vm2339
    %v2341 = vsel %vm2340, %v2333, %v2337
    %v2342 = vand.u32 2147483647, %v2332
    %vm2343 = vcmp.eq.f32.partialorder %v2342, 8.507059e+37
    %v2344 = vand.u32 %v2332, 2147483648
    %v2345 = vor.u32 1.1754944e-38, %v2344
    %v2346 = vsel %vm2343, %v2345, %v2341
    %v2347 = vmul.f32 1.0, %v2346
    %v2348 = vmul.f32 %v2327, %v2226
    %v2349 = vmul.f32 %v2308, %v2328
    %v2350 = vadd.f32 %v2348, %v2349
    %v2351 = vtanh.pop %v2350
    %v2352 = vmul.f32 %v2347, %v2351
    %v2353 = vld [vmem:[%s779] sm:$0xff]
    %v2354 = vld [vmem:[%s779 + $0x8] sm:$0xff]
    %v2355 = vld [vmem:[%s779 + $0x10] sm:$0xff]
    %v2356 = vld [vmem:[%s779 + $0x18] sm:$0xff]
    %v2357 = vpack.c.bf16 %v2352, %v2352
    %2358 = vmatpush.bf16.msra.mxu0 %v2074
    %2359 = vmatpush.bf16.msra.mxu0 %v2070
    %2360 = vmatpush.bf16.msra.mxu0 %v2066
    %2361 = vmatpush.bf16.msra.mxu0 %v2062
    %2362 = vmatpush.bf16.msra.mxu0 %v2058
    %2363 = vmatpush.bf16.msra.mxu0 %v2054
    %2364 = vmatpush.bf16.msra.mxu0 %v2050
    %2365 = vmatpush.bf16.msra.mxu0 %v2046
    %2366 = vmatmul.bf16.gmra.mxu0 %v2357
    %v2367 = vpop.f32.mrf.mxu0
    %v2368 = vadd.f32 0.0, %v2367
    %v2369 = vpop.f32.mrf.mxu0
    %2370 = vdwg.mxu0
    %2371 = vmatpush.bf16.msra.mxu0 %v2075
    %2372 = vmatpush.bf16.msra.mxu0 %v2071
    %2373 = vmatpush.bf16.msra.mxu0 %v2067
    %2374 = vmatpush.bf16.msra.mxu0 %v2063
    %2375 = vmatpush.bf16.msra.mxu0 %v2059
    %2376 = vmatpush.bf16.msra.mxu0 %v2055
    %2377 = vmatpush.bf16.msra.mxu0 %v2051
    %2378 = vmatpush.bf16.msra.mxu0 %v2047
    %2379 = vmatmul.bf16.gmra.mxu0 %v2357
    %v2380 = vpop.f32.mrf.mxu0
    %v2381 = vadd.f32 0.0, %v2380
    %v2382 = vpop.f32.mrf.mxu0
    %2383 = vdwg.mxu0
    %2384 = vmatpush.bf16.msra.mxu0 %v2076
    %2385 = vmatpush.bf16.msra.mxu0 %v2072
    %2386 = vmatpush.bf16.msra.mxu0 %v2068
    %2387 = vmatpush.bf16.msra.mxu0 %v2064
    %2388 = vmatpush.bf16.msra.mxu0 %v2060
    %2389 = vmatpush.bf16.msra.mxu0 %v2056
    %2390 = vmatpush.bf16.msra.mxu0 %v2052
    %2391 = vmatpush.bf16.msra.mxu0 %v2048
    %2392 = vmatmul.bf16.gmra.mxu0 %v2357
    %v2393 = vpop.f32.mrf.mxu0
    %v2394 = vadd.f32 0.0, %v2393
    %v2395 = vpop.f32.mrf.mxu0
    %2396 = vdwg.mxu0
    %2397 = vmatpush.bf16.msra.mxu0 %v2077
    %2398 = vmatpush.bf16.msra.mxu0 %v2073
    %2399 = vmatpush.bf16.msra.mxu0 %v2069
    %2400 = vmatpush.bf16.msra.mxu0 %v2065
    %2401 = vmatpush.bf16.msra.mxu0 %v2061
    %2402 = vmatpush.bf16.msra.mxu0 %v2057
    %2403 = vmatpush.bf16.msra.mxu0 %v2053
    %2404 = vmatpush.bf16.msra.mxu0 %v2049
    %2405 = vmatmul.bf16.gmra.mxu0 %v2357
    %v2406 = vpop.f32.mrf.mxu0
    %v2407 = vadd.f32 0.0, %v2406
    %v2408 = vpop.f32.mrf.mxu0
    %2409 = vdwg.mxu0
    %v2410 = vadd.f32 %v2353, %v2368
    %v2411 = vadd.f32 %v2354, %v2381
    %v2412 = vadd.f32 %v2355, %v2394
    %v2413 = vadd.f32 %v2356, %v2407
    %v2414 = vxor.u32 %v2410, 2147483648
    %v2415 = vmul.f32 %v2414, 1.442695
    %v2416 = vpow.pop %v2415
    %v2417 = vadd.f32 %v2416, 1.0
    %v2418 = vrcp.pop %v2417
    %v2419 = vmul.f32 %v2417, %v2418
    %v2420 = vsub.f32 1.0, %v2419
    %v2421 = vmul.f32 %v2418, %v2420
    %v2422 = vadd.f32 %v2418, %v2421
    %vm2423 = vweird.f32 %v2417
    %vm2424 = vweird.f32 %v2418
    %vm2425 = vmor %vm2423, %vm2424
    %v2426 = vsel %vm2425, %v2418, %v2422
    %v2427 = vand.u32 2147483647, %v2417
    %vm2428 = vcmp.eq.f32.partialorder %v2427, 8.507059e+37
    %v2429 = vand.u32 %v2417, 2147483648
    %v2430 = vor.u32 1.1754944e-38, %v2429
    %v2431 = vsel %vm2428, %v2430, %v2426
    %v2432 = vmul.f32 1.0, %v2431
    %v2433 = vxor.u32 %v2411, 2147483648
    %v2434 = vmul.f32 %v2433, 1.442695
    %v2435 = vpow.pop %v2434
    %v2436 = vadd.f32 %v2435, 1.0
    %v2437 = vrcp.pop %v2436
    %v2438 = vmul.f32 %v2436, %v2437
    %v2439 = vsub.f32 1.0, %v2438
    %v2440 = vmul.f32 %v2437, %v2439
    %v2441 = vadd.f32 %v2437, %v2440
    %vm2442 = vweird.f32 %v2436
    %vm2443 = vweird.f32 %v2437
    %vm2444 = vmor %vm2442, %vm2443
    %v2445 = vsel %vm2444, %v2437, %v2441
    %v2446 = vand.u32 2147483647, %v2436
    %vm2447 = vcmp.eq.f32.partialorder %v2446, 8.507059e+37
    %v2448 = vand.u32 %v2436, 2147483648
    %v2449 = vor.u32 1.1754944e-38, %v2448
    %v2450 = vsel %vm2447, %v2449, %v2445
    %v2451 = vmul.f32 1.0, %v2450
    %v2452 = vtanh.pop %v2412
    %v2453 = vxor.u32 %v2413, 2147483648
    %v2454 = vmul.f32 %v2453, 1.442695
    %v2455 = vpow.pop %v2454
    %v2456 = vadd.f32 %v2455, 1.0
    %v2457 = vrcp.pop %v2456
    %v2458 = vmul.f32 %v2456, %v2457
    %v2459 = vsub.f32 1.0, %v2458
    %v2460 = vmul.f32 %v2457, %v2459
    %v2461 = vadd.f32 %v2457, %v2460
    %vm2462 = vweird.f32 %v2456
    %vm2463 = vweird.f32 %v2457
    %vm2464 = vmor %vm2462, %vm2463
    %v2465 = vsel %vm2464, %v2457, %v2461
    %v2466 = vand.u32 2147483647, %v2456
    %vm2467 = vcmp.eq.f32.partialorder %v2466, 8.507059e+37
    %v2468 = vand.u32 %v2456, 2147483648
    %v2469 = vor.u32 1.1754944e-38, %v2468
    %v2470 = vsel %vm2467, %v2469, %v2465
    %v2471 = vmul.f32 1.0, %v2470
    %v2472 = vmul.f32 %v2451, %v2350
    %v2473 = vmul.f32 %v2432, %v2452
    %v2474 = vadd.f32 %v2472, %v2473
    %v2475 = vtanh.pop %v2474
    %v2476 = vmul.f32 %v2471, %v2475
    %v2477 = vld [vmem:[%s908] sm:$0xff]
    %v2478 = vld [vmem:[%s908 + $0x8] sm:$0xff]
    %v2479 = vld [vmem:[%s908 + $0x10] sm:$0xff]
    %v2480 = vld [vmem:[%s908 + $0x18] sm:$0xff]
    %v2481 = vpack.c.bf16 %v2476, %v2476
    %2482 = vmatpush.bf16.msra.mxu0 %v2074
    %2483 = vmatpush.bf16.msra.mxu0 %v2070
    %2484 = vmatpush.bf16.msra.mxu0 %v2066
    %2485 = vmatpush.bf16.msra.mxu0 %v2062
    %2486 = vmatpush.bf16.msra.mxu0 %v2058
    %2487 = vmatpush.bf16.msra.mxu0 %v2054
    %2488 = vmatpush.bf16.msra.mxu0 %v2050
    %2489 = vmatpush.bf16.msra.mxu0 %v2046
    %2490 = vmatmul.bf16.gmra.mxu0 %v2481
    %v2491 = vpop.f32.mrf.mxu0
    %v2492 = vadd.f32 0.0, %v2491
    %v2493 = vpop.f32.mrf.mxu0
    %2494 = vdwg.mxu0
    %2495 = vmatpush.bf16.msra.mxu0 %v2075
    %2496 = vmatpush.bf16.msra.mxu0 %v2071
    %2497 = vmatpush.bf16.msra.mxu0 %v2067
    %2498 = vmatpush.bf16.msra.mxu0 %v2063
    %2499 = vmatpush.bf16.msra.mxu0 %v2059
    %2500 = vmatpush.bf16.msra.mxu0 %v2055
    %2501 = vmatpush.bf16.msra.mxu0 %v2051
    %2502 = vmatpush.bf16.msra.mxu0 %v2047
    %2503 = vmatmul.bf16.gmra.mxu0 %v2481
    %v2504 = vpop.f32.mrf.mxu0
    %v2505 = vadd.f32 0.0, %v2504
    %v2506 = vpop.f32.mrf.mxu0
    %2507 = vdwg.mxu0
    %2508 = vmatpush.bf16.msra.mxu0 %v2076
    %2509 = vmatpush.bf16.msra.mxu0 %v2072
    %2510 = vmatpush.bf16.msra.mxu0 %v2068
    %2511 = vmatpush.bf16.msra.mxu0 %v2064
    %2512 = vmatpush.bf16.msra.mxu0 %v2060
    %2513 = vmatpush.bf16.msra.mxu0 %v2056
    %2514 = vmatpush.bf16.msra.mxu0 %v2052
    %2515 = vmatpush.bf16.msra.mxu0 %v2048
    %2516 = vmatmul.bf16.gmra.mxu0 %v2481
    %v2517 = vpop.f32.mrf.mxu0
    %v2518 = vadd.f32 0.0, %v2517
    %v2519 = vpop.f32.mrf.mxu0
    %2520 = vdwg.mxu0
    %2521 = vmatpush.bf16.msra.mxu0 %v2077
    %2522 = vmatpush.bf16.msra.mxu0 %v2073
    %2523 = vmatpush.bf16.msra.mxu0 %v2069
    %2524 = vmatpush.bf16.msra.mxu0 %v2065
    %2525 = vmatpush.bf16.msra.mxu0 %v2061
    %2526 = vmatpush.bf16.msra.mxu0 %v2057
    %2527 = vmatpush.bf16.msra.mxu0 %v2053
    %2528 = vmatpush.bf16.msra.mxu0 %v2049
    %2529 = vmatmul.bf16.gmra.mxu0 %v2481
    %v2530 = vpop.f32.mrf.mxu0
    %v2531 = vadd.f32 0.0, %v2530
    %v2532 = vpop.f32.mrf.mxu0
    %2533 = vdwg.mxu0
    %v2534 = vadd.f32 %v2477, %v2492
    %v2535 = vadd.f32 %v2478, %v2505
    %v2536 = vadd.f32 %v2479, %v2518
    %v2537 = vadd.f32 %v2480, %v2531
    %v2538 = vxor.u32 %v2534, 2147483648
    %v2539 = vmul.f32 %v2538, 1.442695
    %v2540 = vpow.pop %v2539
    %v2541 = vadd.f32 %v2540, 1.0
    %v2542 = vrcp.pop %v2541
    %v2543 = vmul.f32 %v2541, %v2542
    %v2544 = vsub.f32 1.0, %v2543
    %v2545 = vmul.f32 %v2542, %v2544
    %v2546 = vadd.f32 %v2542, %v2545
    %vm2547 = vweird.f32 %v2541
    %vm2548 = vweird.f32 %v2542
    %vm2549 = vmor %vm2547, %vm2548
    %v2550 = vsel %vm2549, %v2542, %v2546
    %v2551 = vand.u32 2147483647, %v2541
    %vm2552 = vcmp.eq.f32.partialorder %v2551, 8.507059e+37
    %v2553 = vand.u32 %v2541, 2147483648
    %v2554 = vor.u32 1.1754944e-38, %v2553
    %v2555 = vsel %vm2552, %v2554, %v2550
    %v2556 = vmul.f32 1.0, %v2555
    %v2557 = vxor.u32 %v2535, 2147483648
    %v2558 = vmul.f32 %v2557, 1.442695
    %v2559 = vpow.pop %v2558
    %v2560 = vadd.f32 %v2559, 1.0
    %v2561 = vrcp.pop %v2560
    %v2562 = vmul.f32 %v2560, %v2561
    %v2563 = vsub.f32 1.0, %v2562
    %v2564 = vmul.f32 %v2561, %v2563
    %v2565 = vadd.f32 %v2561, %v2564
    %vm2566 = vweird.f32 %v2560
    %vm2567 = vweird.f32 %v2561
    %vm2568 = vmor %vm2566, %vm2567
    %v2569 = vsel %vm2568, %v2561, %v2565
    %v2570 = vand.u32 2147483647, %v2560
    %vm2571 = vcmp.eq.f32.partialorder %v2570, 8.507059e+37
    %v2572 = vand.u32 %v2560, 2147483648
    %v2573 = vor.u32 1.1754944e-38, %v2572
    %v2574 = vsel %vm2571, %v2573, %v2569
    %v2575 = vmul.f32 1.0, %v2574
    %v2576 = vtanh.pop %v2536
    %v2577 = vxor.u32 %v2537, 2147483648
    %v2578 = vmul.f32 %v2577, 1.442695
    %v2579 = vpow.pop %v2578
    %v2580 = vadd.f32 %v2579, 1.0
    %v2581 = vrcp.pop %v2580
    %v2582 = vmul.f32 %v2580, %v2581
    %v2583 = vsub.f32 1.0, %v2582
    %v2584 = vmul.f32 %v2581, %v2583
    %v2585 = vadd.f32 %v2581, %v2584
    %vm2586 = vweird.f32 %v2580
    %vm2587 = vweird.f32 %v2581
    %vm2588 = vmor %vm2586, %vm2587
    %v2589 = vsel %vm2588, %v2581, %v2585
    %v2590 = vand.u32 2147483647, %v2580
    %vm2591 = vcmp.eq.f32.partialorder %v2590, 8.507059e+37
    %v2592 = vand.u32 %v2580, 2147483648
    %v2593 = vor.u32 1.1754944e-38, %v2592
    %v2594 = vsel %vm2591, %v2593, %v2589
    %v2595 = vmul.f32 1.0, %v2594
    %v2596 = vmul.f32 %v2575, %v2474
    %v2597 = vmul.f32 %v2556, %v2576
    %v2598 = vadd.f32 %v2596, %v2597
    %v2599 = vtanh.pop %v2598
    %v2600 = vmul.f32 %v2595, %v2599
    %v2601 = vld [vmem:[%s1037] sm:$0xff]
    %v2602 = vld [vmem:[%s1037 + $0x8] sm:$0xff]
    %v2603 = vld [vmem:[%s1037 + $0x10] sm:$0xff]
    %v2604 = vld [vmem:[%s1037 + $0x18] sm:$0xff]
    %v2605 = vpack.c.bf16 %v2600, %v2600
    %2606 = vmatpush.bf16.msra.mxu0 %v2074
    %2607 = vmatpush.bf16.msra.mxu0 %v2070
    %2608 = vmatpush.bf16.msra.mxu0 %v2066
    %2609 = vmatpush.bf16.msra.mxu0 %v2062
    %2610 = vmatpush.bf16.msra.mxu0 %v2058
    %2611 = vmatpush.bf16.msra.mxu0 %v2054
    %2612 = vmatpush.bf16.msra.mxu0 %v2050
    %2613 = vmatpush.bf16.msra.mxu0 %v2046
    %2614 = vmatmul.bf16.gmra.mxu0 %v2605
    %v2615 = vpop.f32.mrf.mxu0
    %v2616 = vadd.f32 0.0, %v2615
    %v2617 = vpop.f32.mrf.mxu0
    %2618 = vdwg.mxu0
    %2619 = vmatpush.bf16.msra.mxu0 %v2075
    %2620 = vmatpush.bf16.msra.mxu0 %v2071
    %2621 = vmatpush.bf16.msra.mxu0 %v2067
    %2622 = vmatpush.bf16.msra.mxu0 %v2063
    %2623 = vmatpush.bf16.msra.mxu0 %v2059
    %2624 = vmatpush.bf16.msra.mxu0 %v2055
    %2625 = vmatpush.bf16.msra.mxu0 %v2051
    %2626 = vmatpush.bf16.msra.mxu0 %v2047
    %2627 = vmatmul.bf16.gmra.mxu0 %v2605
    %v2628 = vpop.f32.mrf.mxu0
    %v2629 = vadd.f32 0.0, %v2628
    %v2630 = vpop.f32.mrf.mxu0
    %2631 = vdwg.mxu0
    %2632 = vmatpush.bf16.msra.mxu0 %v2076
    %2633 = vmatpush.bf16.msra.mxu0 %v2072
    %2634 = vmatpush.bf16.msra.mxu0 %v2068
    %2635 = vmatpush.bf16.msra.mxu0 %v2064
    %2636 = vmatpush.bf16.msra.mxu0 %v2060
    %2637 = vmatpush.bf16.msra.mxu0 %v2056
    %2638 = vmatpush.bf16.msra.mxu0 %v2052
    %2639 = vmatpush.bf16.msra.mxu0 %v2048
    %2640 = vmatmul.bf16.gmra.mxu0 %v2605
    %v2641 = vpop.f32.mrf.mxu0
    %v2642 = vadd.f32 0.0, %v2641
    %v2643 = vpop.f32.mrf.mxu0
    %2644 = vdwg.mxu0
    %2645 = vmatpush.bf16.msra.mxu0 %v2077
    %2646 = vmatpush.bf16.msra.mxu0 %v2073
    %2647 = vmatpush.bf16.msra.mxu0 %v2069
    %2648 = vmatpush.bf16.msra.mxu0 %v2065
    %2649 = vmatpush.bf16.msra.mxu0 %v2061
    %2650 = vmatpush.bf16.msra.mxu0 %v2057
    %2651 = vmatpush.bf16.msra.mxu0 %v2053
    %2652 = vmatpush.bf16.msra.mxu0 %v2049
    %2653 = vmatmul.bf16.gmra.mxu0 %v2605
    %v2654 = vpop.f32.mrf.mxu0
    %v2655 = vadd.f32 0.0, %v2654
    %v2656 = vpop.f32.mrf.mxu0
    %2657 = vdwg.mxu0
    %v2658 = vadd.f32 %v2601, %v2616
    %v2659 = vadd.f32 %v2602, %v2629
    %v2660 = vadd.f32 %v2603, %v2642
    %v2661 = vadd.f32 %v2604, %v2655
    %v2662 = vxor.u32 %v2658, 2147483648
    %v2663 = vmul.f32 %v2662, 1.442695
    %v2664 = vpow.pop %v2663
    %v2665 = vadd.f32 %v2664, 1.0
    %v2666 = vrcp.pop %v2665
    %v2667 = vmul.f32 %v2665, %v2666
    %v2668 = vsub.f32 1.0, %v2667
    %v2669 = vmul.f32 %v2666, %v2668
    %v2670 = vadd.f32 %v2666, %v2669
    %vm2671 = vweird.f32 %v2665
    %vm2672 = vweird.f32 %v2666
    %vm2673 = vmor %vm2671, %vm2672
    %v2674 = vsel %vm2673, %v2666, %v2670
    %v2675 = vand.u32 2147483647, %v2665
    %vm2676 = vcmp.eq.f32.partialorder %v2675, 8.507059e+37
    %v2677 = vand.u32 %v2665, 2147483648
    %v2678 = vor.u32 1.1754944e-38, %v2677
    %v2679 = vsel %vm2676, %v2678, %v2674
    %v2680 = vmul.f32 1.0, %v2679
    %v2681 = vxor.u32 %v2659, 2147483648
    %v2682 = vmul.f32 %v2681, 1.442695
    %v2683 = vpow.pop %v2682
    %v2684 = vadd.f32 %v2683, 1.0
    %v2685 = vrcp.pop %v2684
    %v2686 = vmul.f32 %v2684, %v2685
    %v2687 = vsub.f32 1.0, %v2686
    %v2688 = vmul.f32 %v2685, %v2687
    %v2689 = vadd.f32 %v2685, %v2688
    %vm2690 = vweird.f32 %v2684
    %vm2691 = vweird.f32 %v2685
    %vm2692 = vmor %vm2690, %vm2691
    %v2693 = vsel %vm2692, %v2685, %v2689
    %v2694 = vand.u32 2147483647, %v2684
    %vm2695 = vcmp.eq.f32.partialorder %v2694, 8.507059e+37
    %v2696 = vand.u32 %v2684, 2147483648
    %v2697 = vor.u32 1.1754944e-38, %v2696
    %v2698 = vsel %vm2695, %v2697, %v2693
    %v2699 = vmul.f32 1.0, %v2698
    %v2700 = vtanh.pop %v2660
    %v2701 = vxor.u32 %v2661, 2147483648
    %v2702 = vmul.f32 %v2701, 1.442695
    %v2703 = vpow.pop %v2702
    %v2704 = vadd.f32 %v2703, 1.0
    %v2705 = vrcp.pop %v2704
    %v2706 = vmul.f32 %v2704, %v2705
    %v2707 = vsub.f32 1.0, %v2706
    %v2708 = vmul.f32 %v2705, %v2707
    %v2709 = vadd.f32 %v2705, %v2708
    %vm2710 = vweird.f32 %v2704
    %vm2711 = vweird.f32 %v2705
    %vm2712 = vmor %vm2710, %vm2711
    %v2713 = vsel %vm2712, %v2705, %v2709
    %v2714 = vand.u32 2147483647, %v2704
    %vm2715 = vcmp.eq.f32.partialorder %v2714, 8.507059e+37
    %v2716 = vand.u32 %v2704, 2147483648
    %v2717 = vor.u32 1.1754944e-38, %v2716
    %v2718 = vsel %vm2715, %v2717, %v2713
    %v2719 = vmul.f32 1.0, %v2718
    %v2720 = vmul.f32 %v2699, %v2598
    %v2721 = vmul.f32 %v2680, %v2700
    %v2722 = vadd.f32 %v2720, %v2721
    %v2723 = vtanh.pop %v2722
    %v2724 = vmul.f32 %v2719, %v2723
    %v2725 = vld [vmem:[%s1166] sm:$0xff]
    %v2726 = vld [vmem:[%s1166 + $0x8] sm:$0xff]
    %v2727 = vld [vmem:[%s1166 + $0x10] sm:$0xff]
    %v2728 = vld [vmem:[%s1166 + $0x18] sm:$0xff]
    %v2729 = vpack.c.bf16 %v2724, %v2724
    %2730 = vmatpush.bf16.msra.mxu0 %v2074
    %2731 = vmatpush.bf16.msra.mxu0 %v2070
    %2732 = vmatpush.bf16.msra.mxu0 %v2066
    %2733 = vmatpush.bf16.msra.mxu0 %v2062
    %2734 = vmatpush.bf16.msra.mxu0 %v2058
    %2735 = vmatpush.bf16.msra.mxu0 %v2054
    %2736 = vmatpush.bf16.msra.mxu0 %v2050
    %2737 = vmatpush.bf16.msra.mxu0 %v2046
    %2738 = vmatmul.bf16.gmra.mxu0 %v2729
    %v2739 = vpop.f32.mrf.mxu0
    %v2740 = vadd.f32 0.0, %v2739
    %v2741 = vpop.f32.mrf.mxu0
    %2742 = vdwg.mxu0
    %2743 = vmatpush.bf16.msra.mxu0 %v2075
    %2744 = vmatpush.bf16.msra.mxu0 %v2071
    %2745 = vmatpush.bf16.msra.mxu0 %v2067
    %2746 = vmatpush.bf16.msra.mxu0 %v2063
    %2747 = vmatpush.bf16.msra.mxu0 %v2059
    %2748 = vmatpush.bf16.msra.mxu0 %v2055
    %2749 = vmatpush.bf16.msra.mxu0 %v2051
    %2750 = vmatpush.bf16.msra.mxu0 %v2047
    %2751 = vmatmul.bf16.gmra.mxu0 %v2729
    %v2752 = vpop.f32.mrf.mxu0
    %v2753 = vadd.f32 0.0, %v2752
    %v2754 = vpop.f32.mrf.mxu0
    %2755 = vdwg.mxu0
    %2756 = vmatpush.bf16.msra.mxu0 %v2076
    %2757 = vmatpush.bf16.msra.mxu0 %v2072
    %2758 = vmatpush.bf16.msra.mxu0 %v2068
    %2759 = vmatpush.bf16.msra.mxu0 %v2064
    %2760 = vmatpush.bf16.msra.mxu0 %v2060
    %2761 = vmatpush.bf16.msra.mxu0 %v2056
    %2762 = vmatpush.bf16.msra.mxu0 %v2052
    %2763 = vmatpush.bf16.msra.mxu0 %v2048
    %2764 = vmatmul.bf16.gmra.mxu0 %v2729
    %v2765 = vpop.f32.mrf.mxu0
    %v2766 = vadd.f32 0.0, %v2765
    %v2767 = vpop.f32.mrf.mxu0
    %2768 = vdwg.mxu0
    %2769 = vmatpush.bf16.msra.mxu0 %v2077
    %2770 = vmatpush.bf16.msra.mxu0 %v2073
    %2771 = vmatpush.bf16.msra.mxu0 %v2069
    %2772 = vmatpush.bf16.msra.mxu0 %v2065
    %2773 = vmatpush.bf16.msra.mxu0 %v2061
    %2774 = vmatpush.bf16.msra.mxu0 %v2057
    %2775 = vmatpush.bf16.msra.mxu0 %v2053
    %2776 = vmatpush.bf16.msra.mxu0 %v2049
    %2777 = vmatmul.bf16.gmra.mxu0 %v2729
    %v2778 = vpop.f32.mrf.mxu0
    %v2779 = vadd.f32 0.0, %v2778
    %v2780 = vpop.f32.mrf.mxu0
    %2781 = vdwg.mxu0
    %v2782 = vadd.f32 %v2725, %v2740
    %v2783 = vadd.f32 %v2726, %v2753
    %v2784 = vadd.f32 %v2727, %v2766
    %v2785 = vadd.f32 %v2728, %v2779
    %v2786 = vxor.u32 %v2782, 2147483648
    %v2787 = vmul.f32 %v2786, 1.442695
    %v2788 = vpow.pop %v2787
    %v2789 = vadd.f32 %v2788, 1.0
    %v2790 = vrcp.pop %v2789
    %v2791 = vmul.f32 %v2789, %v2790
    %v2792 = vsub.f32 1.0, %v2791
    %v2793 = vmul.f32 %v2790, %v2792
    %v2794 = vadd.f32 %v2790, %v2793
    %vm2795 = vweird.f32 %v2789
    %vm2796 = vweird.f32 %v2790
    %vm2797 = vmor %vm2795, %vm2796
    %v2798 = vsel %vm2797, %v2790, %v2794
    %v2799 = vand.u32 2147483647, %v2789
    %vm2800 = vcmp.eq.f32.partialorder %v2799, 8.507059e+37
    %v2801 = vand.u32 %v2789, 2147483648
    %v2802 = vor.u32 1.1754944e-38, %v2801
    %v2803 = vsel %vm2800, %v2802, %v2798
    %v2804 = vmul.f32 1.0, %v2803
    %v2805 = vxor.u32 %v2783, 2147483648
    %v2806 = vmul.f32 %v2805, 1.442695
    %v2807 = vpow.pop %v2806
    %v2808 = vadd.f32 %v2807, 1.0
    %v2809 = vrcp.pop %v2808
    %v2810 = vmul.f32 %v2808, %v2809
    %v2811 = vsub.f32 1.0, %v2810
    %v2812 = vmul.f32 %v2809, %v2811
    %v2813 = vadd.f32 %v2809, %v2812
    %vm2814 = vweird.f32 %v2808
    %vm2815 = vweird.f32 %v2809
    %vm2816 = vmor %vm2814, %vm2815
    %v2817 = vsel %vm2816, %v2809, %v2813
    %v2818 = vand.u32 2147483647, %v2808
    %vm2819 = vcmp.eq.f32.partialorder %v2818, 8.507059e+37
    %v2820 = vand.u32 %v2808, 2147483648
    %v2821 = vor.u32 1.1754944e-38, %v2820
    %v2822 = vsel %vm2819, %v2821, %v2817
    %v2823 = vmul.f32 1.0, %v2822
    %v2824 = vtanh.pop %v2784
    %v2825 = vxor.u32 %v2785, 2147483648
    %v2826 = vmul.f32 %v2825, 1.442695
    %v2827 = vpow.pop %v2826
    %v2828 = vadd.f32 %v2827, 1.0
    %v2829 = vrcp.pop %v2828
    %v2830 = vmul.f32 %v2828, %v2829
    %v2831 = vsub.f32 1.0, %v2830
    %v2832 = vmul.f32 %v2829, %v2831
    %v2833 = vadd.f32 %v2829, %v2832
    %vm2834 = vweird.f32 %v2828
    %vm2835 = vweird.f32 %v2829
    %vm2836 = vmor %vm2834, %vm2835
    %v2837 = vsel %vm2836, %v2829, %v2833
    %v2838 = vand.u32 2147483647, %v2828
    %vm2839 = vcmp.eq.f32.partialorder %v2838, 8.507059e+37
    %v2840 = vand.u32 %v2828, 2147483648
    %v2841 = vor.u32 1.1754944e-38, %v2840
    %v2842 = vsel %vm2839, %v2841, %v2837
    %v2843 = vmul.f32 1.0, %v2842
    %v2844 = vmul.f32 %v2823, %v2722
    %v2845 = vmul.f32 %v2804, %v2824
    %v2846 = vadd.f32 %v2844, %v2845
    %v2847 = vtanh.pop %v2846
    %v2848 = vmul.f32 %v2843, %v2847
    %v2849 = vld [vmem:[%s1295] sm:$0xff]
    %v2850 = vld [vmem:[%s1295 + $0x8] sm:$0xff]
    %v2851 = vld [vmem:[%s1295 + $0x10] sm:$0xff]
    %v2852 = vld [vmem:[%s1295 + $0x18] sm:$0xff]
    %v2853 = vpack.c.bf16 %v2848, %v2848
    %2854 = vmatpush.bf16.msra.mxu0 %v2074
    %2855 = vmatpush.bf16.msra.mxu0 %v2070
    %2856 = vmatpush.bf16.msra.mxu0 %v2066
    %2857 = vmatpush.bf16.msra.mxu0 %v2062
    %2858 = vmatpush.bf16.msra.mxu0 %v2058
    %2859 = vmatpush.bf16.msra.mxu0 %v2054
    %2860 = vmatpush.bf16.msra.mxu0 %v2050
    %2861 = vmatpush.bf16.msra.mxu0 %v2046
    %2862 = vmatmul.bf16.gmra.mxu0 %v2853
    %v2863 = vpop.f32.mrf.mxu0
    %v2864 = vadd.f32 0.0, %v2863
    %v2865 = vpop.f32.mrf.mxu0
    %2866 = vdwg.mxu0
    %2867 = vmatpush.bf16.msra.mxu0 %v2075
    %2868 = vmatpush.bf16.msra.mxu0 %v2071
    %2869 = vmatpush.bf16.msra.mxu0 %v2067
    %2870 = vmatpush.bf16.msra.mxu0 %v2063
    %2871 = vmatpush.bf16.msra.mxu0 %v2059
    %2872 = vmatpush.bf16.msra.mxu0 %v2055
    %2873 = vmatpush.bf16.msra.mxu0 %v2051
    %2874 = vmatpush.bf16.msra.mxu0 %v2047
    %2875 = vmatmul.bf16.gmra.mxu0 %v2853
    %v2876 = vpop.f32.mrf.mxu0
    %v2877 = vadd.f32 0.0, %v2876
    %v2878 = vpop.f32.mrf.mxu0
    %2879 = vdwg.mxu0
    %2880 = vmatpush.bf16.msra.mxu0 %v2076
    %2881 = vmatpush.bf16.msra.mxu0 %v2072
    %2882 = vmatpush.bf16.msra.mxu0 %v2068
    %2883 = vmatpush.bf16.msra.mxu0 %v2064
    %2884 = vmatpush.bf16.msra.mxu0 %v2060
    %2885 = vmatpush.bf16.msra.mxu0 %v2056
    %2886 = vmatpush.bf16.msra.mxu0 %v2052
    %2887 = vmatpush.bf16.msra.mxu0 %v2048
    %2888 = vmatmul.bf16.gmra.mxu0 %v2853
    %v2889 = vpop.f32.mrf.mxu0
    %v2890 = vadd.f32 0.0, %v2889
    %v2891 = vpop.f32.mrf.mxu0
    %2892 = vdwg.mxu0
    %2893 = vmatpush.bf16.msra.mxu0 %v2077
    %2894 = vmatpush.bf16.msra.mxu0 %v2073
    %2895 = vmatpush.bf16.msra.mxu0 %v2069
    %2896 = vmatpush.bf16.msra.mxu0 %v2065
    %2897 = vmatpush.bf16.msra.mxu0 %v2061
    %2898 = vmatpush.bf16.msra.mxu0 %v2057
    %2899 = vmatpush.bf16.msra.mxu0 %v2053
    %2900 = vmatpush.bf16.msra.mxu0 %v2049
    %2901 = vmatmul.bf16.gmra.mxu0 %v2853
    %v2902 = vpop.f32.mrf.mxu0
    %v2903 = vadd.f32 0.0, %v2902
    %v2904 = vpop.f32.mrf.mxu0
    %2905 = vdwg.mxu0
    %v2906 = vadd.f32 %v2849, %v2864
    %v2907 = vadd.f32 %v2850, %v2877
    %v2908 = vadd.f32 %v2851, %v2890
    %v2909 = vadd.f32 %v2852, %v2903
    %v2910 = vxor.u32 %v2906, 2147483648
    %v2911 = vmul.f32 %v2910, 1.442695
    %v2912 = vpow.pop %v2911
    %v2913 = vadd.f32 %v2912, 1.0
    %v2914 = vrcp.pop %v2913
    %v2915 = vmul.f32 %v2913, %v2914
    %v2916 = vsub.f32 1.0, %v2915
    %v2917 = vmul.f32 %v2914, %v2916
    %v2918 = vadd.f32 %v2914, %v2917
    %vm2919 = vweird.f32 %v2913
    %vm2920 = vweird.f32 %v2914
    %vm2921 = vmor %vm2919, %vm2920
    %v2922 = vsel %vm2921, %v2914, %v2918
    %v2923 = vand.u32 2147483647, %v2913
    %vm2924 = vcmp.eq.f32.partialorder %v2923, 8.507059e+37
    %v2925 = vand.u32 %v2913, 2147483648
    %v2926 = vor.u32 1.1754944e-38, %v2925
    %v2927 = vsel %vm2924, %v2926, %v2922
    %v2928 = vmul.f32 1.0, %v2927
    %v2929 = vxor.u32 %v2907, 2147483648
    %v2930 = vmul.f32 %v2929, 1.442695
    %v2931 = vpow.pop %v2930
    %v2932 = vadd.f32 %v2931, 1.0
    %v2933 = vrcp.pop %v2932
    %v2934 = vmul.f32 %v2932, %v2933
    %v2935 = vsub.f32 1.0, %v2934
    %v2936 = vmul.f32 %v2933, %v2935
    %v2937 = vadd.f32 %v2933, %v2936
    %vm2938 = vweird.f32 %v2932
    %vm2939 = vweird.f32 %v2933
    %vm2940 = vmor %vm2938, %vm2939
    %v2941 = vsel %vm2940, %v2933, %v2937
    %v2942 = vand.u32 2147483647, %v2932
    %vm2943 = vcmp.eq.f32.partialorder %v2942, 8.507059e+37
    %v2944 = vand.u32 %v2932, 2147483648
    %v2945 = vor.u32 1.1754944e-38, %v2944
    %v2946 = vsel %vm2943, %v2945, %v2941
    %v2947 = vmul.f32 1.0, %v2946
    %v2948 = vtanh.pop %v2908
    %v2949 = vxor.u32 %v2909, 2147483648
    %v2950 = vmul.f32 %v2949, 1.442695
    %v2951 = vpow.pop %v2950
    %v2952 = vadd.f32 %v2951, 1.0
    %v2953 = vrcp.pop %v2952
    %v2954 = vmul.f32 %v2952, %v2953
    %v2955 = vsub.f32 1.0, %v2954
    %v2956 = vmul.f32 %v2953, %v2955
    %v2957 = vadd.f32 %v2953, %v2956
    %vm2958 = vweird.f32 %v2952
    %vm2959 = vweird.f32 %v2953
    %vm2960 = vmor %vm2958, %vm2959
    %v2961 = vsel %vm2960, %v2953, %v2957
    %v2962 = vand.u32 2147483647, %v2952
    %vm2963 = vcmp.eq.f32.partialorder %v2962, 8.507059e+37
    %v2964 = vand.u32 %v2952, 2147483648
    %v2965 = vor.u32 1.1754944e-38, %v2964
    %v2966 = vsel %vm2963, %v2965, %v2961
    %v2967 = vmul.f32 1.0, %v2966
    %v2968 = vmul.f32 %v2947, %v2846
    %v2969 = vmul.f32 %v2928, %v2948
    %v2970 = vadd.f32 %v2968, %v2969
    %v2971 = vtanh.pop %v2970
    %v2972 = vmul.f32 %v2967, %v2971
    %v2973 = vld [vmem:[%s1424] sm:$0xff]
    %v2974 = vld [vmem:[%s1424 + $0x8] sm:$0xff]
    %v2975 = vld [vmem:[%s1424 + $0x10] sm:$0xff]
    %v2976 = vld [vmem:[%s1424 + $0x18] sm:$0xff]
    %v2977 = vpack.c.bf16 %v2972, %v2972
    %2978 = vmatpush.bf16.msra.mxu0 %v2074
    %2979 = vmatpush.bf16.msra.mxu0 %v2070
    %2980 = vmatpush.bf16.msra.mxu0 %v2066
    %2981 = vmatpush.bf16.msra.mxu0 %v2062
    %2982 = vmatpush.bf16.msra.mxu0 %v2058
    %2983 = vmatpush.bf16.msra.mxu0 %v2054
    %2984 = vmatpush.bf16.msra.mxu0 %v2050
    %2985 = vmatpush.bf16.msra.mxu0 %v2046
    %2986 = vmatmul.bf16.gmra.mxu0 %v2977
    %v2987 = vpop.f32.mrf.mxu0
    %v2988 = vadd.f32 0.0, %v2987
    %v2989 = vpop.f32.mrf.mxu0
    %2990 = vdwg.mxu0
    %2991 = vmatpush.bf16.msra.mxu0 %v2075
    %2992 = vmatpush.bf16.msra.mxu0 %v2071
    %2993 = vmatpush.bf16.msra.mxu0 %v2067
    %2994 = vmatpush.bf16.msra.mxu0 %v2063
    %2995 = vmatpush.bf16.msra.mxu0 %v2059
    %2996 = vmatpush.bf16.msra.mxu0 %v2055
    %2997 = vmatpush.bf16.msra.mxu0 %v2051
    %2998 = vmatpush.bf16.msra.mxu0 %v2047
    %2999 = vmatmul.bf16.gmra.mxu0 %v2977
    %v3000 = vpop.f32.mrf.mxu0
    %v3001 = vadd.f32 0.0, %v3000
    %v3002 = vpop.f32.mrf.mxu0
    %3003 = vdwg.mxu0
    %3004 = vmatpush.bf16.msra.mxu0 %v2076
    %3005 = vmatpush.bf16.msra.mxu0 %v2072
    %3006 = vmatpush.bf16.msra.mxu0 %v2068
    %3007 = vmatpush.bf16.msra.mxu0 %v2064
    %3008 = vmatpush.bf16.msra.mxu0 %v2060
    %3009 = vmatpush.bf16.msra.mxu0 %v2056
    %3010 = vmatpush.bf16.msra.mxu0 %v2052
    %3011 = vmatpush.bf16.msra.mxu0 %v2048
    %3012 = vmatmul.bf16.gmra.mxu0 %v2977
    %v3013 = vpop.f32.mrf.mxu0
    %v3014 = vadd.f32 0.0, %v3013
    %v3015 = vpop.f32.mrf.mxu0
    %3016 = vdwg.mxu0
    %3017 = vmatpush.bf16.msra.mxu0 %v2077
    %3018 = vmatpush.bf16.msra.mxu0 %v2073
    %3019 = vmatpush.bf16.msra.mxu0 %v2069
    %3020 = vmatpush.bf16.msra.mxu0 %v2065
    %3021 = vmatpush.bf16.msra.mxu0 %v2061
    %3022 = vmatpush.bf16.msra.mxu0 %v2057
    %3023 = vmatpush.bf16.msra.mxu0 %v2053
    %3024 = vmatpush.bf16.msra.mxu0 %v2049
    %3025 = vmatmul.bf16.gmra.mxu0 %v2977
    %v3026 = vpop.f32.mrf.mxu0
    %v3027 = vadd.f32 0.0, %v3026
    %v3028 = vpop.f32.mrf.mxu0
    %3029 = vdwg.mxu0
    %v3030 = vadd.f32 %v2973, %v2988
    %v3031 = vadd.f32 %v2974, %v3001
    %v3032 = vadd.f32 %v2975, %v3014
    %v3033 = vadd.f32 %v2976, %v3027
    %v3034 = vxor.u32 %v3030, 2147483648
    %v3035 = vmul.f32 %v3034, 1.442695
    %v3036 = vpow.pop %v3035
    %v3037 = vadd.f32 %v3036, 1.0
    %v3038 = vrcp.pop %v3037
    %v3039 = vmul.f32 %v3037, %v3038
    %v3040 = vsub.f32 1.0, %v3039
    %v3041 = vmul.f32 %v3038, %v3040
    %v3042 = vadd.f32 %v3038, %v3041
    %vm3043 = vweird.f32 %v3037
    %vm3044 = vweird.f32 %v3038
    %vm3045 = vmor %vm3043, %vm3044
    %v3046 = vsel %vm3045, %v3038, %v3042
    %v3047 = vand.u32 2147483647, %v3037
    %vm3048 = vcmp.eq.f32.partialorder %v3047, 8.507059e+37
    %v3049 = vand.u32 %v3037, 2147483648
    %v3050 = vor.u32 1.1754944e-38, %v3049
    %v3051 = vsel %vm3048, %v3050, %v3046
    %v3052 = vmul.f32 1.0, %v3051
    %v3053 = vxor.u32 %v3031, 2147483648
    %v3054 = vmul.f32 %v3053, 1.442695
    %v3055 = vpow.pop %v3054
    %v3056 = vadd.f32 %v3055, 1.0
    %v3057 = vrcp.pop %v3056
    %v3058 = vmul.f32 %v3056, %v3057
    %v3059 = vsub.f32 1.0, %v3058
    %v3060 = vmul.f32 %v3057, %v3059
    %v3061 = vadd.f32 %v3057, %v3060
    %vm3062 = vweird.f32 %v3056
    %vm3063 = vweird.f32 %v3057
    %vm3064 = vmor %vm3062, %vm3063
    %v3065 = vsel %vm3064, %v3057, %v3061
    %v3066 = vand.u32 2147483647, %v3056
    %vm3067 = vcmp.eq.f32.partialorder %v3066, 8.507059e+37
    %v3068 = vand.u32 %v3056, 2147483648
    %v3069 = vor.u32 1.1754944e-38, %v3068
    %v3070 = vsel %vm3067, %v3069, %v3065
    %v3071 = vmul.f32 1.0, %v3070
    %v3072 = vtanh.pop %v3032
    %v3073 = vxor.u32 %v3033, 2147483648
    %v3074 = vmul.f32 %v3073, 1.442695
    %v3075 = vpow.pop %v3074
    %v3076 = vadd.f32 %v3075, 1.0
    %v3077 = vrcp.pop %v3076
    %v3078 = vmul.f32 %v3076, %v3077
    %v3079 = vsub.f32 1.0, %v3078
    %v3080 = vmul.f32 %v3077, %v3079
    %v3081 = vadd.f32 %v3077, %v3080
    %vm3082 = vweird.f32 %v3076
    %vm3083 = vweird.f32 %v3077
    %vm3084 = vmor %vm3082, %vm3083
    %v3085 = vsel %vm3084, %v3077, %v3081
    %v3086 = vand.u32 2147483647, %v3076
    %vm3087 = vcmp.eq.f32.partialorder %v3086, 8.507059e+37
    %v3088 = vand.u32 %v3076, 2147483648
    %v3089 = vor.u32 1.1754944e-38, %v3088
    %v3090 = vsel %vm3087, %v3089, %v3085
    %v3091 = vmul.f32 1.0, %v3090
    %v3092 = vmul.f32 %v3071, %v2970
    %v3093 = vmul.f32 %v3052, %v3072
    %v3094 = vadd.f32 %v3092, %v3093
    %v3095 = vtanh.pop %v3094
    %v3096 = vmul.f32 %v3091, %v3095
    %s3097 = scalar_lea.vmem %s10, 8
    %3098 = vst [vmem:[%s3097] sm:$0xff] %v3096
    %v3099 = vpack.c.bf16 %v3096, %v3096
    %v3100 = vld [vmem:[%s7] sm:$0xf]
    %v3101 = vld [vmem:[%s7 + $0x4] sm:$0xf]
    %v3102 = vld [vmem:[%s7 + $0x8] sm:$0xf]
    %v3103 = vld [vmem:[%s7 + $0xc] sm:$0xf]
    %v3104 = vld [vmem:[%s7 + $0x10] sm:$0xf]
    %v3105 = vld [vmem:[%s7 + $0x14] sm:$0xf]
    %v3106 = vld [vmem:[%s7 + $0x18] sm:$0xf]
    %v3107 = vld [vmem:[%s7 + $0x1c] sm:$0xf]
    %v3108 = vld [vmem:[%s7 + $0x20] sm:$0xf]
    %v3109 = vld [vmem:[%s7 + $0x24] sm:$0xf]
    %v3110 = vld [vmem:[%s7 + $0x28] sm:$0xf]
    %v3111 = vld [vmem:[%s7 + $0x2c] sm:$0xf]
    %v3112 = vld [vmem:[%s7 + $0x30] sm:$0xf]
    %v3113 = vld [vmem:[%s7 + $0x34] sm:$0xf]
    %v3114 = vld [vmem:[%s7 + $0x38] sm:$0xf]
    %v3115 = vld [vmem:[%s7 + $0x3c] sm:$0xf]
    %v3116 = vld [vmem:[%s8] sm:$0x1]
    %v3118 = vperm.slane %v3116, 0
    %v3136 = vunpack.c.l.b16 %v3100
    %v3137 = vunpack.c.l.b16 %v3101
    %v3138 = vunpack.c.l.b16 %v3102
    %v3139 = vunpack.c.l.b16 %v3103
    %v3140 = vunpack.c.l.b16 %v3104
    %v3141 = vunpack.c.l.b16 %v3105
    %v3142 = vunpack.c.l.b16 %v3106
    %v3143 = vunpack.c.l.b16 %v3107
    %v3144 = vunpack.c.l.b16 %v3108
    %v3145 = vunpack.c.l.b16 %v3109
    %v3146 = vunpack.c.l.b16 %v3110
    %v3147 = vunpack.c.l.b16 %v3111
    %v3148 = vunpack.c.l.b16 %v3112
    %v3149 = vunpack.c.l.b16 %v3113
    %v3150 = vunpack.c.l.b16 %v3114
    %v3151 = vunpack.c.l.b16 %v3115
    %v3152 = vpack.c.b16 %v3137, %v3136
    %v3153 = vpack.c.b16 %v3139, %v3138
    %v3154 = vpack.c.b16 %v3141, %v3140
    %v3155 = vpack.c.b16 %v3143, %v3142
    %v3156 = vpack.c.b16 %v3145, %v3144
    %v3157 = vpack.c.b16 %v3147, %v3146
    %v3158 = vpack.c.b16 %v3149, %v3148
    %v3159 = vpack.c.b16 %v3151, %v3150
    %3168 = vmatpush.bf16.msra.mxu0 %v3159
    %3169 = vmatpush.bf16.msra.mxu0 %v3158
    %3170 = vmatpush.bf16.msra.mxu0 %v3157
    %3171 = vmatpush.bf16.msra.mxu0 %v3156
    %3172 = vmatpush.bf16.msra.mxu0 %v3155
    %3173 = vmatpush.bf16.msra.mxu0 %v3154
    %3174 = vmatpush.bf16.msra.mxu0 %v3153
    %3175 = vmatpush.bf16.msra.mxu0 %v3152
    %3176 = vmatmul.bf16.gmra.mxu0 %v3099
    %v3177 = vpop.f32.mrf.mxu0
    %v3178 = vadd.f32 %v3118, %v3177
    %v3179 = vpop.f32.mrf.mxu0
    %3180 = vdwg.mxu0
    %v3181 = vxor.u32 %v3178, 2147483648
    %v3182 = vmul.f32 %v3181, 1.442695
    %v3183 = vpow.pop %v3182
    %v3184 = vadd.f32 %v3183, 1.0
    %v3185 = vrcp.pop %v3184
    %v3186 = vmul.f32 %v3184, %v3185
    %v3187 = vsub.f32 1.0, %v3186
    %v3188 = vmul.f32 %v3185, %v3187
    %v3189 = vadd.f32 %v3185, %v3188
    %vm3190 = vweird.f32 %v3184
    %vm3191 = vweird.f32 %v3185
    %vm3192 = vmor %vm3190, %vm3191
    %v3193 = vsel %vm3192, %v3185, %v3189
    %v3194 = vand.u32 2147483647, %v3184
    %vm3195 = vcmp.eq.f32.partialorder %v3194, 8.507059e+37
    %v3196 = vand.u32 %v3184, 2147483648
    %v3197 = vor.u32 1.1754944e-38, %v3196
    %v3198 = vsel %vm3195, %v3197, %v3193
    %v3199 = vmul.f32 1.0, %v3198
    %3200 = vst [vmem:[%s9] sm:$0xff] %v3199
    // Predicated region
    $region50: #{sentiment_lstm_forward.1} parent=1 // pred_check
      _
    $region51: #{sentiment_lstm_forward.1} parent=1 // pred_check_branch
      %3202 = sbr.rel (0) target = $region53
    $region52: #{sentiment_lstm_forward.1} parent=1 // pred_region
      _
    $region53: #{sentiment_lstm_forward.1} parent=1 // pred_fallthru
      _
    // Predicated region
    $region54: #{sentiment_lstm_forward.1} parent=1 // pred_check
      _
    $region55: #{sentiment_lstm_forward.1} parent=1 // pred_check_branch
      %3204 = sbr.rel (0) target = $region57
    $region56: #{sentiment_lstm_forward.1} parent=1 // pred_region
      _
    $region57: #{sentiment_lstm_forward.1} parent=1 // pred_fallthru
      _
    // Predicated region
    $region58: #{sentiment_lstm_forward.1} parent=1 // pred_check
      _
    $region59: #{sentiment_lstm_forward.1} parent=1 // pred_check_branch
      %3206 = sbr.rel (0) target = $region61
    $region60: #{sentiment_lstm_forward.1} parent=1 // pred_region
      _
    $region61: #{sentiment_lstm_forward.1} parent=1 // pred_fallthru
      _
    // Predicated region
    $region62: #{sentiment_lstm_forward.1} parent=1 // pred_check
      _
    $region63: #{sentiment_lstm_forward.1} parent=1 // pred_check_branch
      %3208 = sbr.rel (0) target = $region65
    $region64: #{sentiment_lstm_forward.1} parent=1 // pred_region
      _
    $region65: #{sentiment_lstm_forward.1} parent=1 // pred_fallthru
      _
    %3209 = vsyncpa [#allocation5], 1
    %3210 = vsyncpa [#allocation7], 1

</llo_original>
